<compile_context>
chip_gen: v7x
topology: tpu7x:2x2x1
jax: 0.10.0
libtpu: 0.0.40
codegen_flags: <defaults>
</compile_context>

<pallas_src>
import functools

import jax
import jax.numpy as jnp
from jax import lax
from jax.experimental import pallas as pl
from jax.experimental.pallas import tpu as pltpu


def _dw_conv_kernel(x_ref, w_ref, b_ref, o_ref, xpad_ref, *, H, W, K, RBLK):
    """Merged depthwise conv for one (batch, channel-block) grid cell.

    x_ref    : (H, W, Cblk)       unpadded NHWC input block
    w_ref    : (K, K, Cblk)       BN-folded, small-kernel-merged weights
    b_ref    : (1, 1, Cblk)       merged bias
    o_ref    : (H, W, Cblk)       output block
    xpad_ref : (H+2p, W+2p, Cblk) VMEM scratch for the zero-padded input
    """
    pad = K // 2
    C = o_ref.shape[-1]
    nrb = H // RBLK  # RBLK is chosen by the wrapper to divide H

    # ---- build the zero-padded input tile in VMEM (no wrapper jnp.pad) ----
    xpad_ref[...] = jnp.zeros_like(xpad_ref)

    def copy_row_block(rb, carry):
        h0 = pl.multiple_of(rb * RBLK, RBLK)
        xpad_ref[pl.ds(pad + h0, RBLK), pl.ds(pad, W), :] = (
            x_ref[pl.ds(h0, RBLK), :, :])
        return carry

    lax.fori_loop(0, nrb, copy_row_block, 0, unroll=(nrb <= 4))

    # Hoisted broadcast (JAX does not CSE broadcast_in_dim inside loops).
    bias = jnp.broadcast_to(b_ref[...].astype(jnp.float32), (RBLK, W, C))

    # ---- row-blocked 49-tap depthwise MAC loop ----
    def compute_row_block(rb, carry):
        h0 = pl.multiple_of(rb * RBLK, RBLK)
        acc = bias
        for kh in range(K):
            for kw in range(K):
                # Ref-side shifted window load: vld slot, not VALU.
                x_tap = xpad_ref[pl.ds(h0 + kh, RBLK), pl.ds(kw, W), :]
                acc = acc + x_tap.astype(jnp.float32) * w_ref[kh, kw].astype(jnp.float32)
        # Single store per row block (keeps the vst slot quiet, esp. v5e).
        o_ref[pl.ds(h0, RBLK), :, :] = acc.astype(o_ref.dtype)
        return carry

    lax.fori_loop(0, nrb, compute_row_block, 0, unroll=False)


def _pick_rblk(H):
    for cand in (8, 4, 2, 1):
        if H % cand == 0:
            return cand
    return 1


def _pick_cblk(C):
    # Lane-dense channel blocking: multiples of 128 when possible.
    if C % 256 == 0:
        return 256
    if C % 128 == 0:
        return 128
    # TODO(synk): channel counts > 128 that are not multiples of 128 would need
    # channel padding to stay lane-dense; handled as a single block here.
    return C


def reparam_large_kernel_conv_nhwc(x_nhwc, w, b, *, kernel_size, stride=1):
    """Merged depthwise large-kernel conv.  NHWC in / NHWC out.

    x_nhwc: (N, H, W, C); w: (K, K, C) BN-folded + small-kernel-merged; b: (C,)
    """
    assert stride == 1, "only stride=1 implemented"  # TODO(synk): stride > 1
    N, H, W, C = x_nhwc.shape
    K = kernel_size
    assert w.shape == (K, K, C) and b.shape == (C,)
    pad = K // 2
    Hp, Wp = H + 2 * pad, W + 2 * pad

    cblk = _pick_cblk(C)
    rblk = _pick_rblk(H)
    n_cblk = C // cblk

    kern = functools.partial(_dw_conv_kernel, H=H, W=W, K=K, RBLK=rblk)

    itemsize = jnp.dtype(x_nhwc.dtype).itemsize
    w_itemsize = jnp.dtype(w.dtype).itemsize
    # double-buffered in+out blocks + padded scratch + (tiny) weights/bias
    blk_bytes = (2 * 2 * H * W * cblk * itemsize
                 + Hp * Wp * cblk * itemsize
                 + 2 * (K * K + 1) * cblk * w_itemsize)
    vmem_limit = int(min(max(blk_bytes + (2 << 20), 16 * 2**20), 48 * 2**20))

    cost = pl.CostEstimate(
        flops=2 * N * H * W * C * K * K,
        transcendentals=0,
        bytes_accessed=2 * N * H * W * C * itemsize
        + (K * K + 1) * C * w_itemsize,
    )

    out = pl.pallas_call(
        kern,
        out_shape=jax.ShapeDtypeStruct((N, H, W, C), x_nhwc.dtype),
        grid=(N, n_cblk),
        in_specs=[
            pl.BlockSpec((None, H, W, cblk), lambda n, c: (n, 0, 0, c)),
            pl.BlockSpec((K, K, cblk), lambda n, c: (0, 0, c)),
            pl.BlockSpec((1, 1, cblk), lambda n, c: (0, 0, c)),
        ],
        out_specs=pl.BlockSpec((None, H, W, cblk), lambda n, c: (n, 0, 0, c)),
        scratch_shapes=[pltpu.VMEM((Hp, Wp, cblk), x_nhwc.dtype)],
        compiler_params=pltpu.CompilerParams(
            dimension_semantics=("parallel", "parallel"),
            vmem_limit_bytes=vmem_limit),
        cost_estimate=cost,
    )(x_nhwc, w, b.reshape(1, 1, C))
    return out


def reparam_large_kernel_conv(x_nchw, w, b, *, kernel_size, stride=1):
    """PyTorch-layout wrapper: NCHW in / NCHW out.

    Prefer calling `reparam_large_kernel_conv_nhwc` directly in an NHWC model
    to avoid the boundary transposes.
    """
    x = jnp.transpose(x_nchw, (0, 2, 3, 1))
    out = reparam_large_kernel_conv_nhwc(x, w, b, kernel_size=kernel_size,
                                         stride=stride)
    return jnp.transpose(out, (0, 3, 1, 2))


def fuse_bn_params(w_torch, gamma, beta, running_mean, running_var, eps=1e-5):
    """Fold BatchNorm2d (running-stat / eval semantics) into a depthwise conv.

    w_torch: PyTorch depthwise layout (C, 1, K, K)  ->  returns (K, K, C), (C,)
    """
    # TODO(synk): training-mode BatchNorm (batch statistics) not implemented.
    std = jnp.sqrt(running_var + eps)
    t = (gamma / std).reshape(-1, 1, 1, 1)
    w_fused = w_torch * t
    b_fused = beta - running_mean * gamma / std
    return jnp.transpose(w_fused[:, 0, :, :], (1, 2, 0)), b_fused


def merge_small_into_large(wl, bl, ws, bs, kernel_size, small_kernel):
    """RepLKNet get_equivalent_kernel_bias: pad the small kernel into the
    centre of the large one and sum biases (exact for stride-1 'same' convs)."""
    K, SK = kernel_size, small_kernel
    assert SK <= K, "re-param small kernel cannot be larger than the large one"
    assert (K - SK) % 2 == 0, "kernel-size difference must be even"
    d = (K - SK) // 2
    w_eq = wl.at[d:d + SK, d:d + SK, :].add(ws)
    b_eq = bl + bs
    return w_eq, b_eq


if __name__ == "__main__":
    # Module config: in=out=groups=4 (depthwise), kernel_size=7, stride=1,
    # small_kernel=3, small_kernel_merged=False.
    N, C, H, W = 2, 4, 16, 16
    K, SK = 7, 3

    key = jax.random.PRNGKey(0)
    ks = jax.random.split(key, 11)

    x = jax.random.normal(ks[0], (N, C, H, W), jnp.float32)

    # lkb_origin: Conv2d(C, C, 7, groups=C, bias=False) + BatchNorm2d(C)
    wl_t = jax.random.normal(ks[1], (C, 1, K, K), jnp.float32) * 0.1
    gl = 1.0 + 0.1 * jax.random.normal(ks[2], (C,), jnp.float32)
    betal = 0.1 * jax.random.normal(ks[3], (C,), jnp.float32)
    ml = 0.1 * jax.random.normal(ks[4], (C,), jnp.float32)
    vl = jnp.abs(jax.random.normal(ks[5], (C,), jnp.float32)) + 0.5

    # small_conv: Conv2d(C, C, 3, groups=C, bias=False) + BatchNorm2d(C)
    ws_t = jax.random.normal(ks[6], (C, 1, SK, SK), jnp.float32) * 0.1
    gs = 1.0 + 0.1 * jax.random.normal(ks[7], (C,), jnp.float32)
    betas = 0.1 * jax.random.normal(ks[8], (C,), jnp.float32)
    ms = 0.1 * jax.random.normal(ks[9], (C,), jnp.float32)
    vs = jnp.abs(jax.random.normal(ks[10], (C,), jnp.float32)) + 0.5

    # Fold BN into each branch, then merge the small branch into the large one.
    wl, bl = fuse_bn_params(wl_t, gl, betal, ml, vl)
    ws, bs = fuse_bn_params(ws_t, gs, betas, ms, vs)
    w_eq, b_eq = merge_small_into_large(wl, bl, ws, bs, K, SK)

    out = reparam_large_kernel_conv(x, w_eq, b_eq, kernel_size=K)
    out = jax.block_until_ready(out)

    # Pure-JAX reference: the original two-branch forward (also validates the
    # fold-time merge).
    x_nhwc = jnp.transpose(x, (0, 2, 3, 1))
    ref_l = lax.conv_general_dilated(
        x_nhwc, wl.reshape(K, K, 1, C), (1, 1), [(K // 2, K // 2)] * 2,
        dimension_numbers=("NHWC", "HWIO", "NHWC"), feature_group_count=C) + bl
    ref_s = lax.conv_general_dilated(
        x_nhwc, ws.reshape(SK, SK, 1, C), (1, 1), [(SK // 2, SK // 2)] * 2,
        dimension_numbers=("NHWC", "HWIO", "NHWC"), feature_group_count=C) + bs
    ref = jnp.transpose(ref_l + ref_s, (0, 3, 1, 2))

    assert out.shape == (N, C, H, W)
    assert jnp.allclose(out, ref, atol=1e-4, rtol=1e-4), "mismatch vs reference"
    print("KERNEL_OK")
</pallas_src>

<mosaic_0001>
module attributes {stable_mosaic.version = 11 : i64} {
  func.func @_dw_conv_kernel(%arg0: i32, %arg1: i32, %arg2: memref<1x16x16x4xf32, #tpu.memory_space<vmem>>, %arg3: memref<7x7x4xf32, #tpu.memory_space<vmem>>, %arg4: memref<1x1x4xf32, #tpu.memory_space<vmem>>, %arg5: memref<1x16x16x4xf32, #tpu.memory_space<vmem>>, %arg6: memref<22x22x4xf32, #tpu.memory_space<vmem>>) attributes {dimension_semantics = [#tpu.dimension_semantics<parallel>, #tpu.dimension_semantics<parallel>], iteration_bounds = array<i64: 2, 1>, scalar_prefetch = 0 : i64, scratch_operands = 1 : i64, tpu.core_type = #tpu.core_type<tc>, window_params = [{transform_indices = @transform_0, window_bounds = array<i64: 1, 16, 16, 4>}, {transform_indices = @transform_1, window_bounds = array<i64: 7, 7, 4>}, {transform_indices = @transform_2, window_bounds = array<i64: 1, 1, 4>}, {transform_indices = @transform_3, window_bounds = array<i64: 1, 16, 16, 4>}]} {
    %cst = arith.constant 0.000000e+00 : f32
    %0 = vector.broadcast %cst : f32 to vector<22x22x4xf32>
    %c0 = arith.constant 0 : index
    %c0_0 = arith.constant 0 : index
    %c0_1 = arith.constant 0 : index
    %1 = vector.load %arg6[%c0, %c0_0, %c0_1] : memref<22x22x4xf32, #tpu.memory_space<vmem>>, vector<22x22x4xf32>
    tpu.vector_store %arg6[%c0, %c0_0, %c0_1], %0 {strides = array<i32>} : memref<22x22x4xf32, #tpu.memory_space<vmem>>, vector<22x22x4xf32>,
    %c0_i32 = arith.constant 0 : i32
    %c8_i32 = arith.constant 8 : i32
    %2 = arith.muli %c0_i32, %c8_i32 : i32
    %3 = tpu.assume_multiple %2, 8 : i32
    %c0_2 = arith.constant 0 : index
    %4 = arith.index_cast %3 : i32 to index
    %c0_3 = arith.constant 0 : index
    %c0_4 = arith.constant 0 : index
    %5 = vector.load %arg2[%c0_2, %4, %c0_3, %c0_4] : memref<1x16x16x4xf32, #tpu.memory_space<vmem>>, vector<1x8x16x4xf32>
    %6 = vector.shape_cast %5 : vector<1x8x16x4xf32> to vector<8x16x4xf32>
    %c3_i32 = arith.constant 3 : i32
    %7 = arith.addi %c3_i32, %3 : i32
    %8 = arith.index_cast %7 : i32 to index
    %c3 = arith.constant 3 : index
    %c0_5 = arith.constant 0 : index
    %9 = vector.load %arg6[%8, %c3, %c0_5] : memref<22x22x4xf32, #tpu.memory_space<vmem>>, vector<8x16x4xf32>
    tpu.vector_store %arg6[%8, %c3, %c0_5], %6 {strides = array<i32>} : memref<22x22x4xf32, #tpu.memory_space<vmem>>, vector<8x16x4xf32>,
    %c1_i32 = arith.constant 1 : i32
    %c8_i32_6 = arith.constant 8 : i32
    %10 = arith.muli %c1_i32, %c8_i32_6 : i32
    %11 = tpu.assume_multiple %10, 8 : i32
    %c0_7 = arith.constant 0 : index
    %12 = arith.index_cast %11 : i32 to index
    %c0_8 = arith.constant 0 : index
    %c0_9 = arith.constant 0 : index
    %13 = vector.load %arg2[%c0_7, %12, %c0_8, %c0_9] : memref<1x16x16x4xf32, #tpu.memory_space<vmem>>, vector<1x8x16x4xf32>
    %14 = vector.shape_cast %13 : vector<1x8x16x4xf32> to vector<8x16x4xf32>
    %c3_i32_10 = arith.constant 3 : i32
    %15 = arith.addi %c3_i32_10, %11 : i32
    %16 = arith.index_cast %15 : i32 to index
    %c3_11 = arith.constant 3 : index
    %c0_12 = arith.constant 0 : index
    %17 = vector.load %arg6[%16, %c3_11, %c0_12] : memref<22x22x4xf32, #tpu.memory_space<vmem>>, vector<8x16x4xf32>
    tpu.vector_store %arg6[%16, %c3_11, %c0_12], %14 {strides = array<i32>} : memref<22x22x4xf32, #tpu.memory_space<vmem>>, vector<8x16x4xf32>,
    %c2_i32 = arith.constant 2 : i32
    %c0_13 = arith.constant 0 : index
    %c0_14 = arith.constant 0 : index
    %c0_15 = arith.constant 0 : index
    %18 = vector.load %arg4[%c0_13, %c0_14, %c0_15] : memref<1x1x4xf32, #tpu.memory_space<vmem>>, vector<1x1x4xf32>
    %19 = vector.shape_cast %18 : vector<1x1x4xf32> to vector<1x1x4xf32>
    %20 = vector.broadcast %19 : vector<1x1x4xf32> to vector<8x16x4xf32>
    %c0_i32_16 = arith.constant 0 : i32
    %c2_i32_17 = arith.constant 2 : i32
    %21 = arith.addi %c0_i32_16, %c2_i32_17 : i32
    %c1_i32_18 = arith.constant 1 : i32
    scf.for %arg7 = %c0_i32_16 to %21 step %c1_i32_18  : i32 {
      %c8_i32_20 = arith.constant 8 : i32
      %22 = arith.muli %arg7, %c8_i32_20 : i32
      %23 = tpu.assume_multiple %22, 8 : i32
      %c0_i32_21 = arith.constant 0 : i32
      %24 = arith.addi %23, %c0_i32_21 : i32
      %25 = arith.index_cast %24 : i32 to index
      %c0_22 = arith.constant 0 : index
      %c0_23 = arith.constant 0 : index
      %26 = vector.load %arg6[%25, %c0_22, %c0_23] : memref<22x22x4xf32, #tpu.memory_space<vmem>>, vector<8x16x4xf32>
      %c0_24 = arith.constant 0 : index
      %c0_25 = arith.constant 0 : index
      %c0_26 = arith.constant 0 : index
      %27 = vector.load %arg3[%c0_24, %c0_25, %c0_26] : memref<7x7x4xf32, #tpu.memory_space<vmem>>, vector<1x1x4xf32>
      %28 = vector.shape_cast %27 : vector<1x1x4xf32> to vector<4xf32>
      %29 = vector.shape_cast %28 : vector<4xf32> to vector<1x1x4xf32>
      %30 = vector.broadcast %29 : vector<1x1x4xf32> to vector<8x16x4xf32>
      %31 = arith.mulf %26, %30 : vector<8x16x4xf32>
      %32 = arith.addf %20, %31 : vector<8x16x4xf32>
      %c0_i32_27 = arith.constant 0 : i32
      %33 = arith.addi %23, %c0_i32_27 : i32
      %34 = arith.index_cast %33 : i32 to index
      %c1 = arith.constant 1 : index
      %c0_28 = arith.constant 0 : index
      %35 = vector.load %arg6[%34, %c1, %c0_28] : memref<22x22x4xf32, #tpu.memory_space<vmem>>, vector<8x16x4xf32>
      %c0_29 = arith.constant 0 : index
      %c1_30 = arith.constant 1 : index
      %c0_31 = arith.constant 0 : index
      %36 = vector.load %arg3[%c0_29, %c1_30, %c0_31] : memref<7x7x4xf32, #tpu.memory_space<vmem>>, vector<1x1x4xf32>
      %37 = vector.shape_cast %36 : vector<1x1x4xf32> to vector<4xf32>
      %38 = vector.shape_cast %37 : vector<4xf32> to vector<1x1x4xf32>
      %39 = vector.broadcast %38 : vector<1x1x4xf32> to vector<8x16x4xf32>
      %40 = arith.mulf %35, %39 : vector<8x16x4xf32>
      %41 = arith.addf %32, %40 : vector<8x16x4xf32>
      %c0_i32_32 = arith.constant 0 : i32
      %42 = arith.addi %23, %c0_i32_32 : i32
      %43 = arith.index_cast %42 : i32 to index
      %c2 = arith.constant 2 : index
      %c0_33 = arith.constant 0 : index
      %44 = vector.load %arg6[%43, %c2, %c0_33] : memref<22x22x4xf32, #tpu.memory_space<vmem>>, vector<8x16x4xf32>
      %c0_34 = arith.constant 0 : index
      %c2_35 = arith.constant 2 : index
      %c0_36 = arith.constant 0 : index
      %45 = vector.load %arg3[%c0_34, %c2_35, %c0_36] : memref<7x7x4xf32, #tpu.memory_space<vmem>>, vector<1x1x4xf32>
      %46 = vector.shape_cast %45 : vector<1x1x4xf32> to vector<4xf32>
      %47 = vector.shape_cast %46 : vector<4xf32> to vector<1x1x4xf32>
      %48 = vector.broadcast %47 : vector<1x1x4xf32> to vector<8x16x4xf32>
      %49 = arith.mulf %44, %48 : vector<8x16x4xf32>
      %50 = arith.addf %41, %49 : vector<8x16x4xf32>
      %c0_i32_37 = arith.constant 0 : i32
      %51 = arith.addi %23, %c0_i32_37 : i32
      %52 = arith.index_cast %51 : i32 to index
      %c3_38 = arith.constant 3 : index
      %c0_39 = arith.constant 0 : index
      %53 = vector.load %arg6[%52, %c3_38, %c0_39] : memref<22x22x4xf32, #tpu.memory_space<vmem>>, vector<8x16x4xf32>
      %c0_40 = arith.constant 0 : index
      %c3_41 = arith.constant 3 : index
      %c0_42 = arith.constant 0 : index
      %54 = vector.load %arg3[%c0_40, %c3_41, %c0_42] : memref<7x7x4xf32, #tpu.memory_space<vmem>>, vector<1x1x4xf32>
      %55 = vector.shape_cast %54 : vector<1x1x4xf32> to vector<4xf32>
      %56 = vector.shape_cast %55 : vector<4xf32> to vector<1x1x4xf32>
      %57 = vector.broadcast %56 : vector<1x1x4xf32> to vector<8x16x4xf32>
      %58 = arith.mulf %53, %57 : vector<8x16x4xf32>
      %59 = arith.addf %50, %58 : vector<8x16x4xf32>
      %c0_i32_43 = arith.constant 0 : i32
      %60 = arith.addi %23, %c0_i32_43 : i32
      %61 = arith.index_cast %60 : i32 to index
      %c4 = arith.constant 4 : index
      %c0_44 = arith.constant 0 : index
      %62 = vector.load %arg6[%61, %c4, %c0_44] : memref<22x22x4xf32, #tpu.memory_space<vmem>>, vector<8x16x4xf32>
      %c0_45 = arith.constant 0 : index
      %c4_46 = arith.constant 4 : index
      %c0_47 = arith.constant 0 : index
      %63 = vector.load %arg3[%c0_45, %c4_46, %c0_47] : memref<7x7x4xf32, #tpu.memory_space<vmem>>, vector<1x1x4xf32>
      %64 = vector.shape_cast %63 : vector<1x1x4xf32> to vector<4xf32>
      %65 = vector.shape_cast %64 : vector<4xf32> to vector<1x1x4xf32>
      %66 = vector.broadcast %65 : vector<1x1x4xf32> to vector<8x16x4xf32>
      %67 = arith.mulf %62, %66 : vector<8x16x4xf32>
      %68 = arith.addf %59, %67 : vector<8x16x4xf32>
      %c0_i32_48 = arith.constant 0 : i32
      %69 = arith.addi %23, %c0_i32_48 : i32
      %70 = arith.index_cast %69 : i32 to index
      %c5 = arith.constant 5 : index
      %c0_49 = arith.constant 0 : index
      %71 = vector.load %arg6[%70, %c5, %c0_49] : memref<22x22x4xf32, #tpu.memory_space<vmem>>, vector<8x16x4xf32>
      %c0_50 = arith.constant 0 : index
      %c5_51 = arith.constant 5 : index
      %c0_52 = arith.constant 0 : index
      %72 = vector.load %arg3[%c0_50, %c5_51, %c0_52] : memref<7x7x4xf32, #tpu.memory_space<vmem>>, vector<1x1x4xf32>
      %73 = vector.shape_cast %72 : vector<1x1x4xf32> to vector<4xf32>
      %74 = vector.shape_cast %73 : vector<4xf32> to vector<1x1x4xf32>
      %75 = vector.broadcast %74 : vector<1x1x4xf32> to vector<8x16x4xf32>
      %76 = arith.mulf %71, %75 : vector<8x16x4xf32>
      %77 = arith.addf %68, %76 : vector<8x16x4xf32>
      %c0_i32_53 = arith.constant 0 : i32
      %78 = arith.addi %23, %c0_i32_53 : i32
      %79 = arith.index_cast %78 : i32 to index
      %c6 = arith.constant 6 : index
      %c0_54 = arith.constant 0 : index
      %80 = vector.load %arg6[%79, %c6, %c0_54] : memref<22x22x4xf32, #tpu.memory_space<vmem>>, vector<8x16x4xf32>
      %c0_55 = arith.constant 0 : index
      %c6_56 = arith.constant 6 : index
      %c0_57 = arith.constant 0 : index
      %81 = vector.load %arg3[%c0_55, %c6_56, %c0_57] : memref<7x7x4xf32, #tpu.memory_space<vmem>>, vector<1x1x4xf32>
      %82 = vector.shape_cast %81 : vector<1x1x4xf32> to vector<4xf32>
      %83 = vector.shape_cast %82 : vector<4xf32> to vector<1x1x4xf32>
      %84 = vector.broadcast %83 : vector<1x1x4xf32> to vector<8x16x4xf32>
      %85 = arith.mulf %80, %84 : vector<8x16x4xf32>
      %86 = arith.addf %77, %85 : vector<8x16x4xf32>
      %c1_i32_58 = arith.constant 1 : i32
      %87 = arith.addi %23, %c1_i32_58 : i32
      %88 = arith.index_cast %87 : i32 to index
      %c0_59 = arith.constant 0 : index
      %c0_60 = arith.constant 0 : index
      %89 = vector.load %arg6[%88, %c0_59, %c0_60] : memref<22x22x4xf32, #tpu.memory_space<vmem>>, vector<8x16x4xf32>
      %c1_61 = arith.constant 1 : index
      %c0_62 = arith.constant 0 : index
      %c0_63 = arith.constant 0 : index
      %90 = vector.load %arg3[%c1_61, %c0_62, %c0_63] : memref<7x7x4xf32, #tpu.memory_space<vmem>>, vector<1x1x4xf32>
      %91 = vector.shape_cast %90 : vector<1x1x4xf32> to vector<4xf32>
      %92 = vector.shape_cast %91 : vector<4xf32> to vector<1x1x4xf32>
      %93 = vector.broadcast %92 : vector<1x1x4xf32> to vector<8x16x4xf32>
      %94 = arith.mulf %89, %93 : vector<8x16x4xf32>
      %95 = arith.addf %86, %94 : vector<8x16x4xf32>
      %c1_i32_64 = arith.constant 1 : i32
      %96 = arith.addi %23, %c1_i32_64 : i32
      %97 = arith.index_cast %96 : i32 to index
      %c1_65 = arith.constant 1 : index
      %c0_66 = arith.constant 0 : index
      %98 = vector.load %arg6[%97, %c1_65, %c0_66] : memref<22x22x4xf32, #tpu.memory_space<vmem>>, vector<8x16x4xf32>
      %c1_67 = arith.constant 1 : index
      %c1_68 = arith.constant 1 : index
      %c0_69 = arith.constant 0 : index
      %99 = vector.load %arg3[%c1_67, %c1_68, %c0_69] : memref<7x7x4xf32, #tpu.memory_space<vmem>>, vector<1x1x4xf32>
      %100 = vector.shape_cast %99 : vector<1x1x4xf32> to vector<4xf32>
      %101 = vector.shape_cast %100 : vector<4xf32> to vector<1x1x4xf32>
      %102 = vector.broadcast %101 : vector<1x1x4xf32> to vector<8x16x4xf32>
      %103 = arith.mulf %98, %102 : vector<8x16x4xf32>
      %104 = arith.addf %95, %103 : vector<8x16x4xf32>
      %c1_i32_70 = arith.constant 1 : i32
      %105 = arith.addi %23, %c1_i32_70 : i32
      %106 = arith.index_cast %105 : i32 to index
      %c2_71 = arith.constant 2 : index
      %c0_72 = arith.constant 0 : index
      %107 = vector.load %arg6[%106, %c2_71, %c0_72] : memref<22x22x4xf32, #tpu.memory_space<vmem>>, vector<8x16x4xf32>
      %c1_73 = arith.constant 1 : index
      %c2_74 = arith.constant 2 : index
      %c0_75 = arith.constant 0 : index
      %108 = vector.load %arg3[%c1_73, %c2_74, %c0_75] : memref<7x7x4xf32, #tpu.memory_space<vmem>>, vector<1x1x4xf32>
      %109 = vector.shape_cast %108 : vector<1x1x4xf32> to vector<4xf32>
      %110 = vector.shape_cast %109 : vector<4xf32> to vector<1x1x4xf32>
      %111 = vector.broadcast %110 : vector<1x1x4xf32> to vector<8x16x4xf32>
      %112 = arith.mulf %107, %111 : vector<8x16x4xf32>
      %113 = arith.addf %104, %112 : vector<8x16x4xf32>
      %c1_i32_76 = arith.constant 1 : i32
      %114 = arith.addi %23, %c1_i32_76 : i32
      %115 = arith.index_cast %114 : i32 to index
      %c3_77 = arith.constant 3 : index
      %c0_78 = arith.constant 0 : index
      %116 = vector.load %arg6[%115, %c3_77, %c0_78] : memref<22x22x4xf32, #tpu.memory_space<vmem>>, vector<8x16x4xf32>
      %c1_79 = arith.constant 1 : index
      %c3_80 = arith.constant 3 : index
      %c0_81 = arith.constant 0 : index
      %117 = vector.load %arg3[%c1_79, %c3_80, %c0_81] : memref<7x7x4xf32, #tpu.memory_space<vmem>>, vector<1x1x4xf32>
      %118 = vector.shape_cast %117 : vector<1x1x4xf32> to vector<4xf32>
      %119 = vector.shape_cast %118 : vector<4xf32> to vector<1x1x4xf32>
      %120 = vector.broadcast %119 : vector<1x1x4xf32> to vector<8x16x4xf32>
      %121 = arith.mulf %116, %120 : vector<8x16x4xf32>
      %122 = arith.addf %113, %121 : vector<8x16x4xf32>
      %c1_i32_82 = arith.constant 1 : i32
      %123 = arith.addi %23, %c1_i32_82 : i32
      %124 = arith.index_cast %123 : i32 to index
      %c4_83 = arith.constant 4 : index
      %c0_84 = arith.constant 0 : index
      %125 = vector.load %arg6[%124, %c4_83, %c0_84] : memref<22x22x4xf32, #tpu.memory_space<vmem>>, vector<8x16x4xf32>
      %c1_85 = arith.constant 1 : index
      %c4_86 = arith.constant 4 : index
      %c0_87 = arith.constant 0 : index
      %126 = vector.load %arg3[%c1_85, %c4_86, %c0_87] : memref<7x7x4xf32, #tpu.memory_space<vmem>>, vector<1x1x4xf32>
      %127 = vector.shape_cast %126 : vector<1x1x4xf32> to vector<4xf32>
      %128 = vector.shape_cast %127 : vector<4xf32> to vector<1x1x4xf32>
      %129 = vector.broadcast %128 : vector<1x1x4xf32> to vector<8x16x4xf32>
      %130 = arith.mulf %125, %129 : vector<8x16x4xf32>
      %131 = arith.addf %122, %130 : vector<8x16x4xf32>
      %c1_i32_88 = arith.constant 1 : i32
      %132 = arith.addi %23, %c1_i32_88 : i32
      %133 = arith.index_cast %132 : i32 to index
      %c5_89 = arith.constant 5 : index
      %c0_90 = arith.constant 0 : index
      %134 = vector.load %arg6[%133, %c5_89, %c0_90] : memref<22x22x4xf32, #tpu.memory_space<vmem>>, vector<8x16x4xf32>
      %c1_91 = arith.constant 1 : index
      %c5_92 = arith.constant 5 : index
      %c0_93 = arith.constant 0 : index
      %135 = vector.load %arg3[%c1_91, %c5_92, %c0_93] : memref<7x7x4xf32, #tpu.memory_space<vmem>>, vector<1x1x4xf32>
      %136 = vector.shape_cast %135 : vector<1x1x4xf32> to vector<4xf32>
      %137 = vector.shape_cast %136 : vector<4xf32> to vector<1x1x4xf32>
      %138 = vector.broadcast %137 : vector<1x1x4xf32> to vector<8x16x4xf32>
      %139 = arith.mulf %134, %138 : vector<8x16x4xf32>
      %140 = arith.addf %131, %139 : vector<8x16x4xf32>
      %c1_i32_94 = arith.constant 1 : i32
      %141 = arith.addi %23, %c1_i32_94 : i32
      %142 = arith.index_cast %141 : i32 to index
      %c6_95 = arith.constant 6 : index
      %c0_96 = arith.constant 0 : index
      %143 = vector.load %arg6[%142, %c6_95, %c0_96] : memref<22x22x4xf32, #tpu.memory_space<vmem>>, vector<8x16x4xf32>
      %c1_97 = arith.constant 1 : index
      %c6_98 = arith.constant 6 : index
      %c0_99 = arith.constant 0 : index
      %144 = vector.load %arg3[%c1_97, %c6_98, %c0_99] : memref<7x7x4xf32, #tpu.memory_space<vmem>>, vector<1x1x4xf32>
      %145 = vector.shape_cast %144 : vector<1x1x4xf32> to vector<4xf32>
      %146 = vector.shape_cast %145 : vector<4xf32> to vector<1x1x4xf32>
      %147 = vector.broadcast %146 : vector<1x1x4xf32> to vector<8x16x4xf32>
      %148 = arith.mulf %143, %147 : vector<8x16x4xf32>
      %149 = arith.addf %140, %148 : vector<8x16x4xf32>
      %c2_i32_100 = arith.constant 2 : i32
      %150 = arith.addi %23, %c2_i32_100 : i32
      %151 = arith.index_cast %150 : i32 to index
      %c0_101 = arith.constant 0 : index
      %c0_102 = arith.constant 0 : index
      %152 = vector.load %arg6[%151, %c0_101, %c0_102] : memref<22x22x4xf32, #tpu.memory_space<vmem>>, vector<8x16x4xf32>
      %c2_103 = arith.constant 2 : index
      %c0_104 = arith.constant 0 : index
      %c0_105 = arith.constant 0 : index
      %153 = vector.load %arg3[%c2_103, %c0_104, %c0_105] : memref<7x7x4xf32, #tpu.memory_space<vmem>>, vector<1x1x4xf32>
      %154 = vector.shape_cast %153 : vector<1x1x4xf32> to vector<4xf32>
      %155 = vector.shape_cast %154 : vector<4xf32> to vector<1x1x4xf32>
      %156 = vector.broadcast %155 : vector<1x1x4xf32> to vector<8x16x4xf32>
      %157 = arith.mulf %152, %156 : vector<8x16x4xf32>
      %158 = arith.addf %149, %157 : vector<8x16x4xf32>
      %c2_i32_106 = arith.constant 2 : i32
      %159 = arith.addi %23, %c2_i32_106 : i32
      %160 = arith.index_cast %159 : i32 to index
      %c1_107 = arith.constant 1 : index
      %c0_108 = arith.constant 0 : index
      %161 = vector.load %arg6[%160, %c1_107, %c0_108] : memref<22x22x4xf32, #tpu.memory_space<vmem>>, vector<8x16x4xf32>
      %c2_109 = arith.constant 2 : index
      %c1_110 = arith.constant 1 : index
      %c0_111 = arith.constant 0 : index
      %162 = vector.load %arg3[%c2_109, %c1_110, %c0_111] : memref<7x7x4xf32, #tpu.memory_space<vmem>>, vector<1x1x4xf32>
      %163 = vector.shape_cast %162 : vector<1x1x4xf32> to vector<4xf32>
      %164 = vector.shape_cast %163 : vector<4xf32> to vector<1x1x4xf32>
      %165 = vector.broadcast %164 : vector<1x1x4xf32> to vector<8x16x4xf32>
      %166 = arith.mulf %161, %165 : vector<8x16x4xf32>
      %167 = arith.addf %158, %166 : vector<8x16x4xf32>
      %c2_i32_112 = arith.constant 2 : i32
      %168 = arith.addi %23, %c2_i32_112 : i32
      %169 = arith.index_cast %168 : i32 to index
      %c2_113 = arith.constant 2 : index
      %c0_114 = arith.constant 0 : index
      %170 = vector.load %arg6[%169, %c2_113, %c0_114] : memref<22x22x4xf32, #tpu.memory_space<vmem>>, vector<8x16x4xf32>
      %c2_115 = arith.constant 2 : index
      %c2_116 = arith.constant 2 : index
      %c0_117 = arith.constant 0 : index
      %171 = vector.load %arg3[%c2_115, %c2_116, %c0_117] : memref<7x7x4xf32, #tpu.memory_space<vmem>>, vector<1x1x4xf32>
      %172 = vector.shape_cast %171 : vector<1x1x4xf32> to vector<4xf32>
      %173 = vector.shape_cast %172 : vector<4xf32> to vector<1x1x4xf32>
      %174 = vector.broadcast %173 : vector<1x1x4xf32> to vector<8x16x4xf32>
      %175 = arith.mulf %170, %174 : vector<8x16x4xf32>
      %176 = arith.addf %167, %175 : vector<8x16x4xf32>
      %c2_i32_118 = arith.constant 2 : i32
      %177 = arith.addi %23, %c2_i32_118 : i32
      %178 = arith.index_cast %177 : i32 to index
      %c3_119 = arith.constant 3 : index
      %c0_120 = arith.constant 0 : index
      %179 = vector.load %arg6[%178, %c3_119, %c0_120] : memref<22x22x4xf32, #tpu.memory_space<vmem>>, vector<8x16x4xf32>
      %c2_121 = arith.constant 2 : index
      %c3_122 = arith.constant 3 : index
      %c0_123 = arith.constant 0 : index
      %180 = vector.load %arg3[%c2_121, %c3_122, %c0_123] : memref<7x7x4xf32, #tpu.memory_space<vmem>>, vector<1x1x4xf32>
      %181 = vector.shape_cast %180 : vector<1x1x4xf32> to vector<4xf32>
      %182 = vector.shape_cast %181 : vector<4xf32> to vector<1x1x4xf32>
      %183 = vector.broadcast %182 : vector<1x1x4xf32> to vector<8x16x4xf32>
      %184 = arith.mulf %179, %183 : vector<8x16x4xf32>
      %185 = arith.addf %176, %184 : vector<8x16x4xf32>
      %c2_i32_124 = arith.constant 2 : i32
      %186 = arith.addi %23, %c2_i32_124 : i32
      %187 = arith.index_cast %186 : i32 to index
      %c4_125 = arith.constant 4 : index
      %c0_126 = arith.constant 0 : index
      %188 = vector.load %arg6[%187, %c4_125, %c0_126] : memref<22x22x4xf32, #tpu.memory_space<vmem>>, vector<8x16x4xf32>
      %c2_127 = arith.constant 2 : index
      %c4_128 = arith.constant 4 : index
      %c0_129 = arith.constant 0 : index
      %189 = vector.load %arg3[%c2_127, %c4_128, %c0_129] : memref<7x7x4xf32, #tpu.memory_space<vmem>>, vector<1x1x4xf32>
      %190 = vector.shape_cast %189 : vector<1x1x4xf32> to vector<4xf32>
      %191 = vector.shape_cast %190 : vector<4xf32> to vector<1x1x4xf32>
      %192 = vector.broadcast %191 : vector<1x1x4xf32> to vector<8x16x4xf32>
      %193 = arith.mulf %188, %192 : vector<8x16x4xf32>
      %194 = arith.addf %185, %193 : vector<8x16x4xf32>
      %c2_i32_130 = arith.constant 2 : i32
      %195 = arith.addi %23, %c2_i32_130 : i32
      %196 = arith.index_cast %195 : i32 to index
      %c5_131 = arith.constant 5 : index
      %c0_132 = arith.constant 0 : index
      %197 = vector.load %arg6[%196, %c5_131, %c0_132] : memref<22x22x4xf32, #tpu.memory_space<vmem>>, vector<8x16x4xf32>
      %c2_133 = arith.constant 2 : index
      %c5_134 = arith.constant 5 : index
      %c0_135 = arith.constant 0 : index
      %198 = vector.load %arg3[%c2_133, %c5_134, %c0_135] : memref<7x7x4xf32, #tpu.memory_space<vmem>>, vector<1x1x4xf32>
      %199 = vector.shape_cast %198 : vector<1x1x4xf32> to vector<4xf32>
      %200 = vector.shape_cast %199 : vector<4xf32> to vector<1x1x4xf32>
      %201 = vector.broadcast %200 : vector<1x1x4xf32> to vector<8x16x4xf32>
      %202 = arith.mulf %197, %201 : vector<8x16x4xf32>
      %203 = arith.addf %194, %202 : vector<8x16x4xf32>
      %c2_i32_136 = arith.constant 2 : i32
      %204 = arith.addi %23, %c2_i32_136 : i32
      %205 = arith.index_cast %204 : i32 to index
      %c6_137 = arith.constant 6 : index
      %c0_138 = arith.constant 0 : index
      %206 = vector.load %arg6[%205, %c6_137, %c0_138] : memref<22x22x4xf32, #tpu.memory_space<vmem>>, vector<8x16x4xf32>
      %c2_139 = arith.constant 2 : index
      %c6_140 = arith.constant 6 : index
      %c0_141 = arith.constant 0 : index
      %207 = vector.load %arg3[%c2_139, %c6_140, %c0_141] : memref<7x7x4xf32, #tpu.memory_space<vmem>>, vector<1x1x4xf32>
      %208 = vector.shape_cast %207 : vector<1x1x4xf32> to vector<4xf32>
      %209 = vector.shape_cast %208 : vector<4xf32> to vector<1x1x4xf32>
      %210 = vector.broadcast %209 : vector<1x1x4xf32> to vector<8x16x4xf32>
      %211 = arith.mulf %206, %210 : vector<8x16x4xf32>
      %212 = arith.addf %203, %211 : vector<8x16x4xf32>
      %c3_i32_142 = arith.constant 3 : i32
      %213 = arith.addi %23, %c3_i32_142 : i32
      %214 = arith.index_cast %213 : i32 to index
      %c0_143 = arith.constant 0 : index
      %c0_144 = arith.constant 0 : index
      %215 = vector.load %arg6[%214, %c0_143, %c0_144] : memref<22x22x4xf32, #tpu.memory_space<vmem>>, vector<8x16x4xf32>
      %c3_145 = arith.constant 3 : index
      %c0_146 = arith.constant 0 : index
      %c0_147 = arith.constant 0 : index
      %216 = vector.load %arg3[%c3_145, %c0_146, %c0_147] : memref<7x7x4xf32, #tpu.memory_space<vmem>>, vector<1x1x4xf32>
      %217 = vector.shape_cast %216 : vector<1x1x4xf32> to vector<4xf32>
      %218 = vector.shape_cast %217 : vector<4xf32> to vector<1x1x4xf32>
      %219 = vector.broadcast %218 : vector<1x1x4xf32> to vector<8x16x4xf32>
      %220 = arith.mulf %215, %219 : vector<8x16x4xf32>
      %221 = arith.addf %212, %220 : vector<8x16x4xf32>
      %c3_i32_148 = arith.constant 3 : i32
      %222 = arith.addi %23, %c3_i32_148 : i32
      %223 = arith.index_cast %222 : i32 to index
      %c1_149 = arith.constant 1 : index
      %c0_150 = arith.constant 0 : index
      %224 = vector.load %arg6[%223, %c1_149, %c0_150] : memref<22x22x4xf32, #tpu.memory_space<vmem>>, vector<8x16x4xf32>
      %c3_151 = arith.constant 3 : index
      %c1_152 = arith.constant 1 : index
      %c0_153 = arith.constant 0 : index
      %225 = vector.load %arg3[%c3_151, %c1_152, %c0_153] : memref<7x7x4xf32, #tpu.memory_space<vmem>>, vector<1x1x4xf32>
      %226 = vector.shape_cast %225 : vector<1x1x4xf32> to vector<4xf32>
      %227 = vector.shape_cast %226 : vector<4xf32> to vector<1x1x4xf32>
      %228 = vector.broadcast %227 : vector<1x1x4xf32> to vector<8x16x4xf32>
      %229 = arith.mulf %224, %228 : vector<8x16x4xf32>
      %230 = arith.addf %221, %229 : vector<8x16x4xf32>
      %c3_i32_154 = arith.constant 3 : i32
      %231 = arith.addi %23, %c3_i32_154 : i32
      %232 = arith.index_cast %231 : i32 to index
      %c2_155 = arith.constant 2 : index
      %c0_156 = arith.constant 0 : index
      %233 = vector.load %arg6[%232, %c2_155, %c0_156] : memref<22x22x4xf32, #tpu.memory_space<vmem>>, vector<8x16x4xf32>
      %c3_157 = arith.constant 3 : index
      %c2_158 = arith.constant 2 : index
      %c0_159 = arith.constant 0 : index
      %234 = vector.load %arg3[%c3_157, %c2_158, %c0_159] : memref<7x7x4xf32, #tpu.memory_space<vmem>>, vector<1x1x4xf32>
      %235 = vector.shape_cast %234 : vector<1x1x4xf32> to vector<4xf32>
      %236 = vector.shape_cast %235 : vector<4xf32> to vector<1x1x4xf32>
      %237 = vector.broadcast %236 : vector<1x1x4xf32> to vector<8x16x4xf32>
      %238 = arith.mulf %233, %237 : vector<8x16x4xf32>
      %239 = arith.addf %230, %238 : vector<8x16x4xf32>
      %c3_i32_160 = arith.constant 3 : i32
      %240 = arith.addi %23, %c3_i32_160 : i32
      %241 = arith.index_cast %240 : i32 to index
      %c3_161 = arith.constant 3 : index
      %c0_162 = arith.constant 0 : index
      %242 = vector.load %arg6[%241, %c3_161, %c0_162] : memref<22x22x4xf32, #tpu.memory_space<vmem>>, vector<8x16x4xf32>
      %c3_163 = arith.constant 3 : index
      %c3_164 = arith.constant 3 : index
      %c0_165 = arith.constant 0 : index
      %243 = vector.load %arg3[%c3_163, %c3_164, %c0_165] : memref<7x7x4xf32, #tpu.memory_space<vmem>>, vector<1x1x4xf32>
      %244 = vector.shape_cast %243 : vector<1x1x4xf32> to vector<4xf32>
      %245 = vector.shape_cast %244 : vector<4xf32> to vector<1x1x4xf32>
      %246 = vector.broadcast %245 : vector<1x1x4xf32> to vector<8x16x4xf32>
      %247 = arith.mulf %242, %246 : vector<8x16x4xf32>
      %248 = arith.addf %239, %247 : vector<8x16x4xf32>
      %c3_i32_166 = arith.constant 3 : i32
      %249 = arith.addi %23, %c3_i32_166 : i32
      %250 = arith.index_cast %249 : i32 to index
      %c4_167 = arith.constant 4 : index
      %c0_168 = arith.constant 0 : index
      %251 = vector.load %arg6[%250, %c4_167, %c0_168] : memref<22x22x4xf32, #tpu.memory_space<vmem>>, vector<8x16x4xf32>
      %c3_169 = arith.constant 3 : index
      %c4_170 = arith.constant 4 : index
      %c0_171 = arith.constant 0 : index
      %252 = vector.load %arg3[%c3_169, %c4_170, %c0_171] : memref<7x7x4xf32, #tpu.memory_space<vmem>>, vector<1x1x4xf32>
      %253 = vector.shape_cast %252 : vector<1x1x4xf32> to vector<4xf32>
      %254 = vector.shape_cast %253 : vector<4xf32> to vector<1x1x4xf32>
      %255 = vector.broadcast %254 : vector<1x1x4xf32> to vector<8x16x4xf32>
      %256 = arith.mulf %251, %255 : vector<8x16x4xf32>
      %257 = arith.addf %248, %256 : vector<8x16x4xf32>
      %c3_i32_172 = arith.constant 3 : i32
      %258 = arith.addi %23, %c3_i32_172 : i32
      %259 = arith.index_cast %258 : i32 to index
      %c5_173 = arith.constant 5 : index
      %c0_174 = arith.constant 0 : index
      %260 = vector.load %arg6[%259, %c5_173, %c0_174] : memref<22x22x4xf32, #tpu.memory_space<vmem>>, vector<8x16x4xf32>
      %c3_175 = arith.constant 3 : index
      %c5_176 = arith.constant 5 : index
      %c0_177 = arith.constant 0 : index
      %261 = vector.load %arg3[%c3_175, %c5_176, %c0_177] : memref<7x7x4xf32, #tpu.memory_space<vmem>>, vector<1x1x4xf32>
      %262 = vector.shape_cast %261 : vector<1x1x4xf32> to vector<4xf32>
      %263 = vector.shape_cast %262 : vector<4xf32> to vector<1x1x4xf32>
      %264 = vector.broadcast %263 : vector<1x1x4xf32> to vector<8x16x4xf32>
      %265 = arith.mulf %260, %264 : vector<8x16x4xf32>
      %266 = arith.addf %257, %265 : vector<8x16x4xf32>
      %c3_i32_178 = arith.constant 3 : i32
      %267 = arith.addi %23, %c3_i32_178 : i32
      %268 = arith.index_cast %267 : i32 to index
      %c6_179 = arith.constant 6 : index
      %c0_180 = arith.constant 0 : index
      %269 = vector.load %arg6[%268, %c6_179, %c0_180] : memref<22x22x4xf32, #tpu.memory_space<vmem>>, vector<8x16x4xf32>
      %c3_181 = arith.constant 3 : index
      %c6_182 = arith.constant 6 : index
      %c0_183 = arith.constant 0 : index
      %270 = vector.load %arg3[%c3_181, %c6_182, %c0_183] : memref<7x7x4xf32, #tpu.memory_space<vmem>>, vector<1x1x4xf32>
      %271 = vector.shape_cast %270 : vector<1x1x4xf32> to vector<4xf32>
      %272 = vector.shape_cast %271 : vector<4xf32> to vector<1x1x4xf32>
      %273 = vector.broadcast %272 : vector<1x1x4xf32> to vector<8x16x4xf32>
      %274 = arith.mulf %269, %273 : vector<8x16x4xf32>
      %275 = arith.addf %266, %274 : vector<8x16x4xf32>
      %c4_i32 = arith.constant 4 : i32
      %276 = arith.addi %23, %c4_i32 : i32
      %277 = arith.index_cast %276 : i32 to index
      %c0_184 = arith.constant 0 : index
      %c0_185 = arith.constant 0 : index
      %278 = vector.load %arg6[%277, %c0_184, %c0_185] : memref<22x22x4xf32, #tpu.memory_space<vmem>>, vector<8x16x4xf32>
      %c4_186 = arith.constant 4 : index
      %c0_187 = arith.constant 0 : index
      %c0_188 = arith.constant 0 : index
      %279 = vector.load %arg3[%c4_186, %c0_187, %c0_188] : memref<7x7x4xf32, #tpu.memory_space<vmem>>, vector<1x1x4xf32>
      %280 = vector.shape_cast %279 : vector<1x1x4xf32> to vector<4xf32>
      %281 = vector.shape_cast %280 : vector<4xf32> to vector<1x1x4xf32>
      %282 = vector.broadcast %281 : vector<1x1x4xf32> to vector<8x16x4xf32>
      %283 = arith.mulf %278, %282 : vector<8x16x4xf32>
      %284 = arith.addf %275, %283 : vector<8x16x4xf32>
      %c4_i32_189 = arith.constant 4 : i32
      %285 = arith.addi %23, %c4_i32_189 : i32
      %286 = arith.index_cast %285 : i32 to index
      %c1_190 = arith.constant 1 : index
      %c0_191 = arith.constant 0 : index
      %287 = vector.load %arg6[%286, %c1_190, %c0_191] : memref<22x22x4xf32, #tpu.memory_space<vmem>>, vector<8x16x4xf32>
      %c4_192 = arith.constant 4 : index
      %c1_193 = arith.constant 1 : index
      %c0_194 = arith.constant 0 : index
      %288 = vector.load %arg3[%c4_192, %c1_193, %c0_194] : memref<7x7x4xf32, #tpu.memory_space<vmem>>, vector<1x1x4xf32>
      %289 = vector.shape_cast %288 : vector<1x1x4xf32> to vector<4xf32>
      %290 = vector.shape_cast %289 : vector<4xf32> to vector<1x1x4xf32>
      %291 = vector.broadcast %290 : vector<1x1x4xf32> to vector<8x16x4xf32>
      %292 = arith.mulf %287, %291 : vector<8x16x4xf32>
      %293 = arith.addf %284, %292 : vector<8x16x4xf32>
      %c4_i32_195 = arith.constant 4 : i32
      %294 = arith.addi %23, %c4_i32_195 : i32
      %295 = arith.index_cast %294 : i32 to index
      %c2_196 = arith.constant 2 : index
      %c0_197 = arith.constant 0 : index
      %296 = vector.load %arg6[%295, %c2_196, %c0_197] : memref<22x22x4xf32, #tpu.memory_space<vmem>>, vector<8x16x4xf32>
      %c4_198 = arith.constant 4 : index
      %c2_199 = arith.constant 2 : index
      %c0_200 = arith.constant 0 : index
      %297 = vector.load %arg3[%c4_198, %c2_199, %c0_200] : memref<7x7x4xf32, #tpu.memory_space<vmem>>, vector<1x1x4xf32>
      %298 = vector.shape_cast %297 : vector<1x1x4xf32> to vector<4xf32>
      %299 = vector.shape_cast %298 : vector<4xf32> to vector<1x1x4xf32>
      %300 = vector.broadcast %299 : vector<1x1x4xf32> to vector<8x16x4xf32>
      %301 = arith.mulf %296, %300 : vector<8x16x4xf32>
      %302 = arith.addf %293, %301 : vector<8x16x4xf32>
      %c4_i32_201 = arith.constant 4 : i32
      %303 = arith.addi %23, %c4_i32_201 : i32
      %304 = arith.index_cast %303 : i32 to index
      %c3_202 = arith.constant 3 : index
      %c0_203 = arith.constant 0 : index
      %305 = vector.load %arg6[%304, %c3_202, %c0_203] : memref<22x22x4xf32, #tpu.memory_space<vmem>>, vector<8x16x4xf32>
      %c4_204 = arith.constant 4 : index
      %c3_205 = arith.constant 3 : index
      %c0_206 = arith.constant 0 : index
      %306 = vector.load %arg3[%c4_204, %c3_205, %c0_206] : memref<7x7x4xf32, #tpu.memory_space<vmem>>, vector<1x1x4xf32>
      %307 = vector.shape_cast %306 : vector<1x1x4xf32> to vector<4xf32>
      %308 = vector.shape_cast %307 : vector<4xf32> to vector<1x1x4xf32>
      %309 = vector.broadcast %308 : vector<1x1x4xf32> to vector<8x16x4xf32>
      %310 = arith.mulf %305, %309 : vector<8x16x4xf32>
      %311 = arith.addf %302, %310 : vector<8x16x4xf32>
      %c4_i32_207 = arith.constant 4 : i32
      %312 = arith.addi %23, %c4_i32_207 : i32
      %313 = arith.index_cast %312 : i32 to index
      %c4_208 = arith.constant 4 : index
      %c0_209 = arith.constant 0 : index
      %314 = vector.load %arg6[%313, %c4_208, %c0_209] : memref<22x22x4xf32, #tpu.memory_space<vmem>>, vector<8x16x4xf32>
      %c4_210 = arith.constant 4 : index
      %c4_211 = arith.constant 4 : index
      %c0_212 = arith.constant 0 : index
      %315 = vector.load %arg3[%c4_210, %c4_211, %c0_212] : memref<7x7x4xf32, #tpu.memory_space<vmem>>, vector<1x1x4xf32>
      %316 = vector.shape_cast %315 : vector<1x1x4xf32> to vector<4xf32>
      %317 = vector.shape_cast %316 : vector<4xf32> to vector<1x1x4xf32>
      %318 = vector.broadcast %317 : vector<1x1x4xf32> to vector<8x16x4xf32>
      %319 = arith.mulf %314, %318 : vector<8x16x4xf32>
      %320 = arith.addf %311, %319 : vector<8x16x4xf32>
      %c4_i32_213 = arith.constant 4 : i32
      %321 = arith.addi %23, %c4_i32_213 : i32
      %322 = arith.index_cast %321 : i32 to index
      %c5_214 = arith.constant 5 : index
      %c0_215 = arith.constant 0 : index
      %323 = vector.load %arg6[%322, %c5_214, %c0_215] : memref<22x22x4xf32, #tpu.memory_space<vmem>>, vector<8x16x4xf32>
      %c4_216 = arith.constant 4 : index
      %c5_217 = arith.constant 5 : index
      %c0_218 = arith.constant 0 : index
      %324 = vector.load %arg3[%c4_216, %c5_217, %c0_218] : memref<7x7x4xf32, #tpu.memory_space<vmem>>, vector<1x1x4xf32>
      %325 = vector.shape_cast %324 : vector<1x1x4xf32> to vector<4xf32>
      %326 = vector.shape_cast %325 : vector<4xf32> to vector<1x1x4xf32>
      %327 = vector.broadcast %326 : vector<1x1x4xf32> to vector<8x16x4xf32>
      %328 = arith.mulf %323, %327 : vector<8x16x4xf32>
      %329 = arith.addf %320, %328 : vector<8x16x4xf32>
      %c4_i32_219 = arith.constant 4 : i32
      %330 = arith.addi %23, %c4_i32_219 : i32
      %331 = arith.index_cast %330 : i32 to index
      %c6_220 = arith.constant 6 : index
      %c0_221 = arith.constant 0 : index
      %332 = vector.load %arg6[%331, %c6_220, %c0_221] : memref<22x22x4xf32, #tpu.memory_space<vmem>>, vector<8x16x4xf32>
      %c4_222 = arith.constant 4 : index
      %c6_223 = arith.constant 6 : index
      %c0_224 = arith.constant 0 : index
      %333 = vector.load %arg3[%c4_222, %c6_223, %c0_224] : memref<7x7x4xf32, #tpu.memory_space<vmem>>, vector<1x1x4xf32>
      %334 = vector.shape_cast %333 : vector<1x1x4xf32> to vector<4xf32>
      %335 = vector.shape_cast %334 : vector<4xf32> to vector<1x1x4xf32>
      %336 = vector.broadcast %335 : vector<1x1x4xf32> to vector<8x16x4xf32>
      %337 = arith.mulf %332, %336 : vector<8x16x4xf32>
      %338 = arith.addf %329, %337 : vector<8x16x4xf32>
      %c5_i32 = arith.constant 5 : i32
      %339 = arith.addi %23, %c5_i32 : i32
      %340 = arith.index_cast %339 : i32 to index
      %c0_225 = arith.constant 0 : index
      %c0_226 = arith.constant 0 : index
      %341 = vector.load %arg6[%340, %c0_225, %c0_226] : memref<22x22x4xf32, #tpu.memory_space<vmem>>, vector<8x16x4xf32>
      %c5_227 = arith.constant 5 : index
      %c0_228 = arith.constant 0 : index
      %c0_229 = arith.constant 0 : index
      %342 = vector.load %arg3[%c5_227, %c0_228, %c0_229] : memref<7x7x4xf32, #tpu.memory_space<vmem>>, vector<1x1x4xf32>
      %343 = vector.shape_cast %342 : vector<1x1x4xf32> to vector<4xf32>
      %344 = vector.shape_cast %343 : vector<4xf32> to vector<1x1x4xf32>
      %345 = vector.broadcast %344 : vector<1x1x4xf32> to vector<8x16x4xf32>
      %346 = arith.mulf %341, %345 : vector<8x16x4xf32>
      %347 = arith.addf %338, %346 : vector<8x16x4xf32>
      %c5_i32_230 = arith.constant 5 : i32
      %348 = arith.addi %23, %c5_i32_230 : i32
      %349 = arith.index_cast %348 : i32 to index
      %c1_231 = arith.constant 1 : index
      %c0_232 = arith.constant 0 : index
      %350 = vector.load %arg6[%349, %c1_231, %c0_232] : memref<22x22x4xf32, #tpu.memory_space<vmem>>, vector<8x16x4xf32>
      %c5_233 = arith.constant 5 : index
      %c1_234 = arith.constant 1 : index
      %c0_235 = arith.constant 0 : index
      %351 = vector.load %arg3[%c5_233, %c1_234, %c0_235] : memref<7x7x4xf32, #tpu.memory_space<vmem>>, vector<1x1x4xf32>
      %352 = vector.shape_cast %351 : vector<1x1x4xf32> to vector<4xf32>
      %353 = vector.shape_cast %352 : vector<4xf32> to vector<1x1x4xf32>
      %354 = vector.broadcast %353 : vector<1x1x4xf32> to vector<8x16x4xf32>
      %355 = arith.mulf %350, %354 : vector<8x16x4xf32>
      %356 = arith.addf %347, %355 : vector<8x16x4xf32>
      %c5_i32_236 = arith.constant 5 : i32
      %357 = arith.addi %23, %c5_i32_236 : i32
      %358 = arith.index_cast %357 : i32 to index
      %c2_237 = arith.constant 2 : index
      %c0_238 = arith.constant 0 : index
      %359 = vector.load %arg6[%358, %c2_237, %c0_238] : memref<22x22x4xf32, #tpu.memory_space<vmem>>, vector<8x16x4xf32>
      %c5_239 = arith.constant 5 : index
      %c2_240 = arith.constant 2 : index
      %c0_241 = arith.constant 0 : index
      %360 = vector.load %arg3[%c5_239, %c2_240, %c0_241] : memref<7x7x4xf32, #tpu.memory_space<vmem>>, vector<1x1x4xf32>
      %361 = vector.shape_cast %360 : vector<1x1x4xf32> to vector<4xf32>
      %362 = vector.shape_cast %361 : vector<4xf32> to vector<1x1x4xf32>
      %363 = vector.broadcast %362 : vector<1x1x4xf32> to vector<8x16x4xf32>
      %364 = arith.mulf %359, %363 : vector<8x16x4xf32>
      %365 = arith.addf %356, %364 : vector<8x16x4xf32>
      %c5_i32_242 = arith.constant 5 : i32
      %366 = arith.addi %23, %c5_i32_242 : i32
      %367 = arith.index_cast %366 : i32 to index
      %c3_243 = arith.constant 3 : index
      %c0_244 = arith.constant 0 : index
      %368 = vector.load %arg6[%367, %c3_243, %c0_244] : memref<22x22x4xf32, #tpu.memory_space<vmem>>, vector<8x16x4xf32>
      %c5_245 = arith.constant 5 : index
      %c3_246 = arith.constant 3 : index
      %c0_247 = arith.constant 0 : index
      %369 = vector.load %arg3[%c5_245, %c3_246, %c0_247] : memref<7x7x4xf32, #tpu.memory_space<vmem>>, vector<1x1x4xf32>
      %370 = vector.shape_cast %369 : vector<1x1x4xf32> to vector<4xf32>
      %371 = vector.shape_cast %370 : vector<4xf32> to vector<1x1x4xf32>
      %372 = vector.broadcast %371 : vector<1x1x4xf32> to vector<8x16x4xf32>
      %373 = arith.mulf %368, %372 : vector<8x16x4xf32>
      %374 = arith.addf %365, %373 : vector<8x16x4xf32>
      %c5_i32_248 = arith.constant 5 : i32
      %375 = arith.addi %23, %c5_i32_248 : i32
      %376 = arith.index_cast %375 : i32 to index
      %c4_249 = arith.constant 4 : index
      %c0_250 = arith.constant 0 : index
      %377 = vector.load %arg6[%376, %c4_249, %c0_250] : memref<22x22x4xf32, #tpu.memory_space<vmem>>, vector<8x16x4xf32>
      %c5_251 = arith.constant 5 : index
      %c4_252 = arith.constant 4 : index
      %c0_253 = arith.constant 0 : index
      %378 = vector.load %arg3[%c5_251, %c4_252, %c0_253] : memref<7x7x4xf32, #tpu.memory_space<vmem>>, vector<1x1x4xf32>
      %379 = vector.shape_cast %378 : vector<1x1x4xf32> to vector<4xf32>
      %380 = vector.shape_cast %379 : vector<4xf32> to vector<1x1x4xf32>
      %381 = vector.broadcast %380 : vector<1x1x4xf32> to vector<8x16x4xf32>
      %382 = arith.mulf %377, %381 : vector<8x16x4xf32>
      %383 = arith.addf %374, %382 : vector<8x16x4xf32>
      %c5_i32_254 = arith.constant 5 : i32
      %384 = arith.addi %23, %c5_i32_254 : i32
      %385 = arith.index_cast %384 : i32 to index
      %c5_255 = arith.constant 5 : index
      %c0_256 = arith.constant 0 : index
      %386 = vector.load %arg6[%385, %c5_255, %c0_256] : memref<22x22x4xf32, #tpu.memory_space<vmem>>, vector<8x16x4xf32>
      %c5_257 = arith.constant 5 : index
      %c5_258 = arith.constant 5 : index
      %c0_259 = arith.constant 0 : index
      %387 = vector.load %arg3[%c5_257, %c5_258, %c0_259] : memref<7x7x4xf32, #tpu.memory_space<vmem>>, vector<1x1x4xf32>
      %388 = vector.shape_cast %387 : vector<1x1x4xf32> to vector<4xf32>
      %389 = vector.shape_cast %388 : vector<4xf32> to vector<1x1x4xf32>
      %390 = vector.broadcast %389 : vector<1x1x4xf32> to vector<8x16x4xf32>
      %391 = arith.mulf %386, %390 : vector<8x16x4xf32>
      %392 = arith.addf %383, %391 : vector<8x16x4xf32>
      %c5_i32_260 = arith.constant 5 : i32
      %393 = arith.addi %23, %c5_i32_260 : i32
      %394 = arith.index_cast %393 : i32 to index
      %c6_261 = arith.constant 6 : index
      %c0_262 = arith.constant 0 : index
      %395 = vector.load %arg6[%394, %c6_261, %c0_262] : memref<22x22x4xf32, #tpu.memory_space<vmem>>, vector<8x16x4xf32>
      %c5_263 = arith.constant 5 : index
      %c6_264 = arith.constant 6 : index
      %c0_265 = arith.constant 0 : index
      %396 = vector.load %arg3[%c5_263, %c6_264, %c0_265] : memref<7x7x4xf32, #tpu.memory_space<vmem>>, vector<1x1x4xf32>
      %397 = vector.shape_cast %396 : vector<1x1x4xf32> to vector<4xf32>
      %398 = vector.shape_cast %397 : vector<4xf32> to vector<1x1x4xf32>
      %399 = vector.broadcast %398 : vector<1x1x4xf32> to vector<8x16x4xf32>
      %400 = arith.mulf %395, %399 : vector<8x16x4xf32>
      %401 = arith.addf %392, %400 : vector<8x16x4xf32>
      %c6_i32 = arith.constant 6 : i32
      %402 = arith.addi %23, %c6_i32 : i32
      %403 = arith.index_cast %402 : i32 to index
      %c0_266 = arith.constant 0 : index
      %c0_267 = arith.constant 0 : index
      %404 = vector.load %arg6[%403, %c0_266, %c0_267] : memref<22x22x4xf32, #tpu.memory_space<vmem>>, vector<8x16x4xf32>
      %c6_268 = arith.constant 6 : index
      %c0_269 = arith.constant 0 : index
      %c0_270 = arith.constant 0 : index
      %405 = vector.load %arg3[%c6_268, %c0_269, %c0_270] : memref<7x7x4xf32, #tpu.memory_space<vmem>>, vector<1x1x4xf32>
      %406 = vector.shape_cast %405 : vector<1x1x4xf32> to vector<4xf32>
      %407 = vector.shape_cast %406 : vector<4xf32> to vector<1x1x4xf32>
      %408 = vector.broadcast %407 : vector<1x1x4xf32> to vector<8x16x4xf32>
      %409 = arith.mulf %404, %408 : vector<8x16x4xf32>
      %410 = arith.addf %401, %409 : vector<8x16x4xf32>
      %c6_i32_271 = arith.constant 6 : i32
      %411 = arith.addi %23, %c6_i32_271 : i32
      %412 = arith.index_cast %411 : i32 to index
      %c1_272 = arith.constant 1 : index
      %c0_273 = arith.constant 0 : index
      %413 = vector.load %arg6[%412, %c1_272, %c0_273] : memref<22x22x4xf32, #tpu.memory_space<vmem>>, vector<8x16x4xf32>
      %c6_274 = arith.constant 6 : index
      %c1_275 = arith.constant 1 : index
      %c0_276 = arith.constant 0 : index
      %414 = vector.load %arg3[%c6_274, %c1_275, %c0_276] : memref<7x7x4xf32, #tpu.memory_space<vmem>>, vector<1x1x4xf32>
      %415 = vector.shape_cast %414 : vector<1x1x4xf32> to vector<4xf32>
      %416 = vector.shape_cast %415 : vector<4xf32> to vector<1x1x4xf32>
      %417 = vector.broadcast %416 : vector<1x1x4xf32> to vector<8x16x4xf32>
      %418 = arith.mulf %413, %417 : vector<8x16x4xf32>
      %419 = arith.addf %410, %418 : vector<8x16x4xf32>
      %c6_i32_277 = arith.constant 6 : i32
      %420 = arith.addi %23, %c6_i32_277 : i32
      %421 = arith.index_cast %420 : i32 to index
      %c2_278 = arith.constant 2 : index
      %c0_279 = arith.constant 0 : index
      %422 = vector.load %arg6[%421, %c2_278, %c0_279] : memref<22x22x4xf32, #tpu.memory_space<vmem>>, vector<8x16x4xf32>
      %c6_280 = arith.constant 6 : index
      %c2_281 = arith.constant 2 : index
      %c0_282 = arith.constant 0 : index
      %423 = vector.load %arg3[%c6_280, %c2_281, %c0_282] : memref<7x7x4xf32, #tpu.memory_space<vmem>>, vector<1x1x4xf32>
      %424 = vector.shape_cast %423 : vector<1x1x4xf32> to vector<4xf32>
      %425 = vector.shape_cast %424 : vector<4xf32> to vector<1x1x4xf32>
      %426 = vector.broadcast %425 : vector<1x1x4xf32> to vector<8x16x4xf32>
      %427 = arith.mulf %422, %426 : vector<8x16x4xf32>
      %428 = arith.addf %419, %427 : vector<8x16x4xf32>
      %c6_i32_283 = arith.constant 6 : i32
      %429 = arith.addi %23, %c6_i32_283 : i32
      %430 = arith.index_cast %429 : i32 to index
      %c3_284 = arith.constant 3 : index
      %c0_285 = arith.constant 0 : index
      %431 = vector.load %arg6[%430, %c3_284, %c0_285] : memref<22x22x4xf32, #tpu.memory_space<vmem>>, vector<8x16x4xf32>
      %c6_286 = arith.constant 6 : index
      %c3_287 = arith.constant 3 : index
      %c0_288 = arith.constant 0 : index
      %432 = vector.load %arg3[%c6_286, %c3_287, %c0_288] : memref<7x7x4xf32, #tpu.memory_space<vmem>>, vector<1x1x4xf32>
      %433 = vector.shape_cast %432 : vector<1x1x4xf32> to vector<4xf32>
      %434 = vector.shape_cast %433 : vector<4xf32> to vector<1x1x4xf32>
      %435 = vector.broadcast %434 : vector<1x1x4xf32> to vector<8x16x4xf32>
      %436 = arith.mulf %431, %435 : vector<8x16x4xf32>
      %437 = arith.addf %428, %436 : vector<8x16x4xf32>
      %c6_i32_289 = arith.constant 6 : i32
      %438 = arith.addi %23, %c6_i32_289 : i32
      %439 = arith.index_cast %438 : i32 to index
      %c4_290 = arith.constant 4 : index
      %c0_291 = arith.constant 0 : index
      %440 = vector.load %arg6[%439, %c4_290, %c0_291] : memref<22x22x4xf32, #tpu.memory_space<vmem>>, vector<8x16x4xf32>
      %c6_292 = arith.constant 6 : index
      %c4_293 = arith.constant 4 : index
      %c0_294 = arith.constant 0 : index
      %441 = vector.load %arg3[%c6_292, %c4_293, %c0_294] : memref<7x7x4xf32, #tpu.memory_space<vmem>>, vector<1x1x4xf32>
      %442 = vector.shape_cast %441 : vector<1x1x4xf32> to vector<4xf32>
      %443 = vector.shape_cast %442 : vector<4xf32> to vector<1x1x4xf32>
      %444 = vector.broadcast %443 : vector<1x1x4xf32> to vector<8x16x4xf32>
      %445 = arith.mulf %440, %444 : vector<8x16x4xf32>
      %446 = arith.addf %437, %445 : vector<8x16x4xf32>
      %c6_i32_295 = arith.constant 6 : i32
      %447 = arith.addi %23, %c6_i32_295 : i32
      %448 = arith.index_cast %447 : i32 to index
      %c5_296 = arith.constant 5 : index
      %c0_297 = arith.constant 0 : index
      %449 = vector.load %arg6[%448, %c5_296, %c0_297] : memref<22x22x4xf32, #tpu.memory_space<vmem>>, vector<8x16x4xf32>
      %c6_298 = arith.constant 6 : index
      %c5_299 = arith.constant 5 : index
      %c0_300 = arith.constant 0 : index
      %450 = vector.load %arg3[%c6_298, %c5_299, %c0_300] : memref<7x7x4xf32, #tpu.memory_space<vmem>>, vector<1x1x4xf32>
      %451 = vector.shape_cast %450 : vector<1x1x4xf32> to vector<4xf32>
      %452 = vector.shape_cast %451 : vector<4xf32> to vector<1x1x4xf32>
      %453 = vector.broadcast %452 : vector<1x1x4xf32> to vector<8x16x4xf32>
      %454 = arith.mulf %449, %453 : vector<8x16x4xf32>
      %455 = arith.addf %446, %454 : vector<8x16x4xf32>
      %c6_i32_301 = arith.constant 6 : i32
      %456 = arith.addi %23, %c6_i32_301 : i32
      %457 = arith.index_cast %456 : i32 to index
      %c6_302 = arith.constant 6 : index
      %c0_303 = arith.constant 0 : index
      %458 = vector.load %arg6[%457, %c6_302, %c0_303] : memref<22x22x4xf32, #tpu.memory_space<vmem>>, vector<8x16x4xf32>
      %c6_304 = arith.constant 6 : index
      %c6_305 = arith.constant 6 : index
      %c0_306 = arith.constant 0 : index
      %459 = vector.load %arg3[%c6_304, %c6_305, %c0_306] : memref<7x7x4xf32, #tpu.memory_space<vmem>>, vector<1x1x4xf32>
      %460 = vector.shape_cast %459 : vector<1x1x4xf32> to vector<4xf32>
      %461 = vector.shape_cast %460 : vector<4xf32> to vector<1x1x4xf32>
      %462 = vector.broadcast %461 : vector<1x1x4xf32> to vector<8x16x4xf32>
      %463 = arith.mulf %458, %462 : vector<8x16x4xf32>
      %464 = arith.addf %455, %463 : vector<8x16x4xf32>
      %c0_307 = arith.constant 0 : index
      %465 = arith.index_cast %23 : i32 to index
      %c0_308 = arith.constant 0 : index
      %c0_309 = arith.constant 0 : index
      %466 = vector.load %arg5[%c0_307, %465, %c0_308, %c0_309] : memref<1x16x16x4xf32, #tpu.memory_space<vmem>>, vector<1x8x16x4xf32>
      %467 = vector.shape_cast %466 : vector<1x8x16x4xf32> to vector<8x16x4xf32>
      %468 = vector.shape_cast %464 : vector<8x16x4xf32> to vector<1x8x16x4xf32>
      tpu.vector_store %arg5[%c0_307, %465, %c0_308, %c0_309], %468 {strides = array<i32>} : memref<1x16x16x4xf32, #tpu.memory_space<vmem>>, vector<1x8x16x4xf32>,
    }
    %c2_i32_19 = arith.constant 2 : i32
    return
  }
  func.func @transform_0(%arg0: i32, %arg1: i32) -> (i32, i32, i32, i32) {
    %c0_i32 = arith.constant 0 : i32
    %c0_i32_0 = arith.constant 0 : i32
    %c0_i32_1 = arith.constant 0 : i32
    return %arg0, %c0_i32, %c0_i32_0, %arg1 : i32, i32, i32, i32
  }
  func.func @transform_1(%arg0: i32, %arg1: i32) -> (i32, i32, i32) {
    %c0_i32 = arith.constant 0 : i32
    %c0_i32_0 = arith.constant 0 : i32
    %c0_i32_1 = arith.constant 0 : i32
    return %c0_i32, %c0_i32_0, %arg1 : i32, i32, i32
  }
  func.func @transform_2(%arg0: i32, %arg1: i32) -> (i32, i32, i32) {
    %c0_i32 = arith.constant 0 : i32
    %c0_i32_0 = arith.constant 0 : i32
    %c0_i32_1 = arith.constant 0 : i32
    return %c0_i32, %c0_i32_0, %arg1 : i32, i32, i32
  }
  func.func @transform_3(%arg0: i32, %arg1: i32) -> (i32, i32, i32, i32) {
    %c0_i32 = arith.constant 0 : i32
    %c0_i32_0 = arith.constant 0 : i32
    %c0_i32_1 = arith.constant 0 : i32
    return %arg0, %c0_i32, %c0_i32_0, %arg1 : i32, i32, i32, i32
  }
}

</mosaic_0001>

<llo_original>
// kernel: tpu_custom_call.1
$region0: #{tpu_custom_call.1}
  #allocation0 [shape = 'u32[]', space=smem, size = 0x4, offset = 0x4, fixed_abs, tag = 'smem constant byte address 0x4 - core index']
  #allocation1 [shape = 'u32[144,128]{1,0:T(1,128)}', space=vmem, size = 0x12000, scoped, tag = 'internal scratch']
  #allocation2 [shape = 'f32[22,22,4]{2,1,0:T(8,128)}', space=vmem, size = 0x42000, scoped, tag = 'scratch operand']
  %s0 = inlined_call_operand.vmem [shape: f32[2,16,16,4], index: 0, kind: input, shape index: {}]
  %s1 = inlined_call_operand.vmem [shape: f32[7,7,4], index: 1, kind: input, shape index: {}]
  %s2 = inlined_call_operand.vmem [shape: f32[1,1,4], index: 2, kind: input, shape index: {}]
  %s3 = inlined_call_operand.vmem [shape: f32[2,16,16,4], index: 3, kind: output, shape index: {}]
  %s4 = sld [smem:[#allocation0]]
  $region52: #{tpu_custom_call.1} parent=0
    _
  %s6 = ssub.s32 1, %s4
  %s7 = scalar_select 0, %s6, %s4
  loop: start=0, step=1, limit=4
  $region2: #{tpu_custom_call.1} parent=0 // loop_pre_header
    _
  $region3: #{tpu_custom_call.1} parent=0 // loop_header
    %s9 = sphi 0, %s13
    %p10 = scmp.ge.s32.totalorder %s9, 4
    %s16 = sphi 0, %s28
    %s17 = sphi 0, %s24
    %s18 = sphi 0, %s16
    %s19 = sphi 0, %s17
    %s20 = sphi 0, %s18
    %s21 = sphi 0, %s19
    %s33 = sphi 0, %s35
    %s36 = sphi 0, %s33
    %s37 = sphi 0, %s36
    %s53 = sphi 0, %s37
    %s59 = sphi 0, %s61
    %s62 = sphi 0, %s59
    %s63 = sphi 0, %s62
    %s79 = sphi 0, %s63
    %s85 = sphi 0, %s87
    %s88 = sphi 0, %s85
    %s89 = sphi 0, %s88
    %s105 = sphi 0, %s89
    %s113 = sphi 0, %s115
    %s116 = sphi 0, %s113
    %s117 = sphi 0, %s116
    %s133 = sphi 0, %s117
  $region4: #{tpu_custom_call.1} parent=0 // loop_header_branch
    %12 = sbr.rel (%p10) target = $region8
  $region5: #{tpu_custom_call.1} parent=0 // loop_body
    %s14 = ssub.s32 %s9, 1
    %s15 = ssub.s32 %s9, 2
    %s22 = sadd.s32 1, %s17
    %p23 = scmp.ge.s32.totalorder %s22, 1
    %s24 = scalar_select %p23, 0, %s22
    %s25 = sadd.s32 1, %s16
    %s26 = scalar_select %p23, %s25, %s16
    %p27 = scmp.ge.s32.totalorder %s26, 2
    %s28 = scalar_select %p27, 0, %s26
    %s29 = ssub.s32 %s16, %s28
    %s30 = ssub.s32 %s17, %s24
    %s31 = sor.u32 %s29, %s30
    %p32 = scmp.eq.s32.totalorder %s31, 0
    %s34 = sadd.s32 %s33, 1
    %s35 = scalar_select %p32, %s33, %s34
    %p38 = pneg %p32
    %p39 = scmp.eq.s32.totalorder %s9, 1
    %p40 = por %p38, %p39
    %p41 = scmp.ne.s32.totalorder %s33, %s36
    %p42 = scmp.eq.s32.totalorder %s9, 0
    %p43 = por %p41, %p42
    %p44 = scmp.ne.s32.totalorder %s33, %s36
    %p45 = scmp.eq.s32.totalorder %s14, 1
    %p46 = por %p44, %p45
    %p47 = scmp.ne.s32.totalorder %s36, %s37
    %p48 = scmp.eq.s32.totalorder %s14, 0
    %p49 = por %p47, %p48
    %p50 = scmp.ne.s32.totalorder %s36, %s37
    %p51 = scmp.eq.s32.totalorder %s15, 1
    %p52 = por %p50, %p51
    %p54 = scmp.ne.s32.totalorder %s37, %s53
    %p55 = scmp.eq.s32.totalorder %s15, 0
    %p56 = por %p54, %p55
    %s57 = ssub.s32 %s17, %s24
    %p58 = scmp.eq.s32.totalorder %s57, 0
    %s60 = sadd.s32 %s59, 1
    %s61 = scalar_select %p58, %s59, %s60
    %p64 = pneg %p58
    %p65 = scmp.eq.s32.totalorder %s9, 1
    %p66 = por %p64, %p65
    %p67 = scmp.ne.s32.totalorder %s59, %s62
    %p68 = scmp.eq.s32.totalorder %s9, 0
    %p69 = por %p67, %p68
    %p70 = scmp.ne.s32.totalorder %s59, %s62
    %p71 = scmp.eq.s32.totalorder %s14, 1
    %p72 = por %p70, %p71
    %p73 = scmp.ne.s32.totalorder %s62, %s63
    %p74 = scmp.eq.s32.totalorder %s14, 0
    %p75 = por %p73, %p74
    %p76 = scmp.ne.s32.totalorder %s62, %s63
    %p77 = scmp.eq.s32.totalorder %s15, 1
    %p78 = por %p76, %p77
    %p80 = scmp.ne.s32.totalorder %s63, %s79
    %p81 = scmp.eq.s32.totalorder %s15, 0
    %p82 = por %p80, %p81
    %s83 = ssub.s32 %s17, %s24
    %p84 = scmp.eq.s32.totalorder %s83, 0
    %s86 = sadd.s32 %s85, 1
    %s87 = scalar_select %p84, %s85, %s86
    %p90 = pneg %p84
    %p91 = scmp.eq.s32.totalorder %s9, 1
    %p92 = por %p90, %p91
    %p93 = scmp.ne.s32.totalorder %s85, %s88
    %p94 = scmp.eq.s32.totalorder %s9, 0
    %p95 = por %p93, %p94
    %p96 = scmp.ne.s32.totalorder %s85, %s88
    %p97 = scmp.eq.s32.totalorder %s14, 1
    %p98 = por %p96, %p97
    %p99 = scmp.ne.s32.totalorder %s88, %s89
    %p100 = scmp.eq.s32.totalorder %s14, 0
    %p101 = por %p99, %p100
    %p102 = scmp.ne.s32.totalorder %s88, %s89
    %p103 = scmp.eq.s32.totalorder %s15, 1
    %p104 = por %p102, %p103
    %p106 = scmp.ne.s32.totalorder %s89, %s105
    %p107 = scmp.eq.s32.totalorder %s15, 0
    %p108 = por %p106, %p107
    %s109 = ssub.s32 %s16, %s28
    %s110 = ssub.s32 %s17, %s24
    %s111 = sor.u32 %s109, %s110
    %p112 = scmp.eq.s32.totalorder %s111, 0
    %s114 = sadd.s32 %s113, 1
    %s115 = scalar_select %p112, %s113, %s114
    %p118 = pneg %p112
    %p119 = scmp.eq.s32.totalorder %s9, 1
    %p120 = por %p118, %p119
    %p121 = scmp.ne.s32.totalorder %s113, %s116
    %p122 = scmp.eq.s32.totalorder %s9, 0
    %p123 = por %p121, %p122
    %p124 = scmp.ne.s32.totalorder %s113, %s116
    %p125 = scmp.eq.s32.totalorder %s14, 1
    %p126 = por %p124, %p125
    %p127 = scmp.ne.s32.totalorder %s116, %s117
    %p128 = scmp.eq.s32.totalorder %s14, 0
    %p129 = por %p127, %p128
    %p130 = scmp.ne.s32.totalorder %s116, %s117
    %p131 = scmp.eq.s32.totalorder %s15, 1
    %p132 = por %p130, %p131
    %p134 = scmp.ne.s32.totalorder %s117, %s133
    %p135 = scmp.eq.s32.totalorder %s15, 0
    %p136 = por %p134, %p135
    %p137 = scmp.le.s32.totalorder 1, %s9
    %p138 = scmp.lt.s32.totalorder %s9, 3
    %p139 = pnand %p137, %p138
    %p140 = pneg %p139
    // Predicated region
    $region9: #{tpu_custom_call.1} parent=5 // pred_check
      _
    $region10: #{tpu_custom_call.1} parent=5 // pred_check_branch
      %142 = sbr.rel (%p139) target = $region12
    $region11: #{tpu_custom_call.1} parent=5 // pred_region
      %s143 = ssub.s32 %s9, 1
      // Predicated region
      $region13: #{tpu_custom_call.1} parent=11 // pred_check
        %p144 = pneg %p75
      $region14: #{tpu_custom_call.1} parent=11 // pred_check_branch
        %146 = sbr.rel (%p144) target = $region16
      $region15: #{tpu_custom_call.1} parent=11 // pred_region
        %p147 = scmp.lt.s32.totalorder %s19, 0
        %s148 = scalar_select %p147, %s19, 0
        %s149 = smul.addr %s148, 8
        %s150 = scalar_lea.vmem %s1, %s149
      $region16: #{tpu_custom_call.1} parent=11 // pred_fallthru
        _
      // Predicated region
      $region17: #{tpu_custom_call.1} parent=11 // pred_check
        %p151 = pneg %p101
      $region18: #{tpu_custom_call.1} parent=11 // pred_check_branch
        %153 = sbr.rel (%p151) target = $region20
      $region19: #{tpu_custom_call.1} parent=11 // pred_region
        %p154 = scmp.lt.s32.totalorder %s19, 0
        %s155 = scalar_select %p154, %s19, 0
        %s156 = scalar_lea.vmem %s2, %s155
      $region20: #{tpu_custom_call.1} parent=11 // pred_fallthru
        _
    $region12: #{tpu_custom_call.1} parent=5 // pred_fallthru
      _
    %p157 = scmp.lt.s32.totalorder %s9, 2
    // Predicated region
    $region21: #{tpu_custom_call.1} parent=5 // pred_check
      %p158 = pneg %p157
    $region22: #{tpu_custom_call.1} parent=5 // pred_check_branch
      %160 = sbr.rel (%p158) target = $region24
    $region23: #{tpu_custom_call.1} parent=5 // pred_region
      // Predicated region
      $region25: #{tpu_custom_call.1} parent=23 // pred_check
        %p161 = pneg %p43
      $region26: #{tpu_custom_call.1} parent=23 // pred_check_branch
        %163 = sbr.rel (%p161) target = $region28
      $region27: #{tpu_custom_call.1} parent=23 // pred_region
        %p164 = scmp.lt.s32.totalorder %s16, 1
        %s165 = scalar_select %p164, %s16, 1
        %p166 = scmp.lt.s32.totalorder %s17, 0
        %s167 = scalar_select %p166, %s17, 0
        %s168 = smul.addr %s165, 32
        %s169 = sadd.s32 %s167, %s168
        %s170 = smul.addr %s169, 8
        %s171 = scalar_lea.vmem %s0, %s170
      $region28: #{tpu_custom_call.1} parent=23 // pred_fallthru
        _
    $region24: #{tpu_custom_call.1} parent=5 // pred_fallthru
      _
    %p172 = scmp.le.s32.totalorder 1, %s9
    %p173 = scmp.lt.s32.totalorder %s9, 3
    %p174 = pnand %p172, %p173
    %p175 = pneg %p174
    // Predicated region
    $region29: #{tpu_custom_call.1} parent=5 // pred_check
      _
    $region30: #{tpu_custom_call.1} parent=5 // pred_check_branch
      %177 = sbr.rel (%p174) target = $region32
    $region31: #{tpu_custom_call.1} parent=5 // pred_region
      %s178 = ssub.s32 %s9, 1
      %p179 = scmp.lt.s32.totalorder %s18, 1
      %s180 = scalar_select %p179, %s18, 1
      %p181 = scmp.lt.s32.totalorder %s19, 0
      %s182 = scalar_select %p181, %s19, 0
      %s183 = smul.addr %s180, 32
      %s184 = sadd.s32 %s182, %s183
      %s185 = smul.addr %s184, 8
      %s186 = scalar_lea.vmem %s0, %s185
      %p187 = pneg %p49
      %p188 = pneg %p46
      %p189 = scmp.lt.s32.totalorder %s19, 0
      %s190 = scalar_select %p189, %s19, 0
      %s191 = smul.addr %s190, 8
      %s192 = scalar_lea.vmem %s1, %s191
      %p193 = pneg %p75
      %p194 = pneg %p72
      %p195 = scmp.lt.s32.totalorder %s19, 0
      %s196 = scalar_select %p195, %s19, 0
      %s197 = scalar_lea.vmem %s2, %s196
      %p198 = pneg %p101
      %p199 = pneg %p98
      %p200 = pneg %p129
      %p201 = pneg %p126
      %p202 = scmp.lt.s32.totalorder %s18, 1
      %s203 = scalar_select %p202, %s18, 1
      %p204 = scmp.lt.s32.totalorder %s19, 0
      %s205 = scalar_select %p204, %s19, 0
      %s206 = smul.addr %s203, 32
      %s207 = sadd.s32 %s205, %s206
      %s208 = smul.addr %s207, 8
      %s209 = scalar_lea.vmem %s3, %s208
      %p210 = scmp.lt.s32.totalorder %s18, 1
      %s211 = scalar_select %p210, %s18, 1
      %p212 = scmp.lt.s32.totalorder %s19, 0
      %s213 = scalar_select %p212, %s19, 0
      %s214 = smul.addr %s211, 32
      %s215 = sadd.s32 %s213, %s214
      %s216 = smul.addr %s215, 8
      %s217 = scalar_lea.vmem %s0, %s216
      %p218 = scmp.lt.s32.totalorder %s19, 0
      %s219 = scalar_select %p218, %s19, 0
      %s220 = smul.addr %s219, 8
      %s221 = scalar_lea.vmem %s1, %s220
      %p222 = scmp.lt.s32.totalorder %s19, 0
      %s223 = scalar_select %p222, %s19, 0
      %s224 = scalar_lea.vmem %s2, %s223
      %p225 = scmp.lt.s32.totalorder %s18, 1
      %s226 = scalar_select %p225, %s18, 1
      %p227 = scmp.lt.s32.totalorder %s19, 0
      %s228 = scalar_select %p227, %s19, 0
      %s229 = smul.addr %s226, 32
      %s230 = sadd.s32 %s228, %s229
      %s231 = smul.addr %s230, 8
      %s232 = scalar_lea.vmem %s3, %s231
      %vm233 = vcmask 31744
      %234 = vst.msk [vmem:[#allocation2] sm:$0xff] %vm233, 0.0
      %235 = vst.msk [vmem:[#allocation2 + $0x8] sm:$0xff] %vm233, 0.0
      %vm236 = vcmask 29696
      %237 = vst.msk [vmem:[#allocation2 + $0x10] sm:$0x3f] %vm236, 0.0
      %238 = vst.msk [vmem:[#allocation2 + $0x18] sm:$0xff] %vm233, 0.0
      %239 = vst.msk [vmem:[#allocation2 + $0x20] sm:$0xff] %vm233, 0.0
      %240 = vst.msk [vmem:[#allocation2 + $0x28] sm:$0x3f] %vm236, 0.0
      %241 = vst.msk [vmem:[#allocation2 + $0x30] sm:$0xff] %vm233, 0.0
      %242 = vst.msk [vmem:[#allocation2 + $0x38] sm:$0xff] %vm233, 0.0
      %243 = vst.msk [vmem:[#allocation2 + $0x40] sm:$0x3f] %vm236, 0.0
      %244 = vst.msk [vmem:[#allocation2 + $0x48] sm:$0xff] %vm233, 0.0
      %245 = vst.msk [vmem:[#allocation2 + $0x50] sm:$0xff] %vm233, 0.0
      %246 = vst.msk [vmem:[#allocation2 + $0x58] sm:$0x3f] %vm236, 0.0
      %247 = vst.msk [vmem:[#allocation2 + $0x60] sm:$0xff] %vm233, 0.0
      %248 = vst.msk [vmem:[#allocation2 + $0x68] sm:$0xff] %vm233, 0.0
      %249 = vst.msk [vmem:[#allocation2 + $0x70] sm:$0x3f] %vm236, 0.0
      %250 = vst.msk [vmem:[#allocation2 + $0x78] sm:$0xff] %vm233, 0.0
      %251 = vst.msk [vmem:[#allocation2 + $0x80] sm:$0xff] %vm233, 0.0
      %252 = vst.msk [vmem:[#allocation2 + $0x88] sm:$0x3f] %vm236, 0.0
      %253 = vst.msk [vmem:[#allocation2 + $0x90] sm:$0xff] %vm233, 0.0
      %254 = vst.msk [vmem:[#allocation2 + $0x98] sm:$0xff] %vm233, 0.0
      %255 = vst.msk [vmem:[#allocation2 + $0xa0] sm:$0x3f] %vm236, 0.0
      %256 = vst.msk [vmem:[#allocation2 + $0xa8] sm:$0xff] %vm233, 0.0
      %257 = vst.msk [vmem:[#allocation2 + $0xb0] sm:$0xff] %vm233, 0.0
      %258 = vst.msk [vmem:[#allocation2 + $0xb8] sm:$0x3f] %vm236, 0.0
      %259 = vst.msk [vmem:[#allocation2 + $0xc0] sm:$0xff] %vm233, 0.0
      %260 = vst.msk [vmem:[#allocation2 + $0xc8] sm:$0xff] %vm233, 0.0
      %261 = vst.msk [vmem:[#allocation2 + $0xd0] sm:$0x3f] %vm236, 0.0
      %262 = vst.msk [vmem:[#allocation2 + $0xd8] sm:$0xff] %vm233, 0.0
      %263 = vst.msk [vmem:[#allocation2 + $0xe0] sm:$0xff] %vm233, 0.0
      %264 = vst.msk [vmem:[#allocation2 + $0xe8] sm:$0x3f] %vm236, 0.0
      %265 = vst.msk [vmem:[#allocation2 + $0xf0] sm:$0xff] %vm233, 0.0
      %266 = vst.msk [vmem:[#allocation2 + $0xf8] sm:$0xff] %vm233, 0.0
      %267 = vst.msk [vmem:[#allocation2 + $0x100] sm:$0x3f] %vm236, 0.0
      %268 = vst.msk [vmem:[#allocation2 + $0x108] sm:$0xff] %vm233, 0.0
      %269 = vst.msk [vmem:[#allocation2 + $0x110] sm:$0xff] %vm233, 0.0
      %270 = vst.msk [vmem:[#allocation2 + $0x118] sm:$0x3f] %vm236, 0.0
      %271 = vst.msk [vmem:[#allocation2 + $0x120] sm:$0xff] %vm233, 0.0
      %272 = vst.msk [vmem:[#allocation2 + $0x128] sm:$0xff] %vm233, 0.0
      %273 = vst.msk [vmem:[#allocation2 + $0x130] sm:$0x3f] %vm236, 0.0
      %274 = vst.msk [vmem:[#allocation2 + $0x138] sm:$0xff] %vm233, 0.0
      %275 = vst.msk [vmem:[#allocation2 + $0x140] sm:$0xff] %vm233, 0.0
      %276 = vst.msk [vmem:[#allocation2 + $0x148] sm:$0x3f] %vm236, 0.0
      %277 = vst.msk [vmem:[#allocation2 + $0x150] sm:$0xff] %vm233, 0.0
      %278 = vst.msk [vmem:[#allocation2 + $0x158] sm:$0xff] %vm233, 0.0
      %279 = vst.msk [vmem:[#allocation2 + $0x160] sm:$0x3f] %vm236, 0.0
      %280 = vst.msk [vmem:[#allocation2 + $0x168] sm:$0xff] %vm233, 0.0
      %281 = vst.msk [vmem:[#allocation2 + $0x170] sm:$0xff] %vm233, 0.0
      %282 = vst.msk [vmem:[#allocation2 + $0x178] sm:$0x3f] %vm236, 0.0
      %283 = vst.msk [vmem:[#allocation2 + $0x180] sm:$0xff] %vm233, 0.0
      %284 = vst.msk [vmem:[#allocation2 + $0x188] sm:$0xff] %vm233, 0.0
      %285 = vst.msk [vmem:[#allocation2 + $0x190] sm:$0x3f] %vm236, 0.0
      %286 = vst.msk [vmem:[#allocation2 + $0x198] sm:$0xff] %vm233, 0.0
      %287 = vst.msk [vmem:[#allocation2 + $0x1a0] sm:$0xff] %vm233, 0.0
      %288 = vst.msk [vmem:[#allocation2 + $0x1a8] sm:$0x3f] %vm236, 0.0
      %289 = vst.msk [vmem:[#allocation2 + $0x1b0] sm:$0xff] %vm233, 0.0
      %290 = vst.msk [vmem:[#allocation2 + $0x1b8] sm:$0xff] %vm233, 0.0
      %291 = vst.msk [vmem:[#allocation2 + $0x1c0] sm:$0x3f] %vm236, 0.0
      %292 = vst.msk [vmem:[#allocation2 + $0x1c8] sm:$0xff] %vm233, 0.0
      %293 = vst.msk [vmem:[#allocation2 + $0x1d0] sm:$0xff] %vm233, 0.0
      %294 = vst.msk [vmem:[#allocation2 + $0x1d8] sm:$0x3f] %vm236, 0.0
      %295 = vst.msk [vmem:[#allocation2 + $0x1e0] sm:$0xff] %vm233, 0.0
      %296 = vst.msk [vmem:[#allocation2 + $0x1e8] sm:$0xff] %vm233, 0.0
      %297 = vst.msk [vmem:[#allocation2 + $0x1f0] sm:$0x3f] %vm236, 0.0
      %298 = vst.msk [vmem:[#allocation2 + $0x1f8] sm:$0xff] %vm233, 0.0
      %299 = vst.msk [vmem:[#allocation2 + $0x200] sm:$0xff] %vm233, 0.0
      %300 = vst.msk [vmem:[#allocation2 + $0x208] sm:$0x3f] %vm236, 0.0
      %s301 = smul.u32 0, 16
      %s302 = scalar_lea.vmem %s217, %s301
      %v303 = vld [vmem:[%s302] sm:$0xff]
      %v304 = vld [vmem:[%s302 + $0x8] sm:$0xff]
      %v305 = vld [vmem:[%s302 + $0x10] sm:$0xff]
      %v306 = vld [vmem:[%s302 + $0x18] sm:$0xff]
      %v307 = vld [vmem:[%s302 + $0x20] sm:$0xff]
      %v308 = vld [vmem:[%s302 + $0x28] sm:$0xff]
      %v309 = vld [vmem:[%s302 + $0x30] sm:$0xff]
      %v310 = vld [vmem:[%s302 + $0x38] sm:$0xff]
      %v311 = vld [vmem:[%s302 + $0x40] sm:$0xff]
      %v312 = vld [vmem:[%s302 + $0x48] sm:$0xff]
      %v313 = vld [vmem:[%s302 + $0x50] sm:$0xff]
      %v314 = vld [vmem:[%s302 + $0x58] sm:$0xff]
      %v315 = vld [vmem:[%s302 + $0x60] sm:$0xff]
      %v316 = vld [vmem:[%s302 + $0x68] sm:$0xff]
      %v317 = vld [vmem:[%s302 + $0x70] sm:$0xff]
      %v318 = vld [vmem:[%s302 + $0x78] sm:$0xff]
      %s319 = sadd.s32 0, 3
      %s320 = smul.u32 %s319, 24
      %s321 = scalar_lea.vmem [#allocation2], %s320
      %322 = vst.msk [vmem:[%s321 + $0x3] sm:$0xff] %vm233, %v303
      %323 = vst.msk [vmem:[%s321 + $0xb] sm:$0xff] %vm233, %v304
      %324 = vst.msk [vmem:[%s321 + $0x1b] sm:$0xff] %vm233, %v305
      %325 = vst.msk [vmem:[%s321 + $0x23] sm:$0xff] %vm233, %v306
      %326 = vst.msk [vmem:[%s321 + $0x33] sm:$0xff] %vm233, %v307
      %327 = vst.msk [vmem:[%s321 + $0x3b] sm:$0xff] %vm233, %v308
      %328 = vst.msk [vmem:[%s321 + $0x4b] sm:$0xff] %vm233, %v309
      %329 = vst.msk [vmem:[%s321 + $0x53] sm:$0xff] %vm233, %v310
      %330 = vst.msk [vmem:[%s321 + $0x63] sm:$0xff] %vm233, %v311
      %331 = vst.msk [vmem:[%s321 + $0x6b] sm:$0xff] %vm233, %v312
      %332 = vst.msk [vmem:[%s321 + $0x7b] sm:$0xff] %vm233, %v313
      %333 = vst.msk [vmem:[%s321 + $0x83] sm:$0xff] %vm233, %v314
      %334 = vst.msk [vmem:[%s321 + $0x93] sm:$0xff] %vm233, %v315
      %335 = vst.msk [vmem:[%s321 + $0x9b] sm:$0xff] %vm233, %v316
      %336 = vst.msk [vmem:[%s321 + $0xab] sm:$0xff] %vm233, %v317
      %337 = vst.msk [vmem:[%s321 + $0xb3] sm:$0xff] %vm233, %v318
      %s338 = smul.u32 8, 16
      %s339 = scalar_lea.vmem %s217, %s338
      %v340 = vld [vmem:[%s339] sm:$0xff]
      %v341 = vld [vmem:[%s339 + $0x8] sm:$0xff]
      %v342 = vld [vmem:[%s339 + $0x10] sm:$0xff]
      %v343 = vld [vmem:[%s339 + $0x18] sm:$0xff]
      %v344 = vld [vmem:[%s339 + $0x20] sm:$0xff]
      %v345 = vld [vmem:[%s339 + $0x28] sm:$0xff]
      %v346 = vld [vmem:[%s339 + $0x30] sm:$0xff]
      %v347 = vld [vmem:[%s339 + $0x38] sm:$0xff]
      %v348 = vld [vmem:[%s339 + $0x40] sm:$0xff]
      %v349 = vld [vmem:[%s339 + $0x48] sm:$0xff]
      %v350 = vld [vmem:[%s339 + $0x50] sm:$0xff]
      %v351 = vld [vmem:[%s339 + $0x58] sm:$0xff]
      %v352 = vld [vmem:[%s339 + $0x60] sm:$0xff]
      %v353 = vld [vmem:[%s339 + $0x68] sm:$0xff]
      %v354 = vld [vmem:[%s339 + $0x70] sm:$0xff]
      %v355 = vld [vmem:[%s339 + $0x78] sm:$0xff]
      %s356 = sadd.s32 8, 3
      %s357 = smul.u32 %s356, 24
      %s358 = scalar_lea.vmem [#allocation2], %s357
      %359 = vst.msk [vmem:[%s358 + $0x3] sm:$0xff] %vm233, %v340
      %360 = vst.msk [vmem:[%s358 + $0xb] sm:$0xff] %vm233, %v341
      %361 = vst.msk [vmem:[%s358 + $0x1b] sm:$0xff] %vm233, %v342
      %362 = vst.msk [vmem:[%s358 + $0x23] sm:$0xff] %vm233, %v343
      %363 = vst.msk [vmem:[%s358 + $0x33] sm:$0xff] %vm233, %v344
      %364 = vst.msk [vmem:[%s358 + $0x3b] sm:$0xff] %vm233, %v345
      %365 = vst.msk [vmem:[%s358 + $0x4b] sm:$0xff] %vm233, %v346
      %366 = vst.msk [vmem:[%s358 + $0x53] sm:$0xff] %vm233, %v347
      %367 = vst.msk [vmem:[%s358 + $0x63] sm:$0xff] %vm233, %v348
      %368 = vst.msk [vmem:[%s358 + $0x6b] sm:$0xff] %vm233, %v349
      %369 = vst.msk [vmem:[%s358 + $0x7b] sm:$0xff] %vm233, %v350
      %370 = vst.msk [vmem:[%s358 + $0x83] sm:$0xff] %vm233, %v351
      %371 = vst.msk [vmem:[%s358 + $0x93] sm:$0xff] %vm233, %v352
      %372 = vst.msk [vmem:[%s358 + $0x9b] sm:$0xff] %vm233, %v353
      %373 = vst.msk [vmem:[%s358 + $0xab] sm:$0xff] %vm233, %v354
      %374 = vst.msk [vmem:[%s358 + $0xb3] sm:$0xff] %vm233, %v355
      %v375 = vld [vmem:[%s224] sm:$0x1]
      %v377 = vlaneseq
      %v378 = vshrl.u32 %v377, 7
      %v379 = vsub.s32 0, %v378
      %v380 = vrot.slane %v375, %v379
      loop: start=0, step=1, limit=2
      $region33: #{tpu_custom_call.1} parent=31 // loop_pre_header
        _
      $region34: #{tpu_custom_call.1} parent=31 // loop_header
        %s383 = sphi 0, %s387
        %p384 = scmp.ge.s32.totalorder %s383, 2
      $region35: #{tpu_custom_call.1} parent=31 // loop_header_branch
        %386 = sbr.rel (%p384) target = $region39
      $region36: #{tpu_custom_call.1} parent=31 // loop_body
        %s388 = smul.u32 %s383, 8
        %s389 = smul.u32 %s388, 24
        %s390 = scalar_lea.vmem [#allocation2], %s389
        %v391 = vld [vmem:[%s390] sm:$0xff]
        %v392 = vld [vmem:[%s390 + $0x8] sm:$0xff]
        %v393 = vld [vmem:[%s390 + $0x18] sm:$0xff]
        %v394 = vld [vmem:[%s390 + $0x20] sm:$0xff]
        %v395 = vld [vmem:[%s390 + $0x30] sm:$0xff]
        %v396 = vld [vmem:[%s390 + $0x38] sm:$0xff]
        %v397 = vld [vmem:[%s390 + $0x48] sm:$0xff]
        %v398 = vld [vmem:[%s390 + $0x50] sm:$0xff]
        %v399 = vld [vmem:[%s390 + $0x60] sm:$0xff]
        %v400 = vld [vmem:[%s390 + $0x68] sm:$0xff]
        %v401 = vld [vmem:[%s390 + $0x78] sm:$0xff]
        %v402 = vld [vmem:[%s390 + $0x80] sm:$0xff]
        %v403 = vld [vmem:[%s390 + $0x90] sm:$0xff]
        %v404 = vld [vmem:[%s390 + $0x98] sm:$0xff]
        %v405 = vld [vmem:[%s390 + $0xa8] sm:$0xff]
        %v406 = vld [vmem:[%s390 + $0xb0] sm:$0xff]
        %v407 = vld [vmem:[%s221] sm:$0x1]
        %v408 = vlaneseq
        %v409 = vshrl.u32 %v408, 7
        %v410 = vsub.s32 0, %v409
        %v411 = vrot.slane %v407, %v410
        %v412 = vmul.f32 %v391, %v411
        %v413 = vmul.f32 %v392, %v411
        %v414 = vmul.f32 %v393, %v411
        %v415 = vmul.f32 %v394, %v411
        %v416 = vmul.f32 %v395, %v411
        %v417 = vmul.f32 %v396, %v411
        %v418 = vmul.f32 %v397, %v411
        %v419 = vmul.f32 %v398, %v411
        %v420 = vmul.f32 %v399, %v411
        %v421 = vmul.f32 %v400, %v411
        %v422 = vmul.f32 %v401, %v411
        %v423 = vmul.f32 %v402, %v411
        %v424 = vmul.f32 %v403, %v411
        %v425 = vmul.f32 %v404, %v411
        %v426 = vmul.f32 %v405, %v411
        %v427 = vmul.f32 %v406, %v411
        %v428 = vadd.f32 %v380, %v412
        %v429 = vadd.f32 %v380, %v413
        %v430 = vadd.f32 %v380, %v414
        %v431 = vadd.f32 %v380, %v415
        %v432 = vadd.f32 %v380, %v416
        %v433 = vadd.f32 %v380, %v417
        %v434 = vadd.f32 %v380, %v418
        %v435 = vadd.f32 %v380, %v419
        %v436 = vadd.f32 %v380, %v420
        %v437 = vadd.f32 %v380, %v421
        %v438 = vadd.f32 %v380, %v422
        %v439 = vadd.f32 %v380, %v423
        %v440 = vadd.f32 %v380, %v424
        %v441 = vadd.f32 %v380, %v425
        %v442 = vadd.f32 %v380, %v426
        %v443 = vadd.f32 %v380, %v427
        %v444 = vld [vmem:[%s390 + $0x1] sm:$0xff]
        %v445 = vld [vmem:[%s390 + $0x9] sm:$0xff]
        %v446 = vld [vmem:[%s390 + $0x19] sm:$0xff]
        %v447 = vld [vmem:[%s390 + $0x21] sm:$0xff]
        %v448 = vld [vmem:[%s390 + $0x31] sm:$0xff]
        %v449 = vld [vmem:[%s390 + $0x39] sm:$0xff]
        %v450 = vld [vmem:[%s390 + $0x49] sm:$0xff]
        %v451 = vld [vmem:[%s390 + $0x51] sm:$0xff]
        %v452 = vld [vmem:[%s390 + $0x61] sm:$0xff]
        %v453 = vld [vmem:[%s390 + $0x69] sm:$0xff]
        %v454 = vld [vmem:[%s390 + $0x79] sm:$0xff]
        %v455 = vld [vmem:[%s390 + $0x81] sm:$0xff]
        %v456 = vld [vmem:[%s390 + $0x91] sm:$0xff]
        %v457 = vld [vmem:[%s390 + $0x99] sm:$0xff]
        %v458 = vld [vmem:[%s390 + $0xa9] sm:$0xff]
        %v459 = vld [vmem:[%s390 + $0xb1] sm:$0xff]
        %v460 = vld [vmem:[%s221 + $0x1] sm:$0x1]
        %v461 = vlaneseq
        %v462 = vshrl.u32 %v461, 7
        %v463 = vsub.s32 0, %v462
        %v464 = vrot.slane %v460, %v463
        %v465 = vmul.f32 %v444, %v464
        %v466 = vmul.f32 %v445, %v464
        %v467 = vmul.f32 %v446, %v464
        %v468 = vmul.f32 %v447, %v464
        %v469 = vmul.f32 %v448, %v464
        %v470 = vmul.f32 %v449, %v464
        %v471 = vmul.f32 %v450, %v464
        %v472 = vmul.f32 %v451, %v464
        %v473 = vmul.f32 %v452, %v464
        %v474 = vmul.f32 %v453, %v464
        %v475 = vmul.f32 %v454, %v464
        %v476 = vmul.f32 %v455, %v464
        %v477 = vmul.f32 %v456, %v464
        %v478 = vmul.f32 %v457, %v464
        %v479 = vmul.f32 %v458, %v464
        %v480 = vmul.f32 %v459, %v464
        %v481 = vadd.f32 %v428, %v465
        %v482 = vadd.f32 %v429, %v466
        %v483 = vadd.f32 %v430, %v467
        %v484 = vadd.f32 %v431, %v468
        %v485 = vadd.f32 %v432, %v469
        %v486 = vadd.f32 %v433, %v470
        %v487 = vadd.f32 %v434, %v471
        %v488 = vadd.f32 %v435, %v472
        %v489 = vadd.f32 %v436, %v473
        %v490 = vadd.f32 %v437, %v474
        %v491 = vadd.f32 %v438, %v475
        %v492 = vadd.f32 %v439, %v476
        %v493 = vadd.f32 %v440, %v477
        %v494 = vadd.f32 %v441, %v478
        %v495 = vadd.f32 %v442, %v479
        %v496 = vadd.f32 %v443, %v480
        %v497 = vld [vmem:[%s390 + $0x2] sm:$0xff]
        %v498 = vld [vmem:[%s390 + $0xa] sm:$0xff]
        %v499 = vld [vmem:[%s390 + $0x1a] sm:$0xff]
        %v500 = vld [vmem:[%s390 + $0x22] sm:$0xff]
        %v501 = vld [vmem:[%s390 + $0x32] sm:$0xff]
        %v502 = vld [vmem:[%s390 + $0x3a] sm:$0xff]
        %v503 = vld [vmem:[%s390 + $0x4a] sm:$0xff]
        %v504 = vld [vmem:[%s390 + $0x52] sm:$0xff]
        %v505 = vld [vmem:[%s390 + $0x62] sm:$0xff]
        %v506 = vld [vmem:[%s390 + $0x6a] sm:$0xff]
        %v507 = vld [vmem:[%s390 + $0x7a] sm:$0xff]
        %v508 = vld [vmem:[%s390 + $0x82] sm:$0xff]
        %v509 = vld [vmem:[%s390 + $0x92] sm:$0xff]
        %v510 = vld [vmem:[%s390 + $0x9a] sm:$0xff]
        %v511 = vld [vmem:[%s390 + $0xaa] sm:$0xff]
        %v512 = vld [vmem:[%s390 + $0xb2] sm:$0xff]
        %v513 = vld [vmem:[%s221 + $0x2] sm:$0x1]
        %v514 = vlaneseq
        %v515 = vshrl.u32 %v514, 7
        %v516 = vsub.s32 0, %v515
        %v517 = vrot.slane %v513, %v516
        %v518 = vmul.f32 %v497, %v517
        %v519 = vmul.f32 %v498, %v517
        %v520 = vmul.f32 %v499, %v517
        %v521 = vmul.f32 %v500, %v517
        %v522 = vmul.f32 %v501, %v517
        %v523 = vmul.f32 %v502, %v517
        %v524 = vmul.f32 %v503, %v517
        %v525 = vmul.f32 %v504, %v517
        %v526 = vmul.f32 %v505, %v517
        %v527 = vmul.f32 %v506, %v517
        %v528 = vmul.f32 %v507, %v517
        %v529 = vmul.f32 %v508, %v517
        %v530 = vmul.f32 %v509, %v517
        %v531 = vmul.f32 %v510, %v517
        %v532 = vmul.f32 %v511, %v517
        %v533 = vmul.f32 %v512, %v517
        %v534 = vadd.f32 %v481, %v518
        %v535 = vadd.f32 %v482, %v519
        %v536 = vadd.f32 %v483, %v520
        %v537 = vadd.f32 %v484, %v521
        %v538 = vadd.f32 %v485, %v522
        %v539 = vadd.f32 %v486, %v523
        %v540 = vadd.f32 %v487, %v524
        %v541 = vadd.f32 %v488, %v525
        %v542 = vadd.f32 %v489, %v526
        %v543 = vadd.f32 %v490, %v527
        %v544 = vadd.f32 %v491, %v528
        %v545 = vadd.f32 %v492, %v529
        %v546 = vadd.f32 %v493, %v530
        %v547 = vadd.f32 %v494, %v531
        %v548 = vadd.f32 %v495, %v532
        %v549 = vadd.f32 %v496, %v533
        %v550 = vld [vmem:[%s390 + $0x3] sm:$0xff]
        %v551 = vld [vmem:[%s390 + $0xb] sm:$0xff]
        %v552 = vld [vmem:[%s390 + $0x1b] sm:$0xff]
        %v553 = vld [vmem:[%s390 + $0x23] sm:$0xff]
        %v554 = vld [vmem:[%s390 + $0x33] sm:$0xff]
        %v555 = vld [vmem:[%s390 + $0x3b] sm:$0xff]
        %v556 = vld [vmem:[%s390 + $0x4b] sm:$0xff]
        %v557 = vld [vmem:[%s390 + $0x53] sm:$0xff]
        %v558 = vld [vmem:[%s390 + $0x63] sm:$0xff]
        %v559 = vld [vmem:[%s390 + $0x6b] sm:$0xff]
        %v560 = vld [vmem:[%s390 + $0x7b] sm:$0xff]
        %v561 = vld [vmem:[%s390 + $0x83] sm:$0xff]
        %v562 = vld [vmem:[%s390 + $0x93] sm:$0xff]
        %v563 = vld [vmem:[%s390 + $0x9b] sm:$0xff]
        %v564 = vld [vmem:[%s390 + $0xab] sm:$0xff]
        %v565 = vld [vmem:[%s390 + $0xb3] sm:$0xff]
        %v566 = vld [vmem:[%s221 + $0x3] sm:$0x1]
        %v567 = vlaneseq
        %v568 = vshrl.u32 %v567, 7
        %v569 = vsub.s32 0, %v568
        %v570 = vrot.slane %v566, %v569
        %v571 = vmul.f32 %v550, %v570
        %v572 = vmul.f32 %v551, %v570
        %v573 = vmul.f32 %v552, %v570
        %v574 = vmul.f32 %v553, %v570
        %v575 = vmul.f32 %v554, %v570
        %v576 = vmul.f32 %v555, %v570
        %v577 = vmul.f32 %v556, %v570
        %v578 = vmul.f32 %v557, %v570
        %v579 = vmul.f32 %v558, %v570
        %v580 = vmul.f32 %v559, %v570
        %v581 = vmul.f32 %v560, %v570
        %v582 = vmul.f32 %v561, %v570
        %v583 = vmul.f32 %v562, %v570
        %v584 = vmul.f32 %v563, %v570
        %v585 = vmul.f32 %v564, %v570
        %v586 = vmul.f32 %v565, %v570
        %v587 = vadd.f32 %v534, %v571
        %v588 = vadd.f32 %v535, %v572
        %v589 = vadd.f32 %v536, %v573
        %v590 = vadd.f32 %v537, %v574
        %v591 = vadd.f32 %v538, %v575
        %v592 = vadd.f32 %v539, %v576
        %v593 = vadd.f32 %v540, %v577
        %v594 = vadd.f32 %v541, %v578
        %v595 = vadd.f32 %v542, %v579
        %v596 = vadd.f32 %v543, %v580
        %v597 = vadd.f32 %v544, %v581
        %v598 = vadd.f32 %v545, %v582
        %v599 = vadd.f32 %v546, %v583
        %v600 = vadd.f32 %v547, %v584
        %v601 = vadd.f32 %v548, %v585
        %v602 = vadd.f32 %v549, %v586
        %v603 = vld [vmem:[%s390 + $0x4] sm:$0xff]
        %v604 = vld [vmem:[%s390 + $0xc] sm:$0xff]
        %v605 = vld [vmem:[%s390 + $0x1c] sm:$0xff]
        %v606 = vld [vmem:[%s390 + $0x24] sm:$0xff]
        %v607 = vld [vmem:[%s390 + $0x34] sm:$0xff]
        %v608 = vld [vmem:[%s390 + $0x3c] sm:$0xff]
        %v609 = vld [vmem:[%s390 + $0x4c] sm:$0xff]
        %v610 = vld [vmem:[%s390 + $0x54] sm:$0xff]
        %v611 = vld [vmem:[%s390 + $0x64] sm:$0xff]
        %v612 = vld [vmem:[%s390 + $0x6c] sm:$0xff]
        %v613 = vld [vmem:[%s390 + $0x7c] sm:$0xff]
        %v614 = vld [vmem:[%s390 + $0x84] sm:$0xff]
        %v615 = vld [vmem:[%s390 + $0x94] sm:$0xff]
        %v616 = vld [vmem:[%s390 + $0x9c] sm:$0xff]
        %v617 = vld [vmem:[%s390 + $0xac] sm:$0xff]
        %v618 = vld [vmem:[%s390 + $0xb4] sm:$0xff]
        %v619 = vld [vmem:[%s221 + $0x4] sm:$0x1]
        %v620 = vlaneseq
        %v621 = vshrl.u32 %v620, 7
        %v622 = vsub.s32 0, %v621
        %v623 = vrot.slane %v619, %v622
        %v624 = vmul.f32 %v603, %v623
        %v625 = vmul.f32 %v604, %v623
        %v626 = vmul.f32 %v605, %v623
        %v627 = vmul.f32 %v606, %v623
        %v628 = vmul.f32 %v607, %v623
        %v629 = vmul.f32 %v608, %v623
        %v630 = vmul.f32 %v609, %v623
        %v631 = vmul.f32 %v610, %v623
        %v632 = vmul.f32 %v611, %v623
        %v633 = vmul.f32 %v612, %v623
        %v634 = vmul.f32 %v613, %v623
        %v635 = vmul.f32 %v614, %v623
        %v636 = vmul.f32 %v615, %v623
        %v637 = vmul.f32 %v616, %v623
        %v638 = vmul.f32 %v617, %v623
        %v639 = vmul.f32 %v618, %v623
        %v640 = vadd.f32 %v587, %v624
        %v641 = vadd.f32 %v588, %v625
        %v642 = vadd.f32 %v589, %v626
        %v643 = vadd.f32 %v590, %v627
        %v644 = vadd.f32 %v591, %v628
        %v645 = vadd.f32 %v592, %v629
        %v646 = vadd.f32 %v593, %v630
        %v647 = vadd.f32 %v594, %v631
        %v648 = vadd.f32 %v595, %v632
        %v649 = vadd.f32 %v596, %v633
        %v650 = vadd.f32 %v597, %v634
        %v651 = vadd.f32 %v598, %v635
        %v652 = vadd.f32 %v599, %v636
        %v653 = vadd.f32 %v600, %v637
        %v654 = vadd.f32 %v601, %v638
        %v655 = vadd.f32 %v602, %v639
        %v656 = vld [vmem:[%s390 + $0x5] sm:$0xff]
        %v657 = vld [vmem:[%s390 + $0xd] sm:$0xff]
        %v658 = vld [vmem:[%s390 + $0x1d] sm:$0xff]
        %v659 = vld [vmem:[%s390 + $0x25] sm:$0xff]
        %v660 = vld [vmem:[%s390 + $0x35] sm:$0xff]
        %v661 = vld [vmem:[%s390 + $0x3d] sm:$0xff]
        %v662 = vld [vmem:[%s390 + $0x4d] sm:$0xff]
        %v663 = vld [vmem:[%s390 + $0x55] sm:$0xff]
        %v664 = vld [vmem:[%s390 + $0x65] sm:$0xff]
        %v665 = vld [vmem:[%s390 + $0x6d] sm:$0xff]
        %v666 = vld [vmem:[%s390 + $0x7d] sm:$0xff]
        %v667 = vld [vmem:[%s390 + $0x85] sm:$0xff]
        %v668 = vld [vmem:[%s390 + $0x95] sm:$0xff]
        %v669 = vld [vmem:[%s390 + $0x9d] sm:$0xff]
        %v670 = vld [vmem:[%s390 + $0xad] sm:$0xff]
        %v671 = vld [vmem:[%s390 + $0xb5] sm:$0xff]
        %v672 = vld [vmem:[%s221 + $0x5] sm:$0x1]
        %v673 = vlaneseq
        %v674 = vshrl.u32 %v673, 7
        %v675 = vsub.s32 0, %v674
        %v676 = vrot.slane %v672, %v675
        %v677 = vmul.f32 %v656, %v676
        %v678 = vmul.f32 %v657, %v676
        %v679 = vmul.f32 %v658, %v676
        %v680 = vmul.f32 %v659, %v676
        %v681 = vmul.f32 %v660, %v676
        %v682 = vmul.f32 %v661, %v676
        %v683 = vmul.f32 %v662, %v676
        %v684 = vmul.f32 %v663, %v676
        %v685 = vmul.f32 %v664, %v676
        %v686 = vmul.f32 %v665, %v676
        %v687 = vmul.f32 %v666, %v676
        %v688 = vmul.f32 %v667, %v676
        %v689 = vmul.f32 %v668, %v676
        %v690 = vmul.f32 %v669, %v676
        %v691 = vmul.f32 %v670, %v676
        %v692 = vmul.f32 %v671, %v676
        %v693 = vadd.f32 %v640, %v677
        %v694 = vadd.f32 %v641, %v678
        %v695 = vadd.f32 %v642, %v679
        %v696 = vadd.f32 %v643, %v680
        %v697 = vadd.f32 %v644, %v681
        %v698 = vadd.f32 %v645, %v682
        %v699 = vadd.f32 %v646, %v683
        %v700 = vadd.f32 %v647, %v684
        %v701 = vadd.f32 %v648, %v685
        %v702 = vadd.f32 %v649, %v686
        %v703 = vadd.f32 %v650, %v687
        %v704 = vadd.f32 %v651, %v688
        %v705 = vadd.f32 %v652, %v689
        %v706 = vadd.f32 %v653, %v690
        %v707 = vadd.f32 %v654, %v691
        %v708 = vadd.f32 %v655, %v692
        %v709 = vld [vmem:[%s390 + $0x6] sm:$0xff]
        %v710 = vld [vmem:[%s390 + $0xe] sm:$0xff]
        %v711 = vld [vmem:[%s390 + $0x1e] sm:$0xff]
        %v712 = vld [vmem:[%s390 + $0x26] sm:$0xff]
        %v713 = vld [vmem:[%s390 + $0x36] sm:$0xff]
        %v714 = vld [vmem:[%s390 + $0x3e] sm:$0xff]
        %v715 = vld [vmem:[%s390 + $0x4e] sm:$0xff]
        %v716 = vld [vmem:[%s390 + $0x56] sm:$0xff]
        %v717 = vld [vmem:[%s390 + $0x66] sm:$0xff]
        %v718 = vld [vmem:[%s390 + $0x6e] sm:$0xff]
        %v719 = vld [vmem:[%s390 + $0x7e] sm:$0xff]
        %v720 = vld [vmem:[%s390 + $0x86] sm:$0xff]
        %v721 = vld [vmem:[%s390 + $0x96] sm:$0xff]
        %v722 = vld [vmem:[%s390 + $0x9e] sm:$0xff]
        %v723 = vld [vmem:[%s390 + $0xae] sm:$0xff]
        %v724 = vld [vmem:[%s390 + $0xb6] sm:$0xff]
        %v725 = vld [vmem:[%s221 + $0x6] sm:$0x1]
        %v726 = vlaneseq
        %v727 = vshrl.u32 %v726, 7
        %v728 = vsub.s32 0, %v727
        %v729 = vrot.slane %v725, %v728
        %v730 = vmul.f32 %v709, %v729
        %v731 = vmul.f32 %v710, %v729
        %v732 = vmul.f32 %v711, %v729
        %v733 = vmul.f32 %v712, %v729
        %v734 = vmul.f32 %v713, %v729
        %v735 = vmul.f32 %v714, %v729
        %v736 = vmul.f32 %v715, %v729
        %v737 = vmul.f32 %v716, %v729
        %v738 = vmul.f32 %v717, %v729
        %v739 = vmul.f32 %v718, %v729
        %v740 = vmul.f32 %v719, %v729
        %v741 = vmul.f32 %v720, %v729
        %v742 = vmul.f32 %v721, %v729
        %v743 = vmul.f32 %v722, %v729
        %v744 = vmul.f32 %v723, %v729
        %v745 = vmul.f32 %v724, %v729
        %v746 = vadd.f32 %v693, %v730
        %v747 = vadd.f32 %v694, %v731
        %v748 = vadd.f32 %v695, %v732
        %v749 = vadd.f32 %v696, %v733
        %v750 = vadd.f32 %v697, %v734
        %v751 = vadd.f32 %v698, %v735
        %v752 = vadd.f32 %v699, %v736
        %v753 = vadd.f32 %v700, %v737
        %v754 = vadd.f32 %v701, %v738
        %v755 = vadd.f32 %v702, %v739
        %v756 = vadd.f32 %v703, %v740
        %v757 = vadd.f32 %v704, %v741
        %v758 = vadd.f32 %v705, %v742
        %v759 = vadd.f32 %v706, %v743
        %v760 = vadd.f32 %v707, %v744
        %v761 = vadd.f32 %v708, %v745
        %s762 = sadd.s32 %s388, 1
        %s763 = smul.u32 %s762, 24
        %s764 = scalar_lea.vmem [#allocation2], %s763
        %v765 = vld [vmem:[%s764] sm:$0xff]
        %v766 = vld [vmem:[%s764 + $0x8] sm:$0xff]
        %v767 = vld [vmem:[%s764 + $0x18] sm:$0xff]
        %v768 = vld [vmem:[%s764 + $0x20] sm:$0xff]
        %v769 = vld [vmem:[%s764 + $0x30] sm:$0xff]
        %v770 = vld [vmem:[%s764 + $0x38] sm:$0xff]
        %v771 = vld [vmem:[%s764 + $0x48] sm:$0xff]
        %v772 = vld [vmem:[%s764 + $0x50] sm:$0xff]
        %v773 = vld [vmem:[%s764 + $0x60] sm:$0xff]
        %v774 = vld [vmem:[%s764 + $0x68] sm:$0xff]
        %v775 = vld [vmem:[%s764 + $0x78] sm:$0xff]
        %v776 = vld [vmem:[%s764 + $0x80] sm:$0xff]
        %v777 = vld [vmem:[%s764 + $0x90] sm:$0xff]
        %v778 = vld [vmem:[%s764 + $0x98] sm:$0xff]
        %v779 = vld [vmem:[%s764 + $0xa8] sm:$0xff]
        %v780 = vld [vmem:[%s764 + $0xb0] sm:$0xff]
        %s781 = scalar_lea.vmem %s221, 8
        %v782 = vld [vmem:[%s781] sm:$0x1]
        %v783 = vlaneseq
        %v784 = vshrl.u32 %v783, 7
        %v785 = vsub.s32 0, %v784
        %v786 = vrot.slane %v782, %v785
        %v787 = vmul.f32 %v765, %v786
        %v788 = vmul.f32 %v766, %v786
        %v789 = vmul.f32 %v767, %v786
        %v790 = vmul.f32 %v768, %v786
        %v791 = vmul.f32 %v769, %v786
        %v792 = vmul.f32 %v770, %v786
        %v793 = vmul.f32 %v771, %v786
        %v794 = vmul.f32 %v772, %v786
        %v795 = vmul.f32 %v773, %v786
        %v796 = vmul.f32 %v774, %v786
        %v797 = vmul.f32 %v775, %v786
        %v798 = vmul.f32 %v776, %v786
        %v799 = vmul.f32 %v777, %v786
        %v800 = vmul.f32 %v778, %v786
        %v801 = vmul.f32 %v779, %v786
        %v802 = vmul.f32 %v780, %v786
        %v803 = vadd.f32 %v746, %v787
        %v804 = vadd.f32 %v747, %v788
        %v805 = vadd.f32 %v748, %v789
        %v806 = vadd.f32 %v749, %v790
        %v807 = vadd.f32 %v750, %v791
        %v808 = vadd.f32 %v751, %v792
        %v809 = vadd.f32 %v752, %v793
        %v810 = vadd.f32 %v753, %v794
        %v811 = vadd.f32 %v754, %v795
        %v812 = vadd.f32 %v755, %v796
        %v813 = vadd.f32 %v756, %v797
        %v814 = vadd.f32 %v757, %v798
        %v815 = vadd.f32 %v758, %v799
        %v816 = vadd.f32 %v759, %v800
        %v817 = vadd.f32 %v760, %v801
        %v818 = vadd.f32 %v761, %v802
        %v819 = vld [vmem:[%s764 + $0x1] sm:$0xff]
        %v820 = vld [vmem:[%s764 + $0x9] sm:$0xff]
        %v821 = vld [vmem:[%s764 + $0x19] sm:$0xff]
        %v822 = vld [vmem:[%s764 + $0x21] sm:$0xff]
        %v823 = vld [vmem:[%s764 + $0x31] sm:$0xff]
        %v824 = vld [vmem:[%s764 + $0x39] sm:$0xff]
        %v825 = vld [vmem:[%s764 + $0x49] sm:$0xff]
        %v826 = vld [vmem:[%s764 + $0x51] sm:$0xff]
        %v827 = vld [vmem:[%s764 + $0x61] sm:$0xff]
        %v828 = vld [vmem:[%s764 + $0x69] sm:$0xff]
        %v829 = vld [vmem:[%s764 + $0x79] sm:$0xff]
        %v830 = vld [vmem:[%s764 + $0x81] sm:$0xff]
        %v831 = vld [vmem:[%s764 + $0x91] sm:$0xff]
        %v832 = vld [vmem:[%s764 + $0x99] sm:$0xff]
        %v833 = vld [vmem:[%s764 + $0xa9] sm:$0xff]
        %v834 = vld [vmem:[%s764 + $0xb1] sm:$0xff]
        %v835 = vld [vmem:[%s781 + $0x1] sm:$0x1]
        %v836 = vlaneseq
        %v837 = vshrl.u32 %v836, 7
        %v838 = vsub.s32 0, %v837
        %v839 = vrot.slane %v835, %v838
        %v840 = vmul.f32 %v819, %v839
        %v841 = vmul.f32 %v820, %v839
        %v842 = vmul.f32 %v821, %v839
        %v843 = vmul.f32 %v822, %v839
        %v844 = vmul.f32 %v823, %v839
        %v845 = vmul.f32 %v824, %v839
        %v846 = vmul.f32 %v825, %v839
        %v847 = vmul.f32 %v826, %v839
        %v848 = vmul.f32 %v827, %v839
        %v849 = vmul.f32 %v828, %v839
        %v850 = vmul.f32 %v829, %v839
        %v851 = vmul.f32 %v830, %v839
        %v852 = vmul.f32 %v831, %v839
        %v853 = vmul.f32 %v832, %v839
        %v854 = vmul.f32 %v833, %v839
        %v855 = vmul.f32 %v834, %v839
        %v856 = vadd.f32 %v803, %v840
        %v857 = vadd.f32 %v804, %v841
        %v858 = vadd.f32 %v805, %v842
        %v859 = vadd.f32 %v806, %v843
        %v860 = vadd.f32 %v807, %v844
        %v861 = vadd.f32 %v808, %v845
        %v862 = vadd.f32 %v809, %v846
        %v863 = vadd.f32 %v810, %v847
        %v864 = vadd.f32 %v811, %v848
        %v865 = vadd.f32 %v812, %v849
        %v866 = vadd.f32 %v813, %v850
        %v867 = vadd.f32 %v814, %v851
        %v868 = vadd.f32 %v815, %v852
        %v869 = vadd.f32 %v816, %v853
        %v870 = vadd.f32 %v817, %v854
        %v871 = vadd.f32 %v818, %v855
        %v872 = vld [vmem:[%s764 + $0x2] sm:$0xff]
        %v873 = vld [vmem:[%s764 + $0xa] sm:$0xff]
        %v874 = vld [vmem:[%s764 + $0x1a] sm:$0xff]
        %v875 = vld [vmem:[%s764 + $0x22] sm:$0xff]
        %v876 = vld [vmem:[%s764 + $0x32] sm:$0xff]
        %v877 = vld [vmem:[%s764 + $0x3a] sm:$0xff]
        %v878 = vld [vmem:[%s764 + $0x4a] sm:$0xff]
        %v879 = vld [vmem:[%s764 + $0x52] sm:$0xff]
        %v880 = vld [vmem:[%s764 + $0x62] sm:$0xff]
        %v881 = vld [vmem:[%s764 + $0x6a] sm:$0xff]
        %v882 = vld [vmem:[%s764 + $0x7a] sm:$0xff]
        %v883 = vld [vmem:[%s764 + $0x82] sm:$0xff]
        %v884 = vld [vmem:[%s764 + $0x92] sm:$0xff]
        %v885 = vld [vmem:[%s764 + $0x9a] sm:$0xff]
        %v886 = vld [vmem:[%s764 + $0xaa] sm:$0xff]
        %v887 = vld [vmem:[%s764 + $0xb2] sm:$0xff]
        %v888 = vld [vmem:[%s781 + $0x2] sm:$0x1]
        %v889 = vlaneseq
        %v890 = vshrl.u32 %v889, 7
        %v891 = vsub.s32 0, %v890
        %v892 = vrot.slane %v888, %v891
        %v893 = vmul.f32 %v872, %v892
        %v894 = vmul.f32 %v873, %v892
        %v895 = vmul.f32 %v874, %v892
        %v896 = vmul.f32 %v875, %v892
        %v897 = vmul.f32 %v876, %v892
        %v898 = vmul.f32 %v877, %v892
        %v899 = vmul.f32 %v878, %v892
        %v900 = vmul.f32 %v879, %v892
        %v901 = vmul.f32 %v880, %v892
        %v902 = vmul.f32 %v881, %v892
        %v903 = vmul.f32 %v882, %v892
        %v904 = vmul.f32 %v883, %v892
        %v905 = vmul.f32 %v884, %v892
        %v906 = vmul.f32 %v885, %v892
        %v907 = vmul.f32 %v886, %v892
        %v908 = vmul.f32 %v887, %v892
        %v909 = vadd.f32 %v856, %v893
        %v910 = vadd.f32 %v857, %v894
        %v911 = vadd.f32 %v858, %v895
        %v912 = vadd.f32 %v859, %v896
        %v913 = vadd.f32 %v860, %v897
        %v914 = vadd.f32 %v861, %v898
        %v915 = vadd.f32 %v862, %v899
        %v916 = vadd.f32 %v863, %v900
        %v917 = vadd.f32 %v864, %v901
        %v918 = vadd.f32 %v865, %v902
        %v919 = vadd.f32 %v866, %v903
        %v920 = vadd.f32 %v867, %v904
        %v921 = vadd.f32 %v868, %v905
        %v922 = vadd.f32 %v869, %v906
        %v923 = vadd.f32 %v870, %v907
        %v924 = vadd.f32 %v871, %v908
        %v925 = vld [vmem:[%s764 + $0x3] sm:$0xff]
        %v926 = vld [vmem:[%s764 + $0xb] sm:$0xff]
        %v927 = vld [vmem:[%s764 + $0x1b] sm:$0xff]
        %v928 = vld [vmem:[%s764 + $0x23] sm:$0xff]
        %v929 = vld [vmem:[%s764 + $0x33] sm:$0xff]
        %v930 = vld [vmem:[%s764 + $0x3b] sm:$0xff]
        %v931 = vld [vmem:[%s764 + $0x4b] sm:$0xff]
        %v932 = vld [vmem:[%s764 + $0x53] sm:$0xff]
        %v933 = vld [vmem:[%s764 + $0x63] sm:$0xff]
        %v934 = vld [vmem:[%s764 + $0x6b] sm:$0xff]
        %v935 = vld [vmem:[%s764 + $0x7b] sm:$0xff]
        %v936 = vld [vmem:[%s764 + $0x83] sm:$0xff]
        %v937 = vld [vmem:[%s764 + $0x93] sm:$0xff]
        %v938 = vld [vmem:[%s764 + $0x9b] sm:$0xff]
        %v939 = vld [vmem:[%s764 + $0xab] sm:$0xff]
        %v940 = vld [vmem:[%s764 + $0xb3] sm:$0xff]
        %v941 = vld [vmem:[%s781 + $0x3] sm:$0x1]
        %v942 = vlaneseq
        %v943 = vshrl.u32 %v942, 7
        %v944 = vsub.s32 0, %v943
        %v945 = vrot.slane %v941, %v944
        %v946 = vmul.f32 %v925, %v945
        %v947 = vmul.f32 %v926, %v945
        %v948 = vmul.f32 %v927, %v945
        %v949 = vmul.f32 %v928, %v945
        %v950 = vmul.f32 %v929, %v945
        %v951 = vmul.f32 %v930, %v945
        %v952 = vmul.f32 %v931, %v945
        %v953 = vmul.f32 %v932, %v945
        %v954 = vmul.f32 %v933, %v945
        %v955 = vmul.f32 %v934, %v945
        %v956 = vmul.f32 %v935, %v945
        %v957 = vmul.f32 %v936, %v945
        %v958 = vmul.f32 %v937, %v945
        %v959 = vmul.f32 %v938, %v945
        %v960 = vmul.f32 %v939, %v945
        %v961 = vmul.f32 %v940, %v945
        %v962 = vadd.f32 %v909, %v946
        %v963 = vadd.f32 %v910, %v947
        %v964 = vadd.f32 %v911, %v948
        %v965 = vadd.f32 %v912, %v949
        %v966 = vadd.f32 %v913, %v950
        %v967 = vadd.f32 %v914, %v951
        %v968 = vadd.f32 %v915, %v952
        %v969 = vadd.f32 %v916, %v953
        %v970 = vadd.f32 %v917, %v954
        %v971 = vadd.f32 %v918, %v955
        %v972 = vadd.f32 %v919, %v956
        %v973 = vadd.f32 %v920, %v957
        %v974 = vadd.f32 %v921, %v958
        %v975 = vadd.f32 %v922, %v959
        %v976 = vadd.f32 %v923, %v960
        %v977 = vadd.f32 %v924, %v961
        %v978 = vld [vmem:[%s764 + $0x4] sm:$0xff]
        %v979 = vld [vmem:[%s764 + $0xc] sm:$0xff]
        %v980 = vld [vmem:[%s764 + $0x1c] sm:$0xff]
        %v981 = vld [vmem:[%s764 + $0x24] sm:$0xff]
        %v982 = vld [vmem:[%s764 + $0x34] sm:$0xff]
        %v983 = vld [vmem:[%s764 + $0x3c] sm:$0xff]
        %v984 = vld [vmem:[%s764 + $0x4c] sm:$0xff]
        %v985 = vld [vmem:[%s764 + $0x54] sm:$0xff]
        %v986 = vld [vmem:[%s764 + $0x64] sm:$0xff]
        %v987 = vld [vmem:[%s764 + $0x6c] sm:$0xff]
        %v988 = vld [vmem:[%s764 + $0x7c] sm:$0xff]
        %v989 = vld [vmem:[%s764 + $0x84] sm:$0xff]
        %v990 = vld [vmem:[%s764 + $0x94] sm:$0xff]
        %v991 = vld [vmem:[%s764 + $0x9c] sm:$0xff]
        %v992 = vld [vmem:[%s764 + $0xac] sm:$0xff]
        %v993 = vld [vmem:[%s764 + $0xb4] sm:$0xff]
        %v994 = vld [vmem:[%s781 + $0x4] sm:$0x1]
        %v995 = vlaneseq
        %v996 = vshrl.u32 %v995, 7
        %v997 = vsub.s32 0, %v996
        %v998 = vrot.slane %v994, %v997
        %v999 = vmul.f32 %v978, %v998
        %v1000 = vmul.f32 %v979, %v998
        %v1001 = vmul.f32 %v980, %v998
        %v1002 = vmul.f32 %v981, %v998
        %v1003 = vmul.f32 %v982, %v998
        %v1004 = vmul.f32 %v983, %v998
        %v1005 = vmul.f32 %v984, %v998
        %v1006 = vmul.f32 %v985, %v998
        %v1007 = vmul.f32 %v986, %v998
        %v1008 = vmul.f32 %v987, %v998
        %v1009 = vmul.f32 %v988, %v998
        %v1010 = vmul.f32 %v989, %v998
        %v1011 = vmul.f32 %v990, %v998
        %v1012 = vmul.f32 %v991, %v998
        %v1013 = vmul.f32 %v992, %v998
        %v1014 = vmul.f32 %v993, %v998
        %v1015 = vadd.f32 %v962, %v999
        %v1016 = vadd.f32 %v963, %v1000
        %v1017 = vadd.f32 %v964, %v1001
        %v1018 = vadd.f32 %v965, %v1002
        %v1019 = vadd.f32 %v966, %v1003
        %v1020 = vadd.f32 %v967, %v1004
        %v1021 = vadd.f32 %v968, %v1005
        %v1022 = vadd.f32 %v969, %v1006
        %v1023 = vadd.f32 %v970, %v1007
        %v1024 = vadd.f32 %v971, %v1008
        %v1025 = vadd.f32 %v972, %v1009
        %v1026 = vadd.f32 %v973, %v1010
        %v1027 = vadd.f32 %v974, %v1011
        %v1028 = vadd.f32 %v975, %v1012
        %v1029 = vadd.f32 %v976, %v1013
        %v1030 = vadd.f32 %v977, %v1014
        %v1031 = vld [vmem:[%s764 + $0x5] sm:$0xff]
        %v1032 = vld [vmem:[%s764 + $0xd] sm:$0xff]
        %v1033 = vld [vmem:[%s764 + $0x1d] sm:$0xff]
        %v1034 = vld [vmem:[%s764 + $0x25] sm:$0xff]
        %v1035 = vld [vmem:[%s764 + $0x35] sm:$0xff]
        %v1036 = vld [vmem:[%s764 + $0x3d] sm:$0xff]
        %v1037 = vld [vmem:[%s764 + $0x4d] sm:$0xff]
        %v1038 = vld [vmem:[%s764 + $0x55] sm:$0xff]
        %v1039 = vld [vmem:[%s764 + $0x65] sm:$0xff]
        %v1040 = vld [vmem:[%s764 + $0x6d] sm:$0xff]
        %v1041 = vld [vmem:[%s764 + $0x7d] sm:$0xff]
        %v1042 = vld [vmem:[%s764 + $0x85] sm:$0xff]
        %v1043 = vld [vmem:[%s764 + $0x95] sm:$0xff]
        %v1044 = vld [vmem:[%s764 + $0x9d] sm:$0xff]
        %v1045 = vld [vmem:[%s764 + $0xad] sm:$0xff]
        %v1046 = vld [vmem:[%s764 + $0xb5] sm:$0xff]
        %v1047 = vld [vmem:[%s781 + $0x5] sm:$0x1]
        %v1048 = vlaneseq
        %v1049 = vshrl.u32 %v1048, 7
        %v1050 = vsub.s32 0, %v1049
        %v1051 = vrot.slane %v1047, %v1050
        %v1052 = vmul.f32 %v1031, %v1051
        %v1053 = vmul.f32 %v1032, %v1051
        %v1054 = vmul.f32 %v1033, %v1051
        %v1055 = vmul.f32 %v1034, %v1051
        %v1056 = vmul.f32 %v1035, %v1051
        %v1057 = vmul.f32 %v1036, %v1051
        %v1058 = vmul.f32 %v1037, %v1051
        %v1059 = vmul.f32 %v1038, %v1051
        %v1060 = vmul.f32 %v1039, %v1051
        %v1061 = vmul.f32 %v1040, %v1051
        %v1062 = vmul.f32 %v1041, %v1051
        %v1063 = vmul.f32 %v1042, %v1051
        %v1064 = vmul.f32 %v1043, %v1051
        %v1065 = vmul.f32 %v1044, %v1051
        %v1066 = vmul.f32 %v1045, %v1051
        %v1067 = vmul.f32 %v1046, %v1051
        %v1068 = vadd.f32 %v1015, %v1052
        %v1069 = vadd.f32 %v1016, %v1053
        %v1070 = vadd.f32 %v1017, %v1054
        %v1071 = vadd.f32 %v1018, %v1055
        %v1072 = vadd.f32 %v1019, %v1056
        %v1073 = vadd.f32 %v1020, %v1057
        %v1074 = vadd.f32 %v1021, %v1058
        %v1075 = vadd.f32 %v1022, %v1059
        %v1076 = vadd.f32 %v1023, %v1060
        %v1077 = vadd.f32 %v1024, %v1061
        %v1078 = vadd.f32 %v1025, %v1062
        %v1079 = vadd.f32 %v1026, %v1063
        %v1080 = vadd.f32 %v1027, %v1064
        %v1081 = vadd.f32 %v1028, %v1065
        %v1082 = vadd.f32 %v1029, %v1066
        %v1083 = vadd.f32 %v1030, %v1067
        %v1084 = vld [vmem:[%s764 + $0x6] sm:$0xff]
        %v1085 = vld [vmem:[%s764 + $0xe] sm:$0xff]
        %v1086 = vld [vmem:[%s764 + $0x1e] sm:$0xff]
        %v1087 = vld [vmem:[%s764 + $0x26] sm:$0xff]
        %v1088 = vld [vmem:[%s764 + $0x36] sm:$0xff]
        %v1089 = vld [vmem:[%s764 + $0x3e] sm:$0xff]
        %v1090 = vld [vmem:[%s764 + $0x4e] sm:$0xff]
        %v1091 = vld [vmem:[%s764 + $0x56] sm:$0xff]
        %v1092 = vld [vmem:[%s764 + $0x66] sm:$0xff]
        %v1093 = vld [vmem:[%s764 + $0x6e] sm:$0xff]
        %v1094 = vld [vmem:[%s764 + $0x7e] sm:$0xff]
        %v1095 = vld [vmem:[%s764 + $0x86] sm:$0xff]
        %v1096 = vld [vmem:[%s764 + $0x96] sm:$0xff]
        %v1097 = vld [vmem:[%s764 + $0x9e] sm:$0xff]
        %v1098 = vld [vmem:[%s764 + $0xae] sm:$0xff]
        %v1099 = vld [vmem:[%s764 + $0xb6] sm:$0xff]
        %v1100 = vld [vmem:[%s781 + $0x6] sm:$0x1]
        %v1101 = vlaneseq
        %v1102 = vshrl.u32 %v1101, 7
        %v1103 = vsub.s32 0, %v1102
        %v1104 = vrot.slane %v1100, %v1103
        %v1105 = vmul.f32 %v1084, %v1104
        %v1106 = vmul.f32 %v1085, %v1104
        %v1107 = vmul.f32 %v1086, %v1104
        %v1108 = vmul.f32 %v1087, %v1104
        %v1109 = vmul.f32 %v1088, %v1104
        %v1110 = vmul.f32 %v1089, %v1104
        %v1111 = vmul.f32 %v1090, %v1104
        %v1112 = vmul.f32 %v1091, %v1104
        %v1113 = vmul.f32 %v1092, %v1104
        %v1114 = vmul.f32 %v1093, %v1104
        %v1115 = vmul.f32 %v1094, %v1104
        %v1116 = vmul.f32 %v1095, %v1104
        %v1117 = vmul.f32 %v1096, %v1104
        %v1118 = vmul.f32 %v1097, %v1104
        %v1119 = vmul.f32 %v1098, %v1104
        %v1120 = vmul.f32 %v1099, %v1104
        %v1121 = vadd.f32 %v1068, %v1105
        %v1122 = vadd.f32 %v1069, %v1106
        %v1123 = vadd.f32 %v1070, %v1107
        %v1124 = vadd.f32 %v1071, %v1108
        %v1125 = vadd.f32 %v1072, %v1109
        %v1126 = vadd.f32 %v1073, %v1110
        %v1127 = vadd.f32 %v1074, %v1111
        %v1128 = vadd.f32 %v1075, %v1112
        %v1129 = vadd.f32 %v1076, %v1113
        %v1130 = vadd.f32 %v1077, %v1114
        %v1131 = vadd.f32 %v1078, %v1115
        %v1132 = vadd.f32 %v1079, %v1116
        %v1133 = vadd.f32 %v1080, %v1117
        %v1134 = vadd.f32 %v1081, %v1118
        %v1135 = vadd.f32 %v1082, %v1119
        %v1136 = vadd.f32 %v1083, %v1120
        %s1137 = sadd.s32 %s388, 2
        %s1138 = smul.u32 %s1137, 24
        %s1139 = scalar_lea.vmem [#allocation2], %s1138
        %v1140 = vld [vmem:[%s1139] sm:$0xff]
        %v1141 = vld [vmem:[%s1139 + $0x8] sm:$0xff]
        %v1142 = vld [vmem:[%s1139 + $0x18] sm:$0xff]
        %v1143 = vld [vmem:[%s1139 + $0x20] sm:$0xff]
        %v1144 = vld [vmem:[%s1139 + $0x30] sm:$0xff]
        %v1145 = vld [vmem:[%s1139 + $0x38] sm:$0xff]
        %v1146 = vld [vmem:[%s1139 + $0x48] sm:$0xff]
        %v1147 = vld [vmem:[%s1139 + $0x50] sm:$0xff]
        %v1148 = vld [vmem:[%s1139 + $0x60] sm:$0xff]
        %v1149 = vld [vmem:[%s1139 + $0x68] sm:$0xff]
        %v1150 = vld [vmem:[%s1139 + $0x78] sm:$0xff]
        %v1151 = vld [vmem:[%s1139 + $0x80] sm:$0xff]
        %v1152 = vld [vmem:[%s1139 + $0x90] sm:$0xff]
        %v1153 = vld [vmem:[%s1139 + $0x98] sm:$0xff]
        %v1154 = vld [vmem:[%s1139 + $0xa8] sm:$0xff]
        %v1155 = vld [vmem:[%s1139 + $0xb0] sm:$0xff]
        %s1156 = scalar_lea.vmem %s221, 16
        %v1157 = vld [vmem:[%s1156] sm:$0x1]
        %v1158 = vlaneseq
        %v1159 = vshrl.u32 %v1158, 7
        %v1160 = vsub.s32 0, %v1159
        %v1161 = vrot.slane %v1157, %v1160
        %v1162 = vmul.f32 %v1140, %v1161
        %v1163 = vmul.f32 %v1141, %v1161
        %v1164 = vmul.f32 %v1142, %v1161
        %v1165 = vmul.f32 %v1143, %v1161
        %v1166 = vmul.f32 %v1144, %v1161
        %v1167 = vmul.f32 %v1145, %v1161
        %v1168 = vmul.f32 %v1146, %v1161
        %v1169 = vmul.f32 %v1147, %v1161
        %v1170 = vmul.f32 %v1148, %v1161
        %v1171 = vmul.f32 %v1149, %v1161
        %v1172 = vmul.f32 %v1150, %v1161
        %v1173 = vmul.f32 %v1151, %v1161
        %v1174 = vmul.f32 %v1152, %v1161
        %v1175 = vmul.f32 %v1153, %v1161
        %v1176 = vmul.f32 %v1154, %v1161
        %v1177 = vmul.f32 %v1155, %v1161
        %v1178 = vadd.f32 %v1121, %v1162
        %v1179 = vadd.f32 %v1122, %v1163
        %v1180 = vadd.f32 %v1123, %v1164
        %v1181 = vadd.f32 %v1124, %v1165
        %v1182 = vadd.f32 %v1125, %v1166
        %v1183 = vadd.f32 %v1126, %v1167
        %v1184 = vadd.f32 %v1127, %v1168
        %v1185 = vadd.f32 %v1128, %v1169
        %v1186 = vadd.f32 %v1129, %v1170
        %v1187 = vadd.f32 %v1130, %v1171
        %v1188 = vadd.f32 %v1131, %v1172
        %v1189 = vadd.f32 %v1132, %v1173
        %v1190 = vadd.f32 %v1133, %v1174
        %v1191 = vadd.f32 %v1134, %v1175
        %v1192 = vadd.f32 %v1135, %v1176
        %v1193 = vadd.f32 %v1136, %v1177
        %v1194 = vld [vmem:[%s1139 + $0x1] sm:$0xff]
        %v1195 = vld [vmem:[%s1139 + $0x9] sm:$0xff]
        %v1196 = vld [vmem:[%s1139 + $0x19] sm:$0xff]
        %v1197 = vld [vmem:[%s1139 + $0x21] sm:$0xff]
        %v1198 = vld [vmem:[%s1139 + $0x31] sm:$0xff]
        %v1199 = vld [vmem:[%s1139 + $0x39] sm:$0xff]
        %v1200 = vld [vmem:[%s1139 + $0x49] sm:$0xff]
        %v1201 = vld [vmem:[%s1139 + $0x51] sm:$0xff]
        %v1202 = vld [vmem:[%s1139 + $0x61] sm:$0xff]
        %v1203 = vld [vmem:[%s1139 + $0x69] sm:$0xff]
        %v1204 = vld [vmem:[%s1139 + $0x79] sm:$0xff]
        %v1205 = vld [vmem:[%s1139 + $0x81] sm:$0xff]
        %v1206 = vld [vmem:[%s1139 + $0x91] sm:$0xff]
        %v1207 = vld [vmem:[%s1139 + $0x99] sm:$0xff]
        %v1208 = vld [vmem:[%s1139 + $0xa9] sm:$0xff]
        %v1209 = vld [vmem:[%s1139 + $0xb1] sm:$0xff]
        %v1210 = vld [vmem:[%s1156 + $0x1] sm:$0x1]
        %v1211 = vlaneseq
        %v1212 = vshrl.u32 %v1211, 7
        %v1213 = vsub.s32 0, %v1212
        %v1214 = vrot.slane %v1210, %v1213
        %v1215 = vmul.f32 %v1194, %v1214
        %v1216 = vmul.f32 %v1195, %v1214
        %v1217 = vmul.f32 %v1196, %v1214
        %v1218 = vmul.f32 %v1197, %v1214
        %v1219 = vmul.f32 %v1198, %v1214
        %v1220 = vmul.f32 %v1199, %v1214
        %v1221 = vmul.f32 %v1200, %v1214
        %v1222 = vmul.f32 %v1201, %v1214
        %v1223 = vmul.f32 %v1202, %v1214
        %v1224 = vmul.f32 %v1203, %v1214
        %v1225 = vmul.f32 %v1204, %v1214
        %v1226 = vmul.f32 %v1205, %v1214
        %v1227 = vmul.f32 %v1206, %v1214
        %v1228 = vmul.f32 %v1207, %v1214
        %v1229 = vmul.f32 %v1208, %v1214
        %v1230 = vmul.f32 %v1209, %v1214
        %v1231 = vadd.f32 %v1178, %v1215
        %v1232 = vadd.f32 %v1179, %v1216
        %v1233 = vadd.f32 %v1180, %v1217
        %v1234 = vadd.f32 %v1181, %v1218
        %v1235 = vadd.f32 %v1182, %v1219
        %v1236 = vadd.f32 %v1183, %v1220
        %v1237 = vadd.f32 %v1184, %v1221
        %v1238 = vadd.f32 %v1185, %v1222
        %v1239 = vadd.f32 %v1186, %v1223
        %v1240 = vadd.f32 %v1187, %v1224
        %v1241 = vadd.f32 %v1188, %v1225
        %v1242 = vadd.f32 %v1189, %v1226
        %v1243 = vadd.f32 %v1190, %v1227
        %v1244 = vadd.f32 %v1191, %v1228
        %v1245 = vadd.f32 %v1192, %v1229
        %v1246 = vadd.f32 %v1193, %v1230
        %v1247 = vld [vmem:[%s1139 + $0x2] sm:$0xff]
        %v1248 = vld [vmem:[%s1139 + $0xa] sm:$0xff]
        %v1249 = vld [vmem:[%s1139 + $0x1a] sm:$0xff]
        %v1250 = vld [vmem:[%s1139 + $0x22] sm:$0xff]
        %v1251 = vld [vmem:[%s1139 + $0x32] sm:$0xff]
        %v1252 = vld [vmem:[%s1139 + $0x3a] sm:$0xff]
        %v1253 = vld [vmem:[%s1139 + $0x4a] sm:$0xff]
        %v1254 = vld [vmem:[%s1139 + $0x52] sm:$0xff]
        %v1255 = vld [vmem:[%s1139 + $0x62] sm:$0xff]
        %v1256 = vld [vmem:[%s1139 + $0x6a] sm:$0xff]
        %v1257 = vld [vmem:[%s1139 + $0x7a] sm:$0xff]
        %v1258 = vld [vmem:[%s1139 + $0x82] sm:$0xff]
        %v1259 = vld [vmem:[%s1139 + $0x92] sm:$0xff]
        %v1260 = vld [vmem:[%s1139 + $0x9a] sm:$0xff]
        %v1261 = vld [vmem:[%s1139 + $0xaa] sm:$0xff]
        %v1262 = vld [vmem:[%s1139 + $0xb2] sm:$0xff]
        %v1263 = vld [vmem:[%s1156 + $0x2] sm:$0x1]
        %v1264 = vlaneseq
        %v1265 = vshrl.u32 %v1264, 7
        %v1266 = vsub.s32 0, %v1265
        %v1267 = vrot.slane %v1263, %v1266
        %v1268 = vmul.f32 %v1247, %v1267
        %v1269 = vmul.f32 %v1248, %v1267
        %v1270 = vmul.f32 %v1249, %v1267
        %v1271 = vmul.f32 %v1250, %v1267
        %v1272 = vmul.f32 %v1251, %v1267
        %v1273 = vmul.f32 %v1252, %v1267
        %v1274 = vmul.f32 %v1253, %v1267
        %v1275 = vmul.f32 %v1254, %v1267
        %v1276 = vmul.f32 %v1255, %v1267
        %v1277 = vmul.f32 %v1256, %v1267
        %v1278 = vmul.f32 %v1257, %v1267
        %v1279 = vmul.f32 %v1258, %v1267
        %v1280 = vmul.f32 %v1259, %v1267
        %v1281 = vmul.f32 %v1260, %v1267
        %v1282 = vmul.f32 %v1261, %v1267
        %v1283 = vmul.f32 %v1262, %v1267
        %v1284 = vadd.f32 %v1231, %v1268
        %v1285 = vadd.f32 %v1232, %v1269
        %v1286 = vadd.f32 %v1233, %v1270
        %v1287 = vadd.f32 %v1234, %v1271
        %v1288 = vadd.f32 %v1235, %v1272
        %v1289 = vadd.f32 %v1236, %v1273
        %v1290 = vadd.f32 %v1237, %v1274
        %v1291 = vadd.f32 %v1238, %v1275
        %v1292 = vadd.f32 %v1239, %v1276
        %v1293 = vadd.f32 %v1240, %v1277
        %v1294 = vadd.f32 %v1241, %v1278
        %v1295 = vadd.f32 %v1242, %v1279
        %v1296 = vadd.f32 %v1243, %v1280
        %v1297 = vadd.f32 %v1244, %v1281
        %v1298 = vadd.f32 %v1245, %v1282
        %v1299 = vadd.f32 %v1246, %v1283
        %v1300 = vld [vmem:[%s1139 + $0x3] sm:$0xff]
        %v1301 = vld [vmem:[%s1139 + $0xb] sm:$0xff]
        %v1302 = vld [vmem:[%s1139 + $0x1b] sm:$0xff]
        %v1303 = vld [vmem:[%s1139 + $0x23] sm:$0xff]
        %v1304 = vld [vmem:[%s1139 + $0x33] sm:$0xff]
        %v1305 = vld [vmem:[%s1139 + $0x3b] sm:$0xff]
        %v1306 = vld [vmem:[%s1139 + $0x4b] sm:$0xff]
        %v1307 = vld [vmem:[%s1139 + $0x53] sm:$0xff]
        %v1308 = vld [vmem:[%s1139 + $0x63] sm:$0xff]
        %v1309 = vld [vmem:[%s1139 + $0x6b] sm:$0xff]
        %v1310 = vld [vmem:[%s1139 + $0x7b] sm:$0xff]
        %v1311 = vld [vmem:[%s1139 + $0x83] sm:$0xff]
        %v1312 = vld [vmem:[%s1139 + $0x93] sm:$0xff]
        %v1313 = vld [vmem:[%s1139 + $0x9b] sm:$0xff]
        %v1314 = vld [vmem:[%s1139 + $0xab] sm:$0xff]
        %v1315 = vld [vmem:[%s1139 + $0xb3] sm:$0xff]
        %v1316 = vld [vmem:[%s1156 + $0x3] sm:$0x1]
        %v1317 = vlaneseq
        %v1318 = vshrl.u32 %v1317, 7
        %v1319 = vsub.s32 0, %v1318
        %v1320 = vrot.slane %v1316, %v1319
        %v1321 = vmul.f32 %v1300, %v1320
        %v1322 = vmul.f32 %v1301, %v1320
        %v1323 = vmul.f32 %v1302, %v1320
        %v1324 = vmul.f32 %v1303, %v1320
        %v1325 = vmul.f32 %v1304, %v1320
        %v1326 = vmul.f32 %v1305, %v1320
        %v1327 = vmul.f32 %v1306, %v1320
        %v1328 = vmul.f32 %v1307, %v1320
        %v1329 = vmul.f32 %v1308, %v1320
        %v1330 = vmul.f32 %v1309, %v1320
        %v1331 = vmul.f32 %v1310, %v1320
        %v1332 = vmul.f32 %v1311, %v1320
        %v1333 = vmul.f32 %v1312, %v1320
        %v1334 = vmul.f32 %v1313, %v1320
        %v1335 = vmul.f32 %v1314, %v1320
        %v1336 = vmul.f32 %v1315, %v1320
        %v1337 = vadd.f32 %v1284, %v1321
        %v1338 = vadd.f32 %v1285, %v1322
        %v1339 = vadd.f32 %v1286, %v1323
        %v1340 = vadd.f32 %v1287, %v1324
        %v1341 = vadd.f32 %v1288, %v1325
        %v1342 = vadd.f32 %v1289, %v1326
        %v1343 = vadd.f32 %v1290, %v1327
        %v1344 = vadd.f32 %v1291, %v1328
        %v1345 = vadd.f32 %v1292, %v1329
        %v1346 = vadd.f32 %v1293, %v1330
        %v1347 = vadd.f32 %v1294, %v1331
        %v1348 = vadd.f32 %v1295, %v1332
        %v1349 = vadd.f32 %v1296, %v1333
        %v1350 = vadd.f32 %v1297, %v1334
        %v1351 = vadd.f32 %v1298, %v1335
        %v1352 = vadd.f32 %v1299, %v1336
        %v1353 = vld [vmem:[%s1139 + $0x4] sm:$0xff]
        %v1354 = vld [vmem:[%s1139 + $0xc] sm:$0xff]
        %v1355 = vld [vmem:[%s1139 + $0x1c] sm:$0xff]
        %v1356 = vld [vmem:[%s1139 + $0x24] sm:$0xff]
        %v1357 = vld [vmem:[%s1139 + $0x34] sm:$0xff]
        %v1358 = vld [vmem:[%s1139 + $0x3c] sm:$0xff]
        %v1359 = vld [vmem:[%s1139 + $0x4c] sm:$0xff]
        %v1360 = vld [vmem:[%s1139 + $0x54] sm:$0xff]
        %v1361 = vld [vmem:[%s1139 + $0x64] sm:$0xff]
        %v1362 = vld [vmem:[%s1139 + $0x6c] sm:$0xff]
        %v1363 = vld [vmem:[%s1139 + $0x7c] sm:$0xff]
        %v1364 = vld [vmem:[%s1139 + $0x84] sm:$0xff]
        %v1365 = vld [vmem:[%s1139 + $0x94] sm:$0xff]
        %v1366 = vld [vmem:[%s1139 + $0x9c] sm:$0xff]
        %v1367 = vld [vmem:[%s1139 + $0xac] sm:$0xff]
        %v1368 = vld [vmem:[%s1139 + $0xb4] sm:$0xff]
        %v1369 = vld [vmem:[%s1156 + $0x4] sm:$0x1]
        %v1370 = vlaneseq
        %v1371 = vshrl.u32 %v1370, 7
        %v1372 = vsub.s32 0, %v1371
        %v1373 = vrot.slane %v1369, %v1372
        %v1374 = vmul.f32 %v1353, %v1373
        %v1375 = vmul.f32 %v1354, %v1373
        %v1376 = vmul.f32 %v1355, %v1373
        %v1377 = vmul.f32 %v1356, %v1373
        %v1378 = vmul.f32 %v1357, %v1373
        %v1379 = vmul.f32 %v1358, %v1373
        %v1380 = vmul.f32 %v1359, %v1373
        %v1381 = vmul.f32 %v1360, %v1373
        %v1382 = vmul.f32 %v1361, %v1373
        %v1383 = vmul.f32 %v1362, %v1373
        %v1384 = vmul.f32 %v1363, %v1373
        %v1385 = vmul.f32 %v1364, %v1373
        %v1386 = vmul.f32 %v1365, %v1373
        %v1387 = vmul.f32 %v1366, %v1373
        %v1388 = vmul.f32 %v1367, %v1373
        %v1389 = vmul.f32 %v1368, %v1373
        %v1390 = vadd.f32 %v1337, %v1374
        %v1391 = vadd.f32 %v1338, %v1375
        %v1392 = vadd.f32 %v1339, %v1376
        %v1393 = vadd.f32 %v1340, %v1377
        %v1394 = vadd.f32 %v1341, %v1378
        %v1395 = vadd.f32 %v1342, %v1379
        %v1396 = vadd.f32 %v1343, %v1380
        %v1397 = vadd.f32 %v1344, %v1381
        %v1398 = vadd.f32 %v1345, %v1382
        %v1399 = vadd.f32 %v1346, %v1383
        %v1400 = vadd.f32 %v1347, %v1384
        %v1401 = vadd.f32 %v1348, %v1385
        %v1402 = vadd.f32 %v1349, %v1386
        %v1403 = vadd.f32 %v1350, %v1387
        %v1404 = vadd.f32 %v1351, %v1388
        %v1405 = vadd.f32 %v1352, %v1389
        %v1406 = vld [vmem:[%s1139 + $0x5] sm:$0xff]
        %v1407 = vld [vmem:[%s1139 + $0xd] sm:$0xff]
        %v1408 = vld [vmem:[%s1139 + $0x1d] sm:$0xff]
        %v1409 = vld [vmem:[%s1139 + $0x25] sm:$0xff]
        %v1410 = vld [vmem:[%s1139 + $0x35] sm:$0xff]
        %v1411 = vld [vmem:[%s1139 + $0x3d] sm:$0xff]
        %v1412 = vld [vmem:[%s1139 + $0x4d] sm:$0xff]
        %v1413 = vld [vmem:[%s1139 + $0x55] sm:$0xff]
        %v1414 = vld [vmem:[%s1139 + $0x65] sm:$0xff]
        %v1415 = vld [vmem:[%s1139 + $0x6d] sm:$0xff]
        %v1416 = vld [vmem:[%s1139 + $0x7d] sm:$0xff]
        %v1417 = vld [vmem:[%s1139 + $0x85] sm:$0xff]
        %v1418 = vld [vmem:[%s1139 + $0x95] sm:$0xff]
        %v1419 = vld [vmem:[%s1139 + $0x9d] sm:$0xff]
        %v1420 = vld [vmem:[%s1139 + $0xad] sm:$0xff]
        %v1421 = vld [vmem:[%s1139 + $0xb5] sm:$0xff]
        %v1422 = vld [vmem:[%s1156 + $0x5] sm:$0x1]
        %v1423 = vlaneseq
        %v1424 = vshrl.u32 %v1423, 7
        %v1425 = vsub.s32 0, %v1424
        %v1426 = vrot.slane %v1422, %v1425
        %v1427 = vmul.f32 %v1406, %v1426
        %v1428 = vmul.f32 %v1407, %v1426
        %v1429 = vmul.f32 %v1408, %v1426
        %v1430 = vmul.f32 %v1409, %v1426
        %v1431 = vmul.f32 %v1410, %v1426
        %v1432 = vmul.f32 %v1411, %v1426
        %v1433 = vmul.f32 %v1412, %v1426
        %v1434 = vmul.f32 %v1413, %v1426
        %v1435 = vmul.f32 %v1414, %v1426
        %v1436 = vmul.f32 %v1415, %v1426
        %v1437 = vmul.f32 %v1416, %v1426
        %v1438 = vmul.f32 %v1417, %v1426
        %v1439 = vmul.f32 %v1418, %v1426
        %v1440 = vmul.f32 %v1419, %v1426
        %v1441 = vmul.f32 %v1420, %v1426
        %v1442 = vmul.f32 %v1421, %v1426
        %v1443 = vadd.f32 %v1390, %v1427
        %v1444 = vadd.f32 %v1391, %v1428
        %v1445 = vadd.f32 %v1392, %v1429
        %v1446 = vadd.f32 %v1393, %v1430
        %v1447 = vadd.f32 %v1394, %v1431
        %v1448 = vadd.f32 %v1395, %v1432
        %v1449 = vadd.f32 %v1396, %v1433
        %v1450 = vadd.f32 %v1397, %v1434
        %v1451 = vadd.f32 %v1398, %v1435
        %v1452 = vadd.f32 %v1399, %v1436
        %v1453 = vadd.f32 %v1400, %v1437
        %v1454 = vadd.f32 %v1401, %v1438
        %v1455 = vadd.f32 %v1402, %v1439
        %v1456 = vadd.f32 %v1403, %v1440
        %v1457 = vadd.f32 %v1404, %v1441
        %v1458 = vadd.f32 %v1405, %v1442
        %v1459 = vld [vmem:[%s1139 + $0x6] sm:$0xff]
        %v1460 = vld [vmem:[%s1139 + $0xe] sm:$0xff]
        %v1461 = vld [vmem:[%s1139 + $0x1e] sm:$0xff]
        %v1462 = vld [vmem:[%s1139 + $0x26] sm:$0xff]
        %v1463 = vld [vmem:[%s1139 + $0x36] sm:$0xff]
        %v1464 = vld [vmem:[%s1139 + $0x3e] sm:$0xff]
        %v1465 = vld [vmem:[%s1139 + $0x4e] sm:$0xff]
        %v1466 = vld [vmem:[%s1139 + $0x56] sm:$0xff]
        %v1467 = vld [vmem:[%s1139 + $0x66] sm:$0xff]
        %v1468 = vld [vmem:[%s1139 + $0x6e] sm:$0xff]
        %v1469 = vld [vmem:[%s1139 + $0x7e] sm:$0xff]
        %v1470 = vld [vmem:[%s1139 + $0x86] sm:$0xff]
        %v1471 = vld [vmem:[%s1139 + $0x96] sm:$0xff]
        %v1472 = vld [vmem:[%s1139 + $0x9e] sm:$0xff]
        %v1473 = vld [vmem:[%s1139 + $0xae] sm:$0xff]
        %v1474 = vld [vmem:[%s1139 + $0xb6] sm:$0xff]
        %v1475 = vld [vmem:[%s1156 + $0x6] sm:$0x1]
        %v1476 = vlaneseq
        %v1477 = vshrl.u32 %v1476, 7
        %v1478 = vsub.s32 0, %v1477
        %v1479 = vrot.slane %v1475, %v1478
        %v1480 = vmul.f32 %v1459, %v1479
        %v1481 = vmul.f32 %v1460, %v1479
        %v1482 = vmul.f32 %v1461, %v1479
        %v1483 = vmul.f32 %v1462, %v1479
        %v1484 = vmul.f32 %v1463, %v1479
        %v1485 = vmul.f32 %v1464, %v1479
        %v1486 = vmul.f32 %v1465, %v1479
        %v1487 = vmul.f32 %v1466, %v1479
        %v1488 = vmul.f32 %v1467, %v1479
        %v1489 = vmul.f32 %v1468, %v1479
        %v1490 = vmul.f32 %v1469, %v1479
        %v1491 = vmul.f32 %v1470, %v1479
        %v1492 = vmul.f32 %v1471, %v1479
        %v1493 = vmul.f32 %v1472, %v1479
        %v1494 = vmul.f32 %v1473, %v1479
        %v1495 = vmul.f32 %v1474, %v1479
        %v1496 = vadd.f32 %v1443, %v1480
        %v1497 = vadd.f32 %v1444, %v1481
        %v1498 = vadd.f32 %v1445, %v1482
        %v1499 = vadd.f32 %v1446, %v1483
        %v1500 = vadd.f32 %v1447, %v1484
        %v1501 = vadd.f32 %v1448, %v1485
        %v1502 = vadd.f32 %v1449, %v1486
        %v1503 = vadd.f32 %v1450, %v1487
        %v1504 = vadd.f32 %v1451, %v1488
        %v1505 = vadd.f32 %v1452, %v1489
        %v1506 = vadd.f32 %v1453, %v1490
        %v1507 = vadd.f32 %v1454, %v1491
        %v1508 = vadd.f32 %v1455, %v1492
        %v1509 = vadd.f32 %v1456, %v1493
        %v1510 = vadd.f32 %v1457, %v1494
        %v1511 = vadd.f32 %v1458, %v1495
        %s1512 = sadd.s32 %s388, 3
        %s1513 = smul.u32 %s1512, 24
        %s1514 = scalar_lea.vmem [#allocation2], %s1513
        %v1515 = vld [vmem:[%s1514] sm:$0xff]
        %v1516 = vld [vmem:[%s1514 + $0x8] sm:$0xff]
        %v1517 = vld [vmem:[%s1514 + $0x18] sm:$0xff]
        %v1518 = vld [vmem:[%s1514 + $0x20] sm:$0xff]
        %v1519 = vld [vmem:[%s1514 + $0x30] sm:$0xff]
        %v1520 = vld [vmem:[%s1514 + $0x38] sm:$0xff]
        %v1521 = vld [vmem:[%s1514 + $0x48] sm:$0xff]
        %v1522 = vld [vmem:[%s1514 + $0x50] sm:$0xff]
        %v1523 = vld [vmem:[%s1514 + $0x60] sm:$0xff]
        %v1524 = vld [vmem:[%s1514 + $0x68] sm:$0xff]
        %v1525 = vld [vmem:[%s1514 + $0x78] sm:$0xff]
        %v1526 = vld [vmem:[%s1514 + $0x80] sm:$0xff]
        %v1527 = vld [vmem:[%s1514 + $0x90] sm:$0xff]
        %v1528 = vld [vmem:[%s1514 + $0x98] sm:$0xff]
        %v1529 = vld [vmem:[%s1514 + $0xa8] sm:$0xff]
        %v1530 = vld [vmem:[%s1514 + $0xb0] sm:$0xff]
        %s1531 = scalar_lea.vmem %s221, 24
        %v1532 = vld [vmem:[%s1531] sm:$0x1]
        %v1533 = vlaneseq
        %v1534 = vshrl.u32 %v1533, 7
        %v1535 = vsub.s32 0, %v1534
        %v1536 = vrot.slane %v1532, %v1535
        %v1537 = vmul.f32 %v1515, %v1536
        %v1538 = vmul.f32 %v1516, %v1536
        %v1539 = vmul.f32 %v1517, %v1536
        %v1540 = vmul.f32 %v1518, %v1536
        %v1541 = vmul.f32 %v1519, %v1536
        %v1542 = vmul.f32 %v1520, %v1536
        %v1543 = vmul.f32 %v1521, %v1536
        %v1544 = vmul.f32 %v1522, %v1536
        %v1545 = vmul.f32 %v1523, %v1536
        %v1546 = vmul.f32 %v1524, %v1536
        %v1547 = vmul.f32 %v1525, %v1536
        %v1548 = vmul.f32 %v1526, %v1536
        %v1549 = vmul.f32 %v1527, %v1536
        %v1550 = vmul.f32 %v1528, %v1536
        %v1551 = vmul.f32 %v1529, %v1536
        %v1552 = vmul.f32 %v1530, %v1536
        %v1553 = vadd.f32 %v1496, %v1537
        %v1554 = vadd.f32 %v1497, %v1538
        %v1555 = vadd.f32 %v1498, %v1539
        %v1556 = vadd.f32 %v1499, %v1540
        %v1557 = vadd.f32 %v1500, %v1541
        %v1558 = vadd.f32 %v1501, %v1542
        %v1559 = vadd.f32 %v1502, %v1543
        %v1560 = vadd.f32 %v1503, %v1544
        %v1561 = vadd.f32 %v1504, %v1545
        %v1562 = vadd.f32 %v1505, %v1546
        %v1563 = vadd.f32 %v1506, %v1547
        %v1564 = vadd.f32 %v1507, %v1548
        %v1565 = vadd.f32 %v1508, %v1549
        %v1566 = vadd.f32 %v1509, %v1550
        %v1567 = vadd.f32 %v1510, %v1551
        %v1568 = vadd.f32 %v1511, %v1552
        %v1569 = vld [vmem:[%s1514 + $0x1] sm:$0xff]
        %v1570 = vld [vmem:[%s1514 + $0x9] sm:$0xff]
        %v1571 = vld [vmem:[%s1514 + $0x19] sm:$0xff]
        %v1572 = vld [vmem:[%s1514 + $0x21] sm:$0xff]
        %v1573 = vld [vmem:[%s1514 + $0x31] sm:$0xff]
        %v1574 = vld [vmem:[%s1514 + $0x39] sm:$0xff]
        %v1575 = vld [vmem:[%s1514 + $0x49] sm:$0xff]
        %v1576 = vld [vmem:[%s1514 + $0x51] sm:$0xff]
        %v1577 = vld [vmem:[%s1514 + $0x61] sm:$0xff]
        %v1578 = vld [vmem:[%s1514 + $0x69] sm:$0xff]
        %v1579 = vld [vmem:[%s1514 + $0x79] sm:$0xff]
        %v1580 = vld [vmem:[%s1514 + $0x81] sm:$0xff]
        %v1581 = vld [vmem:[%s1514 + $0x91] sm:$0xff]
        %v1582 = vld [vmem:[%s1514 + $0x99] sm:$0xff]
        %v1583 = vld [vmem:[%s1514 + $0xa9] sm:$0xff]
        %v1584 = vld [vmem:[%s1514 + $0xb1] sm:$0xff]
        %v1585 = vld [vmem:[%s1531 + $0x1] sm:$0x1]
        %v1586 = vlaneseq
        %v1587 = vshrl.u32 %v1586, 7
        %v1588 = vsub.s32 0, %v1587
        %v1589 = vrot.slane %v1585, %v1588
        %v1590 = vmul.f32 %v1569, %v1589
        %v1591 = vmul.f32 %v1570, %v1589
        %v1592 = vmul.f32 %v1571, %v1589
        %v1593 = vmul.f32 %v1572, %v1589
        %v1594 = vmul.f32 %v1573, %v1589
        %v1595 = vmul.f32 %v1574, %v1589
        %v1596 = vmul.f32 %v1575, %v1589
        %v1597 = vmul.f32 %v1576, %v1589
        %v1598 = vmul.f32 %v1577, %v1589
        %v1599 = vmul.f32 %v1578, %v1589
        %v1600 = vmul.f32 %v1579, %v1589
        %v1601 = vmul.f32 %v1580, %v1589
        %v1602 = vmul.f32 %v1581, %v1589
        %v1603 = vmul.f32 %v1582, %v1589
        %v1604 = vmul.f32 %v1583, %v1589
        %v1605 = vmul.f32 %v1584, %v1589
        %v1606 = vadd.f32 %v1553, %v1590
        %v1607 = vadd.f32 %v1554, %v1591
        %v1608 = vadd.f32 %v1555, %v1592
        %v1609 = vadd.f32 %v1556, %v1593
        %v1610 = vadd.f32 %v1557, %v1594
        %v1611 = vadd.f32 %v1558, %v1595
        %v1612 = vadd.f32 %v1559, %v1596
        %v1613 = vadd.f32 %v1560, %v1597
        %v1614 = vadd.f32 %v1561, %v1598
        %v1615 = vadd.f32 %v1562, %v1599
        %v1616 = vadd.f32 %v1563, %v1600
        %v1617 = vadd.f32 %v1564, %v1601
        %v1618 = vadd.f32 %v1565, %v1602
        %v1619 = vadd.f32 %v1566, %v1603
        %v1620 = vadd.f32 %v1567, %v1604
        %v1621 = vadd.f32 %v1568, %v1605
        %v1622 = vld [vmem:[%s1514 + $0x2] sm:$0xff]
        %v1623 = vld [vmem:[%s1514 + $0xa] sm:$0xff]
        %v1624 = vld [vmem:[%s1514 + $0x1a] sm:$0xff]
        %v1625 = vld [vmem:[%s1514 + $0x22] sm:$0xff]
        %v1626 = vld [vmem:[%s1514 + $0x32] sm:$0xff]
        %v1627 = vld [vmem:[%s1514 + $0x3a] sm:$0xff]
        %v1628 = vld [vmem:[%s1514 + $0x4a] sm:$0xff]
        %v1629 = vld [vmem:[%s1514 + $0x52] sm:$0xff]
        %v1630 = vld [vmem:[%s1514 + $0x62] sm:$0xff]
        %v1631 = vld [vmem:[%s1514 + $0x6a] sm:$0xff]
        %v1632 = vld [vmem:[%s1514 + $0x7a] sm:$0xff]
        %v1633 = vld [vmem:[%s1514 + $0x82] sm:$0xff]
        %v1634 = vld [vmem:[%s1514 + $0x92] sm:$0xff]
        %v1635 = vld [vmem:[%s1514 + $0x9a] sm:$0xff]
        %v1636 = vld [vmem:[%s1514 + $0xaa] sm:$0xff]
        %v1637 = vld [vmem:[%s1514 + $0xb2] sm:$0xff]
        %v1638 = vld [vmem:[%s1531 + $0x2] sm:$0x1]
        %v1639 = vlaneseq
        %v1640 = vshrl.u32 %v1639, 7
        %v1641 = vsub.s32 0, %v1640
        %v1642 = vrot.slane %v1638, %v1641
        %v1643 = vmul.f32 %v1622, %v1642
        %v1644 = vmul.f32 %v1623, %v1642
        %v1645 = vmul.f32 %v1624, %v1642
        %v1646 = vmul.f32 %v1625, %v1642
        %v1647 = vmul.f32 %v1626, %v1642
        %v1648 = vmul.f32 %v1627, %v1642
        %v1649 = vmul.f32 %v1628, %v1642
        %v1650 = vmul.f32 %v1629, %v1642
        %v1651 = vmul.f32 %v1630, %v1642
        %v1652 = vmul.f32 %v1631, %v1642
        %v1653 = vmul.f32 %v1632, %v1642
        %v1654 = vmul.f32 %v1633, %v1642
        %v1655 = vmul.f32 %v1634, %v1642
        %v1656 = vmul.f32 %v1635, %v1642
        %v1657 = vmul.f32 %v1636, %v1642
        %v1658 = vmul.f32 %v1637, %v1642
        %v1659 = vadd.f32 %v1606, %v1643
        %v1660 = vadd.f32 %v1607, %v1644
        %v1661 = vadd.f32 %v1608, %v1645
        %v1662 = vadd.f32 %v1609, %v1646
        %v1663 = vadd.f32 %v1610, %v1647
        %v1664 = vadd.f32 %v1611, %v1648
        %v1665 = vadd.f32 %v1612, %v1649
        %v1666 = vadd.f32 %v1613, %v1650
        %v1667 = vadd.f32 %v1614, %v1651
        %v1668 = vadd.f32 %v1615, %v1652
        %v1669 = vadd.f32 %v1616, %v1653
        %v1670 = vadd.f32 %v1617, %v1654
        %v1671 = vadd.f32 %v1618, %v1655
        %v1672 = vadd.f32 %v1619, %v1656
        %v1673 = vadd.f32 %v1620, %v1657
        %v1674 = vadd.f32 %v1621, %v1658
        %v1675 = vld [vmem:[%s1514 + $0x3] sm:$0xff]
        %v1676 = vld [vmem:[%s1514 + $0xb] sm:$0xff]
        %v1677 = vld [vmem:[%s1514 + $0x1b] sm:$0xff]
        %v1678 = vld [vmem:[%s1514 + $0x23] sm:$0xff]
        %v1679 = vld [vmem:[%s1514 + $0x33] sm:$0xff]
        %v1680 = vld [vmem:[%s1514 + $0x3b] sm:$0xff]
        %v1681 = vld [vmem:[%s1514 + $0x4b] sm:$0xff]
        %v1682 = vld [vmem:[%s1514 + $0x53] sm:$0xff]
        %v1683 = vld [vmem:[%s1514 + $0x63] sm:$0xff]
        %v1684 = vld [vmem:[%s1514 + $0x6b] sm:$0xff]
        %v1685 = vld [vmem:[%s1514 + $0x7b] sm:$0xff]
        %v1686 = vld [vmem:[%s1514 + $0x83] sm:$0xff]
        %v1687 = vld [vmem:[%s1514 + $0x93] sm:$0xff]
        %v1688 = vld [vmem:[%s1514 + $0x9b] sm:$0xff]
        %v1689 = vld [vmem:[%s1514 + $0xab] sm:$0xff]
        %v1690 = vld [vmem:[%s1514 + $0xb3] sm:$0xff]
        %v1691 = vld [vmem:[%s1531 + $0x3] sm:$0x1]
        %v1692 = vlaneseq
        %v1693 = vshrl.u32 %v1692, 7
        %v1694 = vsub.s32 0, %v1693
        %v1695 = vrot.slane %v1691, %v1694
        %v1696 = vmul.f32 %v1675, %v1695
        %v1697 = vmul.f32 %v1676, %v1695
        %v1698 = vmul.f32 %v1677, %v1695
        %v1699 = vmul.f32 %v1678, %v1695
        %v1700 = vmul.f32 %v1679, %v1695
        %v1701 = vmul.f32 %v1680, %v1695
        %v1702 = vmul.f32 %v1681, %v1695
        %v1703 = vmul.f32 %v1682, %v1695
        %v1704 = vmul.f32 %v1683, %v1695
        %v1705 = vmul.f32 %v1684, %v1695
        %v1706 = vmul.f32 %v1685, %v1695
        %v1707 = vmul.f32 %v1686, %v1695
        %v1708 = vmul.f32 %v1687, %v1695
        %v1709 = vmul.f32 %v1688, %v1695
        %v1710 = vmul.f32 %v1689, %v1695
        %v1711 = vmul.f32 %v1690, %v1695
        %v1712 = vadd.f32 %v1659, %v1696
        %v1713 = vadd.f32 %v1660, %v1697
        %v1714 = vadd.f32 %v1661, %v1698
        %v1715 = vadd.f32 %v1662, %v1699
        %v1716 = vadd.f32 %v1663, %v1700
        %v1717 = vadd.f32 %v1664, %v1701
        %v1718 = vadd.f32 %v1665, %v1702
        %v1719 = vadd.f32 %v1666, %v1703
        %v1720 = vadd.f32 %v1667, %v1704
        %v1721 = vadd.f32 %v1668, %v1705
        %v1722 = vadd.f32 %v1669, %v1706
        %v1723 = vadd.f32 %v1670, %v1707
        %v1724 = vadd.f32 %v1671, %v1708
        %v1725 = vadd.f32 %v1672, %v1709
        %v1726 = vadd.f32 %v1673, %v1710
        %v1727 = vadd.f32 %v1674, %v1711
        %v1728 = vld [vmem:[%s1514 + $0x4] sm:$0xff]
        %v1729 = vld [vmem:[%s1514 + $0xc] sm:$0xff]
        %v1730 = vld [vmem:[%s1514 + $0x1c] sm:$0xff]
        %v1731 = vld [vmem:[%s1514 + $0x24] sm:$0xff]
        %v1732 = vld [vmem:[%s1514 + $0x34] sm:$0xff]
        %v1733 = vld [vmem:[%s1514 + $0x3c] sm:$0xff]
        %v1734 = vld [vmem:[%s1514 + $0x4c] sm:$0xff]
        %v1735 = vld [vmem:[%s1514 + $0x54] sm:$0xff]
        %v1736 = vld [vmem:[%s1514 + $0x64] sm:$0xff]
        %v1737 = vld [vmem:[%s1514 + $0x6c] sm:$0xff]
        %v1738 = vld [vmem:[%s1514 + $0x7c] sm:$0xff]
        %v1739 = vld [vmem:[%s1514 + $0x84] sm:$0xff]
        %v1740 = vld [vmem:[%s1514 + $0x94] sm:$0xff]
        %v1741 = vld [vmem:[%s1514 + $0x9c] sm:$0xff]
        %v1742 = vld [vmem:[%s1514 + $0xac] sm:$0xff]
        %v1743 = vld [vmem:[%s1514 + $0xb4] sm:$0xff]
        %v1744 = vld [vmem:[%s1531 + $0x4] sm:$0x1]
        %v1745 = vlaneseq
        %v1746 = vshrl.u32 %v1745, 7
        %v1747 = vsub.s32 0, %v1746
        %v1748 = vrot.slane %v1744, %v1747
        %v1749 = vmul.f32 %v1728, %v1748
        %v1750 = vmul.f32 %v1729, %v1748
        %v1751 = vmul.f32 %v1730, %v1748
        %v1752 = vmul.f32 %v1731, %v1748
        %v1753 = vmul.f32 %v1732, %v1748
        %v1754 = vmul.f32 %v1733, %v1748
        %v1755 = vmul.f32 %v1734, %v1748
        %v1756 = vmul.f32 %v1735, %v1748
        %v1757 = vmul.f32 %v1736, %v1748
        %v1758 = vmul.f32 %v1737, %v1748
        %v1759 = vmul.f32 %v1738, %v1748
        %v1760 = vmul.f32 %v1739, %v1748
        %v1761 = vmul.f32 %v1740, %v1748
        %v1762 = vmul.f32 %v1741, %v1748
        %v1763 = vmul.f32 %v1742, %v1748
        %v1764 = vmul.f32 %v1743, %v1748
        %v1765 = vadd.f32 %v1712, %v1749
        %v1766 = vadd.f32 %v1713, %v1750
        %v1767 = vadd.f32 %v1714, %v1751
        %v1768 = vadd.f32 %v1715, %v1752
        %v1769 = vadd.f32 %v1716, %v1753
        %v1770 = vadd.f32 %v1717, %v1754
        %v1771 = vadd.f32 %v1718, %v1755
        %v1772 = vadd.f32 %v1719, %v1756
        %v1773 = vadd.f32 %v1720, %v1757
        %v1774 = vadd.f32 %v1721, %v1758
        %v1775 = vadd.f32 %v1722, %v1759
        %v1776 = vadd.f32 %v1723, %v1760
        %v1777 = vadd.f32 %v1724, %v1761
        %v1778 = vadd.f32 %v1725, %v1762
        %v1779 = vadd.f32 %v1726, %v1763
        %v1780 = vadd.f32 %v1727, %v1764
        %v1781 = vld [vmem:[%s1514 + $0x5] sm:$0xff]
        %v1782 = vld [vmem:[%s1514 + $0xd] sm:$0xff]
        %v1783 = vld [vmem:[%s1514 + $0x1d] sm:$0xff]
        %v1784 = vld [vmem:[%s1514 + $0x25] sm:$0xff]
        %v1785 = vld [vmem:[%s1514 + $0x35] sm:$0xff]
        %v1786 = vld [vmem:[%s1514 + $0x3d] sm:$0xff]
        %v1787 = vld [vmem:[%s1514 + $0x4d] sm:$0xff]
        %v1788 = vld [vmem:[%s1514 + $0x55] sm:$0xff]
        %v1789 = vld [vmem:[%s1514 + $0x65] sm:$0xff]
        %v1790 = vld [vmem:[%s1514 + $0x6d] sm:$0xff]
        %v1791 = vld [vmem:[%s1514 + $0x7d] sm:$0xff]
        %v1792 = vld [vmem:[%s1514 + $0x85] sm:$0xff]
        %v1793 = vld [vmem:[%s1514 + $0x95] sm:$0xff]
        %v1794 = vld [vmem:[%s1514 + $0x9d] sm:$0xff]
        %v1795 = vld [vmem:[%s1514 + $0xad] sm:$0xff]
        %v1796 = vld [vmem:[%s1514 + $0xb5] sm:$0xff]
        %v1797 = vld [vmem:[%s1531 + $0x5] sm:$0x1]
        %v1798 = vlaneseq
        %v1799 = vshrl.u32 %v1798, 7
        %v1800 = vsub.s32 0, %v1799
        %v1801 = vrot.slane %v1797, %v1800
        %v1802 = vmul.f32 %v1781, %v1801
        %v1803 = vmul.f32 %v1782, %v1801
        %v1804 = vmul.f32 %v1783, %v1801
        %v1805 = vmul.f32 %v1784, %v1801
        %v1806 = vmul.f32 %v1785, %v1801
        %v1807 = vmul.f32 %v1786, %v1801
        %v1808 = vmul.f32 %v1787, %v1801
        %v1809 = vmul.f32 %v1788, %v1801
        %v1810 = vmul.f32 %v1789, %v1801
        %v1811 = vmul.f32 %v1790, %v1801
        %v1812 = vmul.f32 %v1791, %v1801
        %v1813 = vmul.f32 %v1792, %v1801
        %v1814 = vmul.f32 %v1793, %v1801
        %v1815 = vmul.f32 %v1794, %v1801
        %v1816 = vmul.f32 %v1795, %v1801
        %v1817 = vmul.f32 %v1796, %v1801
        %v1818 = vadd.f32 %v1765, %v1802
        %v1819 = vadd.f32 %v1766, %v1803
        %v1820 = vadd.f32 %v1767, %v1804
        %v1821 = vadd.f32 %v1768, %v1805
        %v1822 = vadd.f32 %v1769, %v1806
        %v1823 = vadd.f32 %v1770, %v1807
        %v1824 = vadd.f32 %v1771, %v1808
        %v1825 = vadd.f32 %v1772, %v1809
        %v1826 = vadd.f32 %v1773, %v1810
        %v1827 = vadd.f32 %v1774, %v1811
        %v1828 = vadd.f32 %v1775, %v1812
        %v1829 = vadd.f32 %v1776, %v1813
        %v1830 = vadd.f32 %v1777, %v1814
        %v1831 = vadd.f32 %v1778, %v1815
        %v1832 = vadd.f32 %v1779, %v1816
        %v1833 = vadd.f32 %v1780, %v1817
        %v1834 = vld [vmem:[%s1514 + $0x6] sm:$0xff]
        %v1835 = vld [vmem:[%s1514 + $0xe] sm:$0xff]
        %v1836 = vld [vmem:[%s1514 + $0x1e] sm:$0xff]
        %v1837 = vld [vmem:[%s1514 + $0x26] sm:$0xff]
        %v1838 = vld [vmem:[%s1514 + $0x36] sm:$0xff]
        %v1839 = vld [vmem:[%s1514 + $0x3e] sm:$0xff]
        %v1840 = vld [vmem:[%s1514 + $0x4e] sm:$0xff]
        %v1841 = vld [vmem:[%s1514 + $0x56] sm:$0xff]
        %v1842 = vld [vmem:[%s1514 + $0x66] sm:$0xff]
        %v1843 = vld [vmem:[%s1514 + $0x6e] sm:$0xff]
        %v1844 = vld [vmem:[%s1514 + $0x7e] sm:$0xff]
        %v1845 = vld [vmem:[%s1514 + $0x86] sm:$0xff]
        %v1846 = vld [vmem:[%s1514 + $0x96] sm:$0xff]
        %v1847 = vld [vmem:[%s1514 + $0x9e] sm:$0xff]
        %v1848 = vld [vmem:[%s1514 + $0xae] sm:$0xff]
        %v1849 = vld [vmem:[%s1514 + $0xb6] sm:$0xff]
        %v1850 = vld [vmem:[%s1531 + $0x6] sm:$0x1]
        %v1851 = vlaneseq
        %v1852 = vshrl.u32 %v1851, 7
        %v1853 = vsub.s32 0, %v1852
        %v1854 = vrot.slane %v1850, %v1853
        %v1855 = vmul.f32 %v1834, %v1854
        %v1856 = vmul.f32 %v1835, %v1854
        %v1857 = vmul.f32 %v1836, %v1854
        %v1858 = vmul.f32 %v1837, %v1854
        %v1859 = vmul.f32 %v1838, %v1854
        %v1860 = vmul.f32 %v1839, %v1854
        %v1861 = vmul.f32 %v1840, %v1854
        %v1862 = vmul.f32 %v1841, %v1854
        %v1863 = vmul.f32 %v1842, %v1854
        %v1864 = vmul.f32 %v1843, %v1854
        %v1865 = vmul.f32 %v1844, %v1854
        %v1866 = vmul.f32 %v1845, %v1854
        %v1867 = vmul.f32 %v1846, %v1854
        %v1868 = vmul.f32 %v1847, %v1854
        %v1869 = vmul.f32 %v1848, %v1854
        %v1870 = vmul.f32 %v1849, %v1854
        %v1871 = vadd.f32 %v1818, %v1855
        %v1872 = vadd.f32 %v1819, %v1856
        %v1873 = vadd.f32 %v1820, %v1857
        %v1874 = vadd.f32 %v1821, %v1858
        %v1875 = vadd.f32 %v1822, %v1859
        %v1876 = vadd.f32 %v1823, %v1860
        %v1877 = vadd.f32 %v1824, %v1861
        %v1878 = vadd.f32 %v1825, %v1862
        %v1879 = vadd.f32 %v1826, %v1863
        %v1880 = vadd.f32 %v1827, %v1864
        %v1881 = vadd.f32 %v1828, %v1865
        %v1882 = vadd.f32 %v1829, %v1866
        %v1883 = vadd.f32 %v1830, %v1867
        %v1884 = vadd.f32 %v1831, %v1868
        %v1885 = vadd.f32 %v1832, %v1869
        %v1886 = vadd.f32 %v1833, %v1870
        %s1887 = sadd.s32 %s388, 4
        %s1888 = smul.u32 %s1887, 24
        %s1889 = scalar_lea.vmem [#allocation2], %s1888
        %v1890 = vld [vmem:[%s1889] sm:$0xff]
        %v1891 = vld [vmem:[%s1889 + $0x8] sm:$0xff]
        %v1892 = vld [vmem:[%s1889 + $0x18] sm:$0xff]
        %v1893 = vld [vmem:[%s1889 + $0x20] sm:$0xff]
        %v1894 = vld [vmem:[%s1889 + $0x30] sm:$0xff]
        %v1895 = vld [vmem:[%s1889 + $0x38] sm:$0xff]
        %v1896 = vld [vmem:[%s1889 + $0x48] sm:$0xff]
        %v1897 = vld [vmem:[%s1889 + $0x50] sm:$0xff]
        %v1898 = vld [vmem:[%s1889 + $0x60] sm:$0xff]
        %v1899 = vld [vmem:[%s1889 + $0x68] sm:$0xff]
        %v1900 = vld [vmem:[%s1889 + $0x78] sm:$0xff]
        %v1901 = vld [vmem:[%s1889 + $0x80] sm:$0xff]
        %v1902 = vld [vmem:[%s1889 + $0x90] sm:$0xff]
        %v1903 = vld [vmem:[%s1889 + $0x98] sm:$0xff]
        %v1904 = vld [vmem:[%s1889 + $0xa8] sm:$0xff]
        %v1905 = vld [vmem:[%s1889 + $0xb0] sm:$0xff]
        %s1906 = scalar_lea.vmem %s221, 32
        %v1907 = vld [vmem:[%s1906] sm:$0x1]
        %v1908 = vlaneseq
        %v1909 = vshrl.u32 %v1908, 7
        %v1910 = vsub.s32 0, %v1909
        %v1911 = vrot.slane %v1907, %v1910
        %v1912 = vmul.f32 %v1890, %v1911
        %v1913 = vmul.f32 %v1891, %v1911
        %v1914 = vmul.f32 %v1892, %v1911
        %v1915 = vmul.f32 %v1893, %v1911
        %v1916 = vmul.f32 %v1894, %v1911
        %v1917 = vmul.f32 %v1895, %v1911
        %v1918 = vmul.f32 %v1896, %v1911
        %v1919 = vmul.f32 %v1897, %v1911
        %v1920 = vmul.f32 %v1898, %v1911
        %v1921 = vmul.f32 %v1899, %v1911
        %v1922 = vmul.f32 %v1900, %v1911
        %v1923 = vmul.f32 %v1901, %v1911
        %v1924 = vmul.f32 %v1902, %v1911
        %v1925 = vmul.f32 %v1903, %v1911
        %v1926 = vmul.f32 %v1904, %v1911
        %v1927 = vmul.f32 %v1905, %v1911
        %v1928 = vadd.f32 %v1871, %v1912
        %v1929 = vadd.f32 %v1872, %v1913
        %v1930 = vadd.f32 %v1873, %v1914
        %v1931 = vadd.f32 %v1874, %v1915
        %v1932 = vadd.f32 %v1875, %v1916
        %v1933 = vadd.f32 %v1876, %v1917
        %v1934 = vadd.f32 %v1877, %v1918
        %v1935 = vadd.f32 %v1878, %v1919
        %v1936 = vadd.f32 %v1879, %v1920
        %v1937 = vadd.f32 %v1880, %v1921
        %v1938 = vadd.f32 %v1881, %v1922
        %v1939 = vadd.f32 %v1882, %v1923
        %v1940 = vadd.f32 %v1883, %v1924
        %v1941 = vadd.f32 %v1884, %v1925
        %v1942 = vadd.f32 %v1885, %v1926
        %v1943 = vadd.f32 %v1886, %v1927
        %v1944 = vld [vmem:[%s1889 + $0x1] sm:$0xff]
        %v1945 = vld [vmem:[%s1889 + $0x9] sm:$0xff]
        %v1946 = vld [vmem:[%s1889 + $0x19] sm:$0xff]
        %v1947 = vld [vmem:[%s1889 + $0x21] sm:$0xff]
        %v1948 = vld [vmem:[%s1889 + $0x31] sm:$0xff]
        %v1949 = vld [vmem:[%s1889 + $0x39] sm:$0xff]
        %v1950 = vld [vmem:[%s1889 + $0x49] sm:$0xff]
        %v1951 = vld [vmem:[%s1889 + $0x51] sm:$0xff]
        %v1952 = vld [vmem:[%s1889 + $0x61] sm:$0xff]
        %v1953 = vld [vmem:[%s1889 + $0x69] sm:$0xff]
        %v1954 = vld [vmem:[%s1889 + $0x79] sm:$0xff]
        %v1955 = vld [vmem:[%s1889 + $0x81] sm:$0xff]
        %v1956 = vld [vmem:[%s1889 + $0x91] sm:$0xff]
        %v1957 = vld [vmem:[%s1889 + $0x99] sm:$0xff]
        %v1958 = vld [vmem:[%s1889 + $0xa9] sm:$0xff]
        %v1959 = vld [vmem:[%s1889 + $0xb1] sm:$0xff]
        %v1960 = vld [vmem:[%s1906 + $0x1] sm:$0x1]
        %v1961 = vlaneseq
        %v1962 = vshrl.u32 %v1961, 7
        %v1963 = vsub.s32 0, %v1962
        %v1964 = vrot.slane %v1960, %v1963
        %v1965 = vmul.f32 %v1944, %v1964
        %v1966 = vmul.f32 %v1945, %v1964
        %v1967 = vmul.f32 %v1946, %v1964
        %v1968 = vmul.f32 %v1947, %v1964
        %v1969 = vmul.f32 %v1948, %v1964
        %v1970 = vmul.f32 %v1949, %v1964
        %v1971 = vmul.f32 %v1950, %v1964
        %v1972 = vmul.f32 %v1951, %v1964
        %v1973 = vmul.f32 %v1952, %v1964
        %v1974 = vmul.f32 %v1953, %v1964
        %v1975 = vmul.f32 %v1954, %v1964
        %v1976 = vmul.f32 %v1955, %v1964
        %v1977 = vmul.f32 %v1956, %v1964
        %v1978 = vmul.f32 %v1957, %v1964
        %v1979 = vmul.f32 %v1958, %v1964
        %v1980 = vmul.f32 %v1959, %v1964
        %v1981 = vadd.f32 %v1928, %v1965
        %v1982 = vadd.f32 %v1929, %v1966
        %v1983 = vadd.f32 %v1930, %v1967
        %v1984 = vadd.f32 %v1931, %v1968
        %v1985 = vadd.f32 %v1932, %v1969
        %v1986 = vadd.f32 %v1933, %v1970
        %v1987 = vadd.f32 %v1934, %v1971
        %v1988 = vadd.f32 %v1935, %v1972
        %v1989 = vadd.f32 %v1936, %v1973
        %v1990 = vadd.f32 %v1937, %v1974
        %v1991 = vadd.f32 %v1938, %v1975
        %v1992 = vadd.f32 %v1939, %v1976
        %v1993 = vadd.f32 %v1940, %v1977
        %v1994 = vadd.f32 %v1941, %v1978
        %v1995 = vadd.f32 %v1942, %v1979
        %v1996 = vadd.f32 %v1943, %v1980
        %v1997 = vld [vmem:[%s1889 + $0x2] sm:$0xff]
        %v1998 = vld [vmem:[%s1889 + $0xa] sm:$0xff]
        %v1999 = vld [vmem:[%s1889 + $0x1a] sm:$0xff]
        %v2000 = vld [vmem:[%s1889 + $0x22] sm:$0xff]
        %v2001 = vld [vmem:[%s1889 + $0x32] sm:$0xff]
        %v2002 = vld [vmem:[%s1889 + $0x3a] sm:$0xff]
        %v2003 = vld [vmem:[%s1889 + $0x4a] sm:$0xff]
        %v2004 = vld [vmem:[%s1889 + $0x52] sm:$0xff]
        %v2005 = vld [vmem:[%s1889 + $0x62] sm:$0xff]
        %v2006 = vld [vmem:[%s1889 + $0x6a] sm:$0xff]
        %v2007 = vld [vmem:[%s1889 + $0x7a] sm:$0xff]
        %v2008 = vld [vmem:[%s1889 + $0x82] sm:$0xff]
        %v2009 = vld [vmem:[%s1889 + $0x92] sm:$0xff]
        %v2010 = vld [vmem:[%s1889 + $0x9a] sm:$0xff]
        %v2011 = vld [vmem:[%s1889 + $0xaa] sm:$0xff]
        %v2012 = vld [vmem:[%s1889 + $0xb2] sm:$0xff]
        %v2013 = vld [vmem:[%s1906 + $0x2] sm:$0x1]
        %v2014 = vlaneseq
        %v2015 = vshrl.u32 %v2014, 7
        %v2016 = vsub.s32 0, %v2015
        %v2017 = vrot.slane %v2013, %v2016
        %v2018 = vmul.f32 %v1997, %v2017
        %v2019 = vmul.f32 %v1998, %v2017
        %v2020 = vmul.f32 %v1999, %v2017
        %v2021 = vmul.f32 %v2000, %v2017
        %v2022 = vmul.f32 %v2001, %v2017
        %v2023 = vmul.f32 %v2002, %v2017
        %v2024 = vmul.f32 %v2003, %v2017
        %v2025 = vmul.f32 %v2004, %v2017
        %v2026 = vmul.f32 %v2005, %v2017
        %v2027 = vmul.f32 %v2006, %v2017
        %v2028 = vmul.f32 %v2007, %v2017
        %v2029 = vmul.f32 %v2008, %v2017
        %v2030 = vmul.f32 %v2009, %v2017
        %v2031 = vmul.f32 %v2010, %v2017
        %v2032 = vmul.f32 %v2011, %v2017
        %v2033 = vmul.f32 %v2012, %v2017
        %v2034 = vadd.f32 %v1981, %v2018
        %v2035 = vadd.f32 %v1982, %v2019
        %v2036 = vadd.f32 %v1983, %v2020
        %v2037 = vadd.f32 %v1984, %v2021
        %v2038 = vadd.f32 %v1985, %v2022
        %v2039 = vadd.f32 %v1986, %v2023
        %v2040 = vadd.f32 %v1987, %v2024
        %v2041 = vadd.f32 %v1988, %v2025
        %v2042 = vadd.f32 %v1989, %v2026
        %v2043 = vadd.f32 %v1990, %v2027
        %v2044 = vadd.f32 %v1991, %v2028
        %v2045 = vadd.f32 %v1992, %v2029
        %v2046 = vadd.f32 %v1993, %v2030
        %v2047 = vadd.f32 %v1994, %v2031
        %v2048 = vadd.f32 %v1995, %v2032
        %v2049 = vadd.f32 %v1996, %v2033
        %v2050 = vld [vmem:[%s1889 + $0x3] sm:$0xff]
        %v2051 = vld [vmem:[%s1889 + $0xb] sm:$0xff]
        %v2052 = vld [vmem:[%s1889 + $0x1b] sm:$0xff]
        %v2053 = vld [vmem:[%s1889 + $0x23] sm:$0xff]
        %v2054 = vld [vmem:[%s1889 + $0x33] sm:$0xff]
        %v2055 = vld [vmem:[%s1889 + $0x3b] sm:$0xff]
        %v2056 = vld [vmem:[%s1889 + $0x4b] sm:$0xff]
        %v2057 = vld [vmem:[%s1889 + $0x53] sm:$0xff]
        %v2058 = vld [vmem:[%s1889 + $0x63] sm:$0xff]
        %v2059 = vld [vmem:[%s1889 + $0x6b] sm:$0xff]
        %v2060 = vld [vmem:[%s1889 + $0x7b] sm:$0xff]
        %v2061 = vld [vmem:[%s1889 + $0x83] sm:$0xff]
        %v2062 = vld [vmem:[%s1889 + $0x93] sm:$0xff]
        %v2063 = vld [vmem:[%s1889 + $0x9b] sm:$0xff]
        %v2064 = vld [vmem:[%s1889 + $0xab] sm:$0xff]
        %v2065 = vld [vmem:[%s1889 + $0xb3] sm:$0xff]
        %v2066 = vld [vmem:[%s1906 + $0x3] sm:$0x1]
        %v2067 = vlaneseq
        %v2068 = vshrl.u32 %v2067, 7
        %v2069 = vsub.s32 0, %v2068
        %v2070 = vrot.slane %v2066, %v2069
        %v2071 = vmul.f32 %v2050, %v2070
        %v2072 = vmul.f32 %v2051, %v2070
        %v2073 = vmul.f32 %v2052, %v2070
        %v2074 = vmul.f32 %v2053, %v2070
        %v2075 = vmul.f32 %v2054, %v2070
        %v2076 = vmul.f32 %v2055, %v2070
        %v2077 = vmul.f32 %v2056, %v2070
        %v2078 = vmul.f32 %v2057, %v2070
        %v2079 = vmul.f32 %v2058, %v2070
        %v2080 = vmul.f32 %v2059, %v2070
        %v2081 = vmul.f32 %v2060, %v2070
        %v2082 = vmul.f32 %v2061, %v2070
        %v2083 = vmul.f32 %v2062, %v2070
        %v2084 = vmul.f32 %v2063, %v2070
        %v2085 = vmul.f32 %v2064, %v2070
        %v2086 = vmul.f32 %v2065, %v2070
        %v2087 = vadd.f32 %v2034, %v2071
        %v2088 = vadd.f32 %v2035, %v2072
        %v2089 = vadd.f32 %v2036, %v2073
        %v2090 = vadd.f32 %v2037, %v2074
        %v2091 = vadd.f32 %v2038, %v2075
        %v2092 = vadd.f32 %v2039, %v2076
        %v2093 = vadd.f32 %v2040, %v2077
        %v2094 = vadd.f32 %v2041, %v2078
        %v2095 = vadd.f32 %v2042, %v2079
        %v2096 = vadd.f32 %v2043, %v2080
        %v2097 = vadd.f32 %v2044, %v2081
        %v2098 = vadd.f32 %v2045, %v2082
        %v2099 = vadd.f32 %v2046, %v2083
        %v2100 = vadd.f32 %v2047, %v2084
        %v2101 = vadd.f32 %v2048, %v2085
        %v2102 = vadd.f32 %v2049, %v2086
        %v2103 = vld [vmem:[%s1889 + $0x4] sm:$0xff]
        %v2104 = vld [vmem:[%s1889 + $0xc] sm:$0xff]
        %v2105 = vld [vmem:[%s1889 + $0x1c] sm:$0xff]
        %v2106 = vld [vmem:[%s1889 + $0x24] sm:$0xff]
        %v2107 = vld [vmem:[%s1889 + $0x34] sm:$0xff]
        %v2108 = vld [vmem:[%s1889 + $0x3c] sm:$0xff]
        %v2109 = vld [vmem:[%s1889 + $0x4c] sm:$0xff]
        %v2110 = vld [vmem:[%s1889 + $0x54] sm:$0xff]
        %v2111 = vld [vmem:[%s1889 + $0x64] sm:$0xff]
        %v2112 = vld [vmem:[%s1889 + $0x6c] sm:$0xff]
        %v2113 = vld [vmem:[%s1889 + $0x7c] sm:$0xff]
        %v2114 = vld [vmem:[%s1889 + $0x84] sm:$0xff]
        %v2115 = vld [vmem:[%s1889 + $0x94] sm:$0xff]
        %v2116 = vld [vmem:[%s1889 + $0x9c] sm:$0xff]
        %v2117 = vld [vmem:[%s1889 + $0xac] sm:$0xff]
        %v2118 = vld [vmem:[%s1889 + $0xb4] sm:$0xff]
        %v2119 = vld [vmem:[%s1906 + $0x4] sm:$0x1]
        %v2120 = vlaneseq
        %v2121 = vshrl.u32 %v2120, 7
        %v2122 = vsub.s32 0, %v2121
        %v2123 = vrot.slane %v2119, %v2122
        %v2124 = vmul.f32 %v2103, %v2123
        %v2125 = vmul.f32 %v2104, %v2123
        %v2126 = vmul.f32 %v2105, %v2123
        %v2127 = vmul.f32 %v2106, %v2123
        %v2128 = vmul.f32 %v2107, %v2123
        %v2129 = vmul.f32 %v2108, %v2123
        %v2130 = vmul.f32 %v2109, %v2123
        %v2131 = vmul.f32 %v2110, %v2123
        %v2132 = vmul.f32 %v2111, %v2123
        %v2133 = vmul.f32 %v2112, %v2123
        %v2134 = vmul.f32 %v2113, %v2123
        %v2135 = vmul.f32 %v2114, %v2123
        %v2136 = vmul.f32 %v2115, %v2123
        %v2137 = vmul.f32 %v2116, %v2123
        %v2138 = vmul.f32 %v2117, %v2123
        %v2139 = vmul.f32 %v2118, %v2123
        %v2140 = vadd.f32 %v2087, %v2124
        %v2141 = vadd.f32 %v2088, %v2125
        %v2142 = vadd.f32 %v2089, %v2126
        %v2143 = vadd.f32 %v2090, %v2127
        %v2144 = vadd.f32 %v2091, %v2128
        %v2145 = vadd.f32 %v2092, %v2129
        %v2146 = vadd.f32 %v2093, %v2130
        %v2147 = vadd.f32 %v2094, %v2131
        %v2148 = vadd.f32 %v2095, %v2132
        %v2149 = vadd.f32 %v2096, %v2133
        %v2150 = vadd.f32 %v2097, %v2134
        %v2151 = vadd.f32 %v2098, %v2135
        %v2152 = vadd.f32 %v2099, %v2136
        %v2153 = vadd.f32 %v2100, %v2137
        %v2154 = vadd.f32 %v2101, %v2138
        %v2155 = vadd.f32 %v2102, %v2139
        %v2156 = vld [vmem:[%s1889 + $0x5] sm:$0xff]
        %v2157 = vld [vmem:[%s1889 + $0xd] sm:$0xff]
        %v2158 = vld [vmem:[%s1889 + $0x1d] sm:$0xff]
        %v2159 = vld [vmem:[%s1889 + $0x25] sm:$0xff]
        %v2160 = vld [vmem:[%s1889 + $0x35] sm:$0xff]
        %v2161 = vld [vmem:[%s1889 + $0x3d] sm:$0xff]
        %v2162 = vld [vmem:[%s1889 + $0x4d] sm:$0xff]
        %v2163 = vld [vmem:[%s1889 + $0x55] sm:$0xff]
        %v2164 = vld [vmem:[%s1889 + $0x65] sm:$0xff]
        %v2165 = vld [vmem:[%s1889 + $0x6d] sm:$0xff]
        %v2166 = vld [vmem:[%s1889 + $0x7d] sm:$0xff]
        %v2167 = vld [vmem:[%s1889 + $0x85] sm:$0xff]
        %v2168 = vld [vmem:[%s1889 + $0x95] sm:$0xff]
        %v2169 = vld [vmem:[%s1889 + $0x9d] sm:$0xff]
        %v2170 = vld [vmem:[%s1889 + $0xad] sm:$0xff]
        %v2171 = vld [vmem:[%s1889 + $0xb5] sm:$0xff]
        %v2172 = vld [vmem:[%s1906 + $0x5] sm:$0x1]
        %v2173 = vlaneseq
        %v2174 = vshrl.u32 %v2173, 7
        %v2175 = vsub.s32 0, %v2174
        %v2176 = vrot.slane %v2172, %v2175
        %v2177 = vmul.f32 %v2156, %v2176
        %v2178 = vmul.f32 %v2157, %v2176
        %v2179 = vmul.f32 %v2158, %v2176
        %v2180 = vmul.f32 %v2159, %v2176
        %v2181 = vmul.f32 %v2160, %v2176
        %v2182 = vmul.f32 %v2161, %v2176
        %v2183 = vmul.f32 %v2162, %v2176
        %v2184 = vmul.f32 %v2163, %v2176
        %v2185 = vmul.f32 %v2164, %v2176
        %v2186 = vmul.f32 %v2165, %v2176
        %v2187 = vmul.f32 %v2166, %v2176
        %v2188 = vmul.f32 %v2167, %v2176
        %v2189 = vmul.f32 %v2168, %v2176
        %v2190 = vmul.f32 %v2169, %v2176
        %v2191 = vmul.f32 %v2170, %v2176
        %v2192 = vmul.f32 %v2171, %v2176
        %v2193 = vadd.f32 %v2140, %v2177
        %v2194 = vadd.f32 %v2141, %v2178
        %v2195 = vadd.f32 %v2142, %v2179
        %v2196 = vadd.f32 %v2143, %v2180
        %v2197 = vadd.f32 %v2144, %v2181
        %v2198 = vadd.f32 %v2145, %v2182
        %v2199 = vadd.f32 %v2146, %v2183
        %v2200 = vadd.f32 %v2147, %v2184
        %v2201 = vadd.f32 %v2148, %v2185
        %v2202 = vadd.f32 %v2149, %v2186
        %v2203 = vadd.f32 %v2150, %v2187
        %v2204 = vadd.f32 %v2151, %v2188
        %v2205 = vadd.f32 %v2152, %v2189
        %v2206 = vadd.f32 %v2153, %v2190
        %v2207 = vadd.f32 %v2154, %v2191
        %v2208 = vadd.f32 %v2155, %v2192
        %v2209 = vld [vmem:[%s1889 + $0x6] sm:$0xff]
        %v2210 = vld [vmem:[%s1889 + $0xe] sm:$0xff]
        %v2211 = vld [vmem:[%s1889 + $0x1e] sm:$0xff]
        %v2212 = vld [vmem:[%s1889 + $0x26] sm:$0xff]
        %v2213 = vld [vmem:[%s1889 + $0x36] sm:$0xff]
        %v2214 = vld [vmem:[%s1889 + $0x3e] sm:$0xff]
        %v2215 = vld [vmem:[%s1889 + $0x4e] sm:$0xff]
        %v2216 = vld [vmem:[%s1889 + $0x56] sm:$0xff]
        %v2217 = vld [vmem:[%s1889 + $0x66] sm:$0xff]
        %v2218 = vld [vmem:[%s1889 + $0x6e] sm:$0xff]
        %v2219 = vld [vmem:[%s1889 + $0x7e] sm:$0xff]
        %v2220 = vld [vmem:[%s1889 + $0x86] sm:$0xff]
        %v2221 = vld [vmem:[%s1889 + $0x96] sm:$0xff]
        %v2222 = vld [vmem:[%s1889 + $0x9e] sm:$0xff]
        %v2223 = vld [vmem:[%s1889 + $0xae] sm:$0xff]
        %v2224 = vld [vmem:[%s1889 + $0xb6] sm:$0xff]
        %v2225 = vld [vmem:[%s1906 + $0x6] sm:$0x1]
        %v2226 = vlaneseq
        %v2227 = vshrl.u32 %v2226, 7
        %v2228 = vsub.s32 0, %v2227
        %v2229 = vrot.slane %v2225, %v2228
        %v2230 = vmul.f32 %v2209, %v2229
        %v2231 = vmul.f32 %v2210, %v2229
        %v2232 = vmul.f32 %v2211, %v2229
        %v2233 = vmul.f32 %v2212, %v2229
        %v2234 = vmul.f32 %v2213, %v2229
        %v2235 = vmul.f32 %v2214, %v2229
        %v2236 = vmul.f32 %v2215, %v2229
        %v2237 = vmul.f32 %v2216, %v2229
        %v2238 = vmul.f32 %v2217, %v2229
        %v2239 = vmul.f32 %v2218, %v2229
        %v2240 = vmul.f32 %v2219, %v2229
        %v2241 = vmul.f32 %v2220, %v2229
        %v2242 = vmul.f32 %v2221, %v2229
        %v2243 = vmul.f32 %v2222, %v2229
        %v2244 = vmul.f32 %v2223, %v2229
        %v2245 = vmul.f32 %v2224, %v2229
        %v2246 = vadd.f32 %v2193, %v2230
        %v2247 = vadd.f32 %v2194, %v2231
        %v2248 = vadd.f32 %v2195, %v2232
        %v2249 = vadd.f32 %v2196, %v2233
        %v2250 = vadd.f32 %v2197, %v2234
        %v2251 = vadd.f32 %v2198, %v2235
        %v2252 = vadd.f32 %v2199, %v2236
        %v2253 = vadd.f32 %v2200, %v2237
        %v2254 = vadd.f32 %v2201, %v2238
        %v2255 = vadd.f32 %v2202, %v2239
        %v2256 = vadd.f32 %v2203, %v2240
        %v2257 = vadd.f32 %v2204, %v2241
        %v2258 = vadd.f32 %v2205, %v2242
        %v2259 = vadd.f32 %v2206, %v2243
        %v2260 = vadd.f32 %v2207, %v2244
        %v2261 = vadd.f32 %v2208, %v2245
        %s2262 = sadd.s32 %s388, 5
        %s2263 = smul.u32 %s2262, 24
        %s2264 = scalar_lea.vmem [#allocation2], %s2263
        %v2265 = vld [vmem:[%s2264] sm:$0xff]
        %v2266 = vld [vmem:[%s2264 + $0x8] sm:$0xff]
        %v2267 = vld [vmem:[%s2264 + $0x18] sm:$0xff]
        %v2268 = vld [vmem:[%s2264 + $0x20] sm:$0xff]
        %v2269 = vld [vmem:[%s2264 + $0x30] sm:$0xff]
        %v2270 = vld [vmem:[%s2264 + $0x38] sm:$0xff]
        %v2271 = vld [vmem:[%s2264 + $0x48] sm:$0xff]
        %v2272 = vld [vmem:[%s2264 + $0x50] sm:$0xff]
        %v2273 = vld [vmem:[%s2264 + $0x60] sm:$0xff]
        %v2274 = vld [vmem:[%s2264 + $0x68] sm:$0xff]
        %v2275 = vld [vmem:[%s2264 + $0x78] sm:$0xff]
        %v2276 = vld [vmem:[%s2264 + $0x80] sm:$0xff]
        %v2277 = vld [vmem:[%s2264 + $0x90] sm:$0xff]
        %v2278 = vld [vmem:[%s2264 + $0x98] sm:$0xff]
        %v2279 = vld [vmem:[%s2264 + $0xa8] sm:$0xff]
        %v2280 = vld [vmem:[%s2264 + $0xb0] sm:$0xff]
        %s2281 = scalar_lea.vmem %s221, 40
        %v2282 = vld [vmem:[%s2281] sm:$0x1]
        %v2283 = vlaneseq
        %v2284 = vshrl.u32 %v2283, 7
        %v2285 = vsub.s32 0, %v2284
        %v2286 = vrot.slane %v2282, %v2285
        %v2287 = vmul.f32 %v2265, %v2286
        %v2288 = vmul.f32 %v2266, %v2286
        %v2289 = vmul.f32 %v2267, %v2286
        %v2290 = vmul.f32 %v2268, %v2286
        %v2291 = vmul.f32 %v2269, %v2286
        %v2292 = vmul.f32 %v2270, %v2286
        %v2293 = vmul.f32 %v2271, %v2286
        %v2294 = vmul.f32 %v2272, %v2286
        %v2295 = vmul.f32 %v2273, %v2286
        %v2296 = vmul.f32 %v2274, %v2286
        %v2297 = vmul.f32 %v2275, %v2286
        %v2298 = vmul.f32 %v2276, %v2286
        %v2299 = vmul.f32 %v2277, %v2286
        %v2300 = vmul.f32 %v2278, %v2286
        %v2301 = vmul.f32 %v2279, %v2286
        %v2302 = vmul.f32 %v2280, %v2286
        %v2303 = vadd.f32 %v2246, %v2287
        %v2304 = vadd.f32 %v2247, %v2288
        %v2305 = vadd.f32 %v2248, %v2289
        %v2306 = vadd.f32 %v2249, %v2290
        %v2307 = vadd.f32 %v2250, %v2291
        %v2308 = vadd.f32 %v2251, %v2292
        %v2309 = vadd.f32 %v2252, %v2293
        %v2310 = vadd.f32 %v2253, %v2294
        %v2311 = vadd.f32 %v2254, %v2295
        %v2312 = vadd.f32 %v2255, %v2296
        %v2313 = vadd.f32 %v2256, %v2297
        %v2314 = vadd.f32 %v2257, %v2298
        %v2315 = vadd.f32 %v2258, %v2299
        %v2316 = vadd.f32 %v2259, %v2300
        %v2317 = vadd.f32 %v2260, %v2301
        %v2318 = vadd.f32 %v2261, %v2302
        %v2319 = vld [vmem:[%s2264 + $0x1] sm:$0xff]
        %v2320 = vld [vmem:[%s2264 + $0x9] sm:$0xff]
        %v2321 = vld [vmem:[%s2264 + $0x19] sm:$0xff]
        %v2322 = vld [vmem:[%s2264 + $0x21] sm:$0xff]
        %v2323 = vld [vmem:[%s2264 + $0x31] sm:$0xff]
        %v2324 = vld [vmem:[%s2264 + $0x39] sm:$0xff]
        %v2325 = vld [vmem:[%s2264 + $0x49] sm:$0xff]
        %v2326 = vld [vmem:[%s2264 + $0x51] sm:$0xff]
        %v2327 = vld [vmem:[%s2264 + $0x61] sm:$0xff]
        %v2328 = vld [vmem:[%s2264 + $0x69] sm:$0xff]
        %v2329 = vld [vmem:[%s2264 + $0x79] sm:$0xff]
        %v2330 = vld [vmem:[%s2264 + $0x81] sm:$0xff]
        %v2331 = vld [vmem:[%s2264 + $0x91] sm:$0xff]
        %v2332 = vld [vmem:[%s2264 + $0x99] sm:$0xff]
        %v2333 = vld [vmem:[%s2264 + $0xa9] sm:$0xff]
        %v2334 = vld [vmem:[%s2264 + $0xb1] sm:$0xff]
        %v2335 = vld [vmem:[%s2281 + $0x1] sm:$0x1]
        %v2336 = vlaneseq
        %v2337 = vshrl.u32 %v2336, 7
        %v2338 = vsub.s32 0, %v2337
        %v2339 = vrot.slane %v2335, %v2338
        %v2340 = vmul.f32 %v2319, %v2339
        %v2341 = vmul.f32 %v2320, %v2339
        %v2342 = vmul.f32 %v2321, %v2339
        %v2343 = vmul.f32 %v2322, %v2339
        %v2344 = vmul.f32 %v2323, %v2339
        %v2345 = vmul.f32 %v2324, %v2339
        %v2346 = vmul.f32 %v2325, %v2339
        %v2347 = vmul.f32 %v2326, %v2339
        %v2348 = vmul.f32 %v2327, %v2339
        %v2349 = vmul.f32 %v2328, %v2339
        %v2350 = vmul.f32 %v2329, %v2339
        %v2351 = vmul.f32 %v2330, %v2339
        %v2352 = vmul.f32 %v2331, %v2339
        %v2353 = vmul.f32 %v2332, %v2339
        %v2354 = vmul.f32 %v2333, %v2339
        %v2355 = vmul.f32 %v2334, %v2339
        %v2356 = vadd.f32 %v2303, %v2340
        %v2357 = vadd.f32 %v2304, %v2341
        %v2358 = vadd.f32 %v2305, %v2342
        %v2359 = vadd.f32 %v2306, %v2343
        %v2360 = vadd.f32 %v2307, %v2344
        %v2361 = vadd.f32 %v2308, %v2345
        %v2362 = vadd.f32 %v2309, %v2346
        %v2363 = vadd.f32 %v2310, %v2347
        %v2364 = vadd.f32 %v2311, %v2348
        %v2365 = vadd.f32 %v2312, %v2349
        %v2366 = vadd.f32 %v2313, %v2350
        %v2367 = vadd.f32 %v2314, %v2351
        %v2368 = vadd.f32 %v2315, %v2352
        %v2369 = vadd.f32 %v2316, %v2353
        %v2370 = vadd.f32 %v2317, %v2354
        %v2371 = vadd.f32 %v2318, %v2355
        %v2372 = vld [vmem:[%s2264 + $0x2] sm:$0xff]
        %v2373 = vld [vmem:[%s2264 + $0xa] sm:$0xff]
        %v2374 = vld [vmem:[%s2264 + $0x1a] sm:$0xff]
        %v2375 = vld [vmem:[%s2264 + $0x22] sm:$0xff]
        %v2376 = vld [vmem:[%s2264 + $0x32] sm:$0xff]
        %v2377 = vld [vmem:[%s2264 + $0x3a] sm:$0xff]
        %v2378 = vld [vmem:[%s2264 + $0x4a] sm:$0xff]
        %v2379 = vld [vmem:[%s2264 + $0x52] sm:$0xff]
        %v2380 = vld [vmem:[%s2264 + $0x62] sm:$0xff]
        %v2381 = vld [vmem:[%s2264 + $0x6a] sm:$0xff]
        %v2382 = vld [vmem:[%s2264 + $0x7a] sm:$0xff]
        %v2383 = vld [vmem:[%s2264 + $0x82] sm:$0xff]
        %v2384 = vld [vmem:[%s2264 + $0x92] sm:$0xff]
        %v2385 = vld [vmem:[%s2264 + $0x9a] sm:$0xff]
        %v2386 = vld [vmem:[%s2264 + $0xaa] sm:$0xff]
        %v2387 = vld [vmem:[%s2264 + $0xb2] sm:$0xff]
        %v2388 = vld [vmem:[%s2281 + $0x2] sm:$0x1]
        %v2389 = vlaneseq
        %v2390 = vshrl.u32 %v2389, 7
        %v2391 = vsub.s32 0, %v2390
        %v2392 = vrot.slane %v2388, %v2391
        %v2393 = vmul.f32 %v2372, %v2392
        %v2394 = vmul.f32 %v2373, %v2392
        %v2395 = vmul.f32 %v2374, %v2392
        %v2396 = vmul.f32 %v2375, %v2392
        %v2397 = vmul.f32 %v2376, %v2392
        %v2398 = vmul.f32 %v2377, %v2392
        %v2399 = vmul.f32 %v2378, %v2392
        %v2400 = vmul.f32 %v2379, %v2392
        %v2401 = vmul.f32 %v2380, %v2392
        %v2402 = vmul.f32 %v2381, %v2392
        %v2403 = vmul.f32 %v2382, %v2392
        %v2404 = vmul.f32 %v2383, %v2392
        %v2405 = vmul.f32 %v2384, %v2392
        %v2406 = vmul.f32 %v2385, %v2392
        %v2407 = vmul.f32 %v2386, %v2392
        %v2408 = vmul.f32 %v2387, %v2392
        %v2409 = vadd.f32 %v2356, %v2393
        %v2410 = vadd.f32 %v2357, %v2394
        %v2411 = vadd.f32 %v2358, %v2395
        %v2412 = vadd.f32 %v2359, %v2396
        %v2413 = vadd.f32 %v2360, %v2397
        %v2414 = vadd.f32 %v2361, %v2398
        %v2415 = vadd.f32 %v2362, %v2399
        %v2416 = vadd.f32 %v2363, %v2400
        %v2417 = vadd.f32 %v2364, %v2401
        %v2418 = vadd.f32 %v2365, %v2402
        %v2419 = vadd.f32 %v2366, %v2403
        %v2420 = vadd.f32 %v2367, %v2404
        %v2421 = vadd.f32 %v2368, %v2405
        %v2422 = vadd.f32 %v2369, %v2406
        %v2423 = vadd.f32 %v2370, %v2407
        %v2424 = vadd.f32 %v2371, %v2408
        %v2425 = vld [vmem:[%s2264 + $0x3] sm:$0xff]
        %v2426 = vld [vmem:[%s2264 + $0xb] sm:$0xff]
        %v2427 = vld [vmem:[%s2264 + $0x1b] sm:$0xff]
        %v2428 = vld [vmem:[%s2264 + $0x23] sm:$0xff]
        %v2429 = vld [vmem:[%s2264 + $0x33] sm:$0xff]
        %v2430 = vld [vmem:[%s2264 + $0x3b] sm:$0xff]
        %v2431 = vld [vmem:[%s2264 + $0x4b] sm:$0xff]
        %v2432 = vld [vmem:[%s2264 + $0x53] sm:$0xff]
        %v2433 = vld [vmem:[%s2264 + $0x63] sm:$0xff]
        %v2434 = vld [vmem:[%s2264 + $0x6b] sm:$0xff]
        %v2435 = vld [vmem:[%s2264 + $0x7b] sm:$0xff]
        %v2436 = vld [vmem:[%s2264 + $0x83] sm:$0xff]
        %v2437 = vld [vmem:[%s2264 + $0x93] sm:$0xff]
        %v2438 = vld [vmem:[%s2264 + $0x9b] sm:$0xff]
        %v2439 = vld [vmem:[%s2264 + $0xab] sm:$0xff]
        %v2440 = vld [vmem:[%s2264 + $0xb3] sm:$0xff]
        %v2441 = vld [vmem:[%s2281 + $0x3] sm:$0x1]
        %v2442 = vlaneseq
        %v2443 = vshrl.u32 %v2442, 7
        %v2444 = vsub.s32 0, %v2443
        %v2445 = vrot.slane %v2441, %v2444
        %v2446 = vmul.f32 %v2425, %v2445
        %v2447 = vmul.f32 %v2426, %v2445
        %v2448 = vmul.f32 %v2427, %v2445
        %v2449 = vmul.f32 %v2428, %v2445
        %v2450 = vmul.f32 %v2429, %v2445
        %v2451 = vmul.f32 %v2430, %v2445
        %v2452 = vmul.f32 %v2431, %v2445
        %v2453 = vmul.f32 %v2432, %v2445
        %v2454 = vmul.f32 %v2433, %v2445
        %v2455 = vmul.f32 %v2434, %v2445
        %v2456 = vmul.f32 %v2435, %v2445
        %v2457 = vmul.f32 %v2436, %v2445
        %v2458 = vmul.f32 %v2437, %v2445
        %v2459 = vmul.f32 %v2438, %v2445
        %v2460 = vmul.f32 %v2439, %v2445
        %v2461 = vmul.f32 %v2440, %v2445
        %v2462 = vadd.f32 %v2409, %v2446
        %v2463 = vadd.f32 %v2410, %v2447
        %v2464 = vadd.f32 %v2411, %v2448
        %v2465 = vadd.f32 %v2412, %v2449
        %v2466 = vadd.f32 %v2413, %v2450
        %v2467 = vadd.f32 %v2414, %v2451
        %v2468 = vadd.f32 %v2415, %v2452
        %v2469 = vadd.f32 %v2416, %v2453
        %v2470 = vadd.f32 %v2417, %v2454
        %v2471 = vadd.f32 %v2418, %v2455
        %v2472 = vadd.f32 %v2419, %v2456
        %v2473 = vadd.f32 %v2420, %v2457
        %v2474 = vadd.f32 %v2421, %v2458
        %v2475 = vadd.f32 %v2422, %v2459
        %v2476 = vadd.f32 %v2423, %v2460
        %v2477 = vadd.f32 %v2424, %v2461
        %v2478 = vld [vmem:[%s2264 + $0x4] sm:$0xff]
        %v2479 = vld [vmem:[%s2264 + $0xc] sm:$0xff]
        %v2480 = vld [vmem:[%s2264 + $0x1c] sm:$0xff]
        %v2481 = vld [vmem:[%s2264 + $0x24] sm:$0xff]
        %v2482 = vld [vmem:[%s2264 + $0x34] sm:$0xff]
        %v2483 = vld [vmem:[%s2264 + $0x3c] sm:$0xff]
        %v2484 = vld [vmem:[%s2264 + $0x4c] sm:$0xff]
        %v2485 = vld [vmem:[%s2264 + $0x54] sm:$0xff]
        %v2486 = vld [vmem:[%s2264 + $0x64] sm:$0xff]
        %v2487 = vld [vmem:[%s2264 + $0x6c] sm:$0xff]
        %v2488 = vld [vmem:[%s2264 + $0x7c] sm:$0xff]
        %v2489 = vld [vmem:[%s2264 + $0x84] sm:$0xff]
        %v2490 = vld [vmem:[%s2264 + $0x94] sm:$0xff]
        %v2491 = vld [vmem:[%s2264 + $0x9c] sm:$0xff]
        %v2492 = vld [vmem:[%s2264 + $0xac] sm:$0xff]
        %v2493 = vld [vmem:[%s2264 + $0xb4] sm:$0xff]
        %v2494 = vld [vmem:[%s2281 + $0x4] sm:$0x1]
        %v2495 = vlaneseq
        %v2496 = vshrl.u32 %v2495, 7
        %v2497 = vsub.s32 0, %v2496
        %v2498 = vrot.slane %v2494, %v2497
        %v2499 = vmul.f32 %v2478, %v2498
        %v2500 = vmul.f32 %v2479, %v2498
        %v2501 = vmul.f32 %v2480, %v2498
        %v2502 = vmul.f32 %v2481, %v2498
        %v2503 = vmul.f32 %v2482, %v2498
        %v2504 = vmul.f32 %v2483, %v2498
        %v2505 = vmul.f32 %v2484, %v2498
        %v2506 = vmul.f32 %v2485, %v2498
        %v2507 = vmul.f32 %v2486, %v2498
        %v2508 = vmul.f32 %v2487, %v2498
        %v2509 = vmul.f32 %v2488, %v2498
        %v2510 = vmul.f32 %v2489, %v2498
        %v2511 = vmul.f32 %v2490, %v2498
        %v2512 = vmul.f32 %v2491, %v2498
        %v2513 = vmul.f32 %v2492, %v2498
        %v2514 = vmul.f32 %v2493, %v2498
        %v2515 = vadd.f32 %v2462, %v2499
        %v2516 = vadd.f32 %v2463, %v2500
        %v2517 = vadd.f32 %v2464, %v2501
        %v2518 = vadd.f32 %v2465, %v2502
        %v2519 = vadd.f32 %v2466, %v2503
        %v2520 = vadd.f32 %v2467, %v2504
        %v2521 = vadd.f32 %v2468, %v2505
        %v2522 = vadd.f32 %v2469, %v2506
        %v2523 = vadd.f32 %v2470, %v2507
        %v2524 = vadd.f32 %v2471, %v2508
        %v2525 = vadd.f32 %v2472, %v2509
        %v2526 = vadd.f32 %v2473, %v2510
        %v2527 = vadd.f32 %v2474, %v2511
        %v2528 = vadd.f32 %v2475, %v2512
        %v2529 = vadd.f32 %v2476, %v2513
        %v2530 = vadd.f32 %v2477, %v2514
        %v2531 = vld [vmem:[%s2264 + $0x5] sm:$0xff]
        %v2532 = vld [vmem:[%s2264 + $0xd] sm:$0xff]
        %v2533 = vld [vmem:[%s2264 + $0x1d] sm:$0xff]
        %v2534 = vld [vmem:[%s2264 + $0x25] sm:$0xff]
        %v2535 = vld [vmem:[%s2264 + $0x35] sm:$0xff]
        %v2536 = vld [vmem:[%s2264 + $0x3d] sm:$0xff]
        %v2537 = vld [vmem:[%s2264 + $0x4d] sm:$0xff]
        %v2538 = vld [vmem:[%s2264 + $0x55] sm:$0xff]
        %v2539 = vld [vmem:[%s2264 + $0x65] sm:$0xff]
        %v2540 = vld [vmem:[%s2264 + $0x6d] sm:$0xff]
        %v2541 = vld [vmem:[%s2264 + $0x7d] sm:$0xff]
        %v2542 = vld [vmem:[%s2264 + $0x85] sm:$0xff]
        %v2543 = vld [vmem:[%s2264 + $0x95] sm:$0xff]
        %v2544 = vld [vmem:[%s2264 + $0x9d] sm:$0xff]
        %v2545 = vld [vmem:[%s2264 + $0xad] sm:$0xff]
        %v2546 = vld [vmem:[%s2264 + $0xb5] sm:$0xff]
        %v2547 = vld [vmem:[%s2281 + $0x5] sm:$0x1]
        %v2548 = vlaneseq
        %v2549 = vshrl.u32 %v2548, 7
        %v2550 = vsub.s32 0, %v2549
        %v2551 = vrot.slane %v2547, %v2550
        %v2552 = vmul.f32 %v2531, %v2551
        %v2553 = vmul.f32 %v2532, %v2551
        %v2554 = vmul.f32 %v2533, %v2551
        %v2555 = vmul.f32 %v2534, %v2551
        %v2556 = vmul.f32 %v2535, %v2551
        %v2557 = vmul.f32 %v2536, %v2551
        %v2558 = vmul.f32 %v2537, %v2551
        %v2559 = vmul.f32 %v2538, %v2551
        %v2560 = vmul.f32 %v2539, %v2551
        %v2561 = vmul.f32 %v2540, %v2551
        %v2562 = vmul.f32 %v2541, %v2551
        %v2563 = vmul.f32 %v2542, %v2551
        %v2564 = vmul.f32 %v2543, %v2551
        %v2565 = vmul.f32 %v2544, %v2551
        %v2566 = vmul.f32 %v2545, %v2551
        %v2567 = vmul.f32 %v2546, %v2551
        %v2568 = vadd.f32 %v2515, %v2552
        %v2569 = vadd.f32 %v2516, %v2553
        %v2570 = vadd.f32 %v2517, %v2554
        %v2571 = vadd.f32 %v2518, %v2555
        %v2572 = vadd.f32 %v2519, %v2556
        %v2573 = vadd.f32 %v2520, %v2557
        %v2574 = vadd.f32 %v2521, %v2558
        %v2575 = vadd.f32 %v2522, %v2559
        %v2576 = vadd.f32 %v2523, %v2560
        %v2577 = vadd.f32 %v2524, %v2561
        %v2578 = vadd.f32 %v2525, %v2562
        %v2579 = vadd.f32 %v2526, %v2563
        %v2580 = vadd.f32 %v2527, %v2564
        %v2581 = vadd.f32 %v2528, %v2565
        %v2582 = vadd.f32 %v2529, %v2566
        %v2583 = vadd.f32 %v2530, %v2567
        %v2584 = vld [vmem:[%s2264 + $0x6] sm:$0xff]
        %v2585 = vld [vmem:[%s2264 + $0xe] sm:$0xff]
        %v2586 = vld [vmem:[%s2264 + $0x1e] sm:$0xff]
        %v2587 = vld [vmem:[%s2264 + $0x26] sm:$0xff]
        %v2588 = vld [vmem:[%s2264 + $0x36] sm:$0xff]
        %v2589 = vld [vmem:[%s2264 + $0x3e] sm:$0xff]
        %v2590 = vld [vmem:[%s2264 + $0x4e] sm:$0xff]
        %v2591 = vld [vmem:[%s2264 + $0x56] sm:$0xff]
        %v2592 = vld [vmem:[%s2264 + $0x66] sm:$0xff]
        %v2593 = vld [vmem:[%s2264 + $0x6e] sm:$0xff]
        %v2594 = vld [vmem:[%s2264 + $0x7e] sm:$0xff]
        %v2595 = vld [vmem:[%s2264 + $0x86] sm:$0xff]
        %v2596 = vld [vmem:[%s2264 + $0x96] sm:$0xff]
        %v2597 = vld [vmem:[%s2264 + $0x9e] sm:$0xff]
        %v2598 = vld [vmem:[%s2264 + $0xae] sm:$0xff]
        %v2599 = vld [vmem:[%s2264 + $0xb6] sm:$0xff]
        %v2600 = vld [vmem:[%s2281 + $0x6] sm:$0x1]
        %v2601 = vlaneseq
        %v2602 = vshrl.u32 %v2601, 7
        %v2603 = vsub.s32 0, %v2602
        %v2604 = vrot.slane %v2600, %v2603
        %v2605 = vmul.f32 %v2584, %v2604
        %v2606 = vmul.f32 %v2585, %v2604
        %v2607 = vmul.f32 %v2586, %v2604
        %v2608 = vmul.f32 %v2587, %v2604
        %v2609 = vmul.f32 %v2588, %v2604
        %v2610 = vmul.f32 %v2589, %v2604
        %v2611 = vmul.f32 %v2590, %v2604
        %v2612 = vmul.f32 %v2591, %v2604
        %v2613 = vmul.f32 %v2592, %v2604
        %v2614 = vmul.f32 %v2593, %v2604
        %v2615 = vmul.f32 %v2594, %v2604
        %v2616 = vmul.f32 %v2595, %v2604
        %v2617 = vmul.f32 %v2596, %v2604
        %v2618 = vmul.f32 %v2597, %v2604
        %v2619 = vmul.f32 %v2598, %v2604
        %v2620 = vmul.f32 %v2599, %v2604
        %v2621 = vadd.f32 %v2568, %v2605
        %v2622 = vadd.f32 %v2569, %v2606
        %v2623 = vadd.f32 %v2570, %v2607
        %v2624 = vadd.f32 %v2571, %v2608
        %v2625 = vadd.f32 %v2572, %v2609
        %v2626 = vadd.f32 %v2573, %v2610
        %v2627 = vadd.f32 %v2574, %v2611
        %v2628 = vadd.f32 %v2575, %v2612
        %v2629 = vadd.f32 %v2576, %v2613
        %v2630 = vadd.f32 %v2577, %v2614
        %v2631 = vadd.f32 %v2578, %v2615
        %v2632 = vadd.f32 %v2579, %v2616
        %v2633 = vadd.f32 %v2580, %v2617
        %v2634 = vadd.f32 %v2581, %v2618
        %v2635 = vadd.f32 %v2582, %v2619
        %v2636 = vadd.f32 %v2583, %v2620
        %s2637 = sadd.s32 %s388, 6
        %s2638 = smul.u32 %s2637, 24
        %s2639 = scalar_lea.vmem [#allocation2], %s2638
        %v2640 = vld [vmem:[%s2639] sm:$0xff]
        %v2641 = vld [vmem:[%s2639 + $0x8] sm:$0xff]
        %v2642 = vld [vmem:[%s2639 + $0x18] sm:$0xff]
        %v2643 = vld [vmem:[%s2639 + $0x20] sm:$0xff]
        %v2644 = vld [vmem:[%s2639 + $0x30] sm:$0xff]
        %v2645 = vld [vmem:[%s2639 + $0x38] sm:$0xff]
        %v2646 = vld [vmem:[%s2639 + $0x48] sm:$0xff]
        %v2647 = vld [vmem:[%s2639 + $0x50] sm:$0xff]
        %v2648 = vld [vmem:[%s2639 + $0x60] sm:$0xff]
        %v2649 = vld [vmem:[%s2639 + $0x68] sm:$0xff]
        %v2650 = vld [vmem:[%s2639 + $0x78] sm:$0xff]
        %v2651 = vld [vmem:[%s2639 + $0x80] sm:$0xff]
        %v2652 = vld [vmem:[%s2639 + $0x90] sm:$0xff]
        %v2653 = vld [vmem:[%s2639 + $0x98] sm:$0xff]
        %v2654 = vld [vmem:[%s2639 + $0xa8] sm:$0xff]
        %v2655 = vld [vmem:[%s2639 + $0xb0] sm:$0xff]
        %s2656 = scalar_lea.vmem %s221, 48
        %v2657 = vld [vmem:[%s2656] sm:$0x1]
        %v2658 = vlaneseq
        %v2659 = vshrl.u32 %v2658, 7
        %v2660 = vsub.s32 0, %v2659
        %v2661 = vrot.slane %v2657, %v2660
        %v2662 = vmul.f32 %v2640, %v2661
        %v2663 = vmul.f32 %v2641, %v2661
        %v2664 = vmul.f32 %v2642, %v2661
        %v2665 = vmul.f32 %v2643, %v2661
        %v2666 = vmul.f32 %v2644, %v2661
        %v2667 = vmul.f32 %v2645, %v2661
        %v2668 = vmul.f32 %v2646, %v2661
        %v2669 = vmul.f32 %v2647, %v2661
        %v2670 = vmul.f32 %v2648, %v2661
        %v2671 = vmul.f32 %v2649, %v2661
        %v2672 = vmul.f32 %v2650, %v2661
        %v2673 = vmul.f32 %v2651, %v2661
        %v2674 = vmul.f32 %v2652, %v2661
        %v2675 = vmul.f32 %v2653, %v2661
        %v2676 = vmul.f32 %v2654, %v2661
        %v2677 = vmul.f32 %v2655, %v2661
        %v2678 = vadd.f32 %v2621, %v2662
        %v2679 = vadd.f32 %v2622, %v2663
        %v2680 = vadd.f32 %v2623, %v2664
        %v2681 = vadd.f32 %v2624, %v2665
        %v2682 = vadd.f32 %v2625, %v2666
        %v2683 = vadd.f32 %v2626, %v2667
        %v2684 = vadd.f32 %v2627, %v2668
        %v2685 = vadd.f32 %v2628, %v2669
        %v2686 = vadd.f32 %v2629, %v2670
        %v2687 = vadd.f32 %v2630, %v2671
        %v2688 = vadd.f32 %v2631, %v2672
        %v2689 = vadd.f32 %v2632, %v2673
        %v2690 = vadd.f32 %v2633, %v2674
        %v2691 = vadd.f32 %v2634, %v2675
        %v2692 = vadd.f32 %v2635, %v2676
        %v2693 = vadd.f32 %v2636, %v2677
        %v2694 = vld [vmem:[%s2639 + $0x1] sm:$0xff]
        %v2695 = vld [vmem:[%s2639 + $0x9] sm:$0xff]
        %v2696 = vld [vmem:[%s2639 + $0x19] sm:$0xff]
        %v2697 = vld [vmem:[%s2639 + $0x21] sm:$0xff]
        %v2698 = vld [vmem:[%s2639 + $0x31] sm:$0xff]
        %v2699 = vld [vmem:[%s2639 + $0x39] sm:$0xff]
        %v2700 = vld [vmem:[%s2639 + $0x49] sm:$0xff]
        %v2701 = vld [vmem:[%s2639 + $0x51] sm:$0xff]
        %v2702 = vld [vmem:[%s2639 + $0x61] sm:$0xff]
        %v2703 = vld [vmem:[%s2639 + $0x69] sm:$0xff]
        %v2704 = vld [vmem:[%s2639 + $0x79] sm:$0xff]
        %v2705 = vld [vmem:[%s2639 + $0x81] sm:$0xff]
        %v2706 = vld [vmem:[%s2639 + $0x91] sm:$0xff]
        %v2707 = vld [vmem:[%s2639 + $0x99] sm:$0xff]
        %v2708 = vld [vmem:[%s2639 + $0xa9] sm:$0xff]
        %v2709 = vld [vmem:[%s2639 + $0xb1] sm:$0xff]
        %v2710 = vld [vmem:[%s2656 + $0x1] sm:$0x1]
        %v2711 = vlaneseq
        %v2712 = vshrl.u32 %v2711, 7
        %v2713 = vsub.s32 0, %v2712
        %v2714 = vrot.slane %v2710, %v2713
        %v2715 = vmul.f32 %v2694, %v2714
        %v2716 = vmul.f32 %v2695, %v2714
        %v2717 = vmul.f32 %v2696, %v2714
        %v2718 = vmul.f32 %v2697, %v2714
        %v2719 = vmul.f32 %v2698, %v2714
        %v2720 = vmul.f32 %v2699, %v2714
        %v2721 = vmul.f32 %v2700, %v2714
        %v2722 = vmul.f32 %v2701, %v2714
        %v2723 = vmul.f32 %v2702, %v2714
        %v2724 = vmul.f32 %v2703, %v2714
        %v2725 = vmul.f32 %v2704, %v2714
        %v2726 = vmul.f32 %v2705, %v2714
        %v2727 = vmul.f32 %v2706, %v2714
        %v2728 = vmul.f32 %v2707, %v2714
        %v2729 = vmul.f32 %v2708, %v2714
        %v2730 = vmul.f32 %v2709, %v2714
        %v2731 = vadd.f32 %v2678, %v2715
        %v2732 = vadd.f32 %v2679, %v2716
        %v2733 = vadd.f32 %v2680, %v2717
        %v2734 = vadd.f32 %v2681, %v2718
        %v2735 = vadd.f32 %v2682, %v2719
        %v2736 = vadd.f32 %v2683, %v2720
        %v2737 = vadd.f32 %v2684, %v2721
        %v2738 = vadd.f32 %v2685, %v2722
        %v2739 = vadd.f32 %v2686, %v2723
        %v2740 = vadd.f32 %v2687, %v2724
        %v2741 = vadd.f32 %v2688, %v2725
        %v2742 = vadd.f32 %v2689, %v2726
        %v2743 = vadd.f32 %v2690, %v2727
        %v2744 = vadd.f32 %v2691, %v2728
        %v2745 = vadd.f32 %v2692, %v2729
        %v2746 = vadd.f32 %v2693, %v2730
        %v2747 = vld [vmem:[%s2639 + $0x2] sm:$0xff]
        %v2748 = vld [vmem:[%s2639 + $0xa] sm:$0xff]
        %v2749 = vld [vmem:[%s2639 + $0x1a] sm:$0xff]
        %v2750 = vld [vmem:[%s2639 + $0x22] sm:$0xff]
        %v2751 = vld [vmem:[%s2639 + $0x32] sm:$0xff]
        %v2752 = vld [vmem:[%s2639 + $0x3a] sm:$0xff]
        %v2753 = vld [vmem:[%s2639 + $0x4a] sm:$0xff]
        %v2754 = vld [vmem:[%s2639 + $0x52] sm:$0xff]
        %v2755 = vld [vmem:[%s2639 + $0x62] sm:$0xff]
        %v2756 = vld [vmem:[%s2639 + $0x6a] sm:$0xff]
        %v2757 = vld [vmem:[%s2639 + $0x7a] sm:$0xff]
        %v2758 = vld [vmem:[%s2639 + $0x82] sm:$0xff]
        %v2759 = vld [vmem:[%s2639 + $0x92] sm:$0xff]
        %v2760 = vld [vmem:[%s2639 + $0x9a] sm:$0xff]
        %v2761 = vld [vmem:[%s2639 + $0xaa] sm:$0xff]
        %v2762 = vld [vmem:[%s2639 + $0xb2] sm:$0xff]
        %v2763 = vld [vmem:[%s2656 + $0x2] sm:$0x1]
        %v2764 = vlaneseq
        %v2765 = vshrl.u32 %v2764, 7
        %v2766 = vsub.s32 0, %v2765
        %v2767 = vrot.slane %v2763, %v2766
        %v2768 = vmul.f32 %v2747, %v2767
        %v2769 = vmul.f32 %v2748, %v2767
        %v2770 = vmul.f32 %v2749, %v2767
        %v2771 = vmul.f32 %v2750, %v2767
        %v2772 = vmul.f32 %v2751, %v2767
        %v2773 = vmul.f32 %v2752, %v2767
        %v2774 = vmul.f32 %v2753, %v2767
        %v2775 = vmul.f32 %v2754, %v2767
        %v2776 = vmul.f32 %v2755, %v2767
        %v2777 = vmul.f32 %v2756, %v2767
        %v2778 = vmul.f32 %v2757, %v2767
        %v2779 = vmul.f32 %v2758, %v2767
        %v2780 = vmul.f32 %v2759, %v2767
        %v2781 = vmul.f32 %v2760, %v2767
        %v2782 = vmul.f32 %v2761, %v2767
        %v2783 = vmul.f32 %v2762, %v2767
        %v2784 = vadd.f32 %v2731, %v2768
        %v2785 = vadd.f32 %v2732, %v2769
        %v2786 = vadd.f32 %v2733, %v2770
        %v2787 = vadd.f32 %v2734, %v2771
        %v2788 = vadd.f32 %v2735, %v2772
        %v2789 = vadd.f32 %v2736, %v2773
        %v2790 = vadd.f32 %v2737, %v2774
        %v2791 = vadd.f32 %v2738, %v2775
        %v2792 = vadd.f32 %v2739, %v2776
        %v2793 = vadd.f32 %v2740, %v2777
        %v2794 = vadd.f32 %v2741, %v2778
        %v2795 = vadd.f32 %v2742, %v2779
        %v2796 = vadd.f32 %v2743, %v2780
        %v2797 = vadd.f32 %v2744, %v2781
        %v2798 = vadd.f32 %v2745, %v2782
        %v2799 = vadd.f32 %v2746, %v2783
        %v2800 = vld [vmem:[%s2639 + $0x3] sm:$0xff]
        %v2801 = vld [vmem:[%s2639 + $0xb] sm:$0xff]
        %v2802 = vld [vmem:[%s2639 + $0x1b] sm:$0xff]
        %v2803 = vld [vmem:[%s2639 + $0x23] sm:$0xff]
        %v2804 = vld [vmem:[%s2639 + $0x33] sm:$0xff]
        %v2805 = vld [vmem:[%s2639 + $0x3b] sm:$0xff]
        %v2806 = vld [vmem:[%s2639 + $0x4b] sm:$0xff]
        %v2807 = vld [vmem:[%s2639 + $0x53] sm:$0xff]
        %v2808 = vld [vmem:[%s2639 + $0x63] sm:$0xff]
        %v2809 = vld [vmem:[%s2639 + $0x6b] sm:$0xff]
        %v2810 = vld [vmem:[%s2639 + $0x7b] sm:$0xff]
        %v2811 = vld [vmem:[%s2639 + $0x83] sm:$0xff]
        %v2812 = vld [vmem:[%s2639 + $0x93] sm:$0xff]
        %v2813 = vld [vmem:[%s2639 + $0x9b] sm:$0xff]
        %v2814 = vld [vmem:[%s2639 + $0xab] sm:$0xff]
        %v2815 = vld [vmem:[%s2639 + $0xb3] sm:$0xff]
        %v2816 = vld [vmem:[%s2656 + $0x3] sm:$0x1]
        %v2817 = vlaneseq
        %v2818 = vshrl.u32 %v2817, 7
        %v2819 = vsub.s32 0, %v2818
        %v2820 = vrot.slane %v2816, %v2819
        %v2821 = vmul.f32 %v2800, %v2820
        %v2822 = vmul.f32 %v2801, %v2820
        %v2823 = vmul.f32 %v2802, %v2820
        %v2824 = vmul.f32 %v2803, %v2820
        %v2825 = vmul.f32 %v2804, %v2820
        %v2826 = vmul.f32 %v2805, %v2820
        %v2827 = vmul.f32 %v2806, %v2820
        %v2828 = vmul.f32 %v2807, %v2820
        %v2829 = vmul.f32 %v2808, %v2820
        %v2830 = vmul.f32 %v2809, %v2820
        %v2831 = vmul.f32 %v2810, %v2820
        %v2832 = vmul.f32 %v2811, %v2820
        %v2833 = vmul.f32 %v2812, %v2820
        %v2834 = vmul.f32 %v2813, %v2820
        %v2835 = vmul.f32 %v2814, %v2820
        %v2836 = vmul.f32 %v2815, %v2820
        %v2837 = vadd.f32 %v2784, %v2821
        %v2838 = vadd.f32 %v2785, %v2822
        %v2839 = vadd.f32 %v2786, %v2823
        %v2840 = vadd.f32 %v2787, %v2824
        %v2841 = vadd.f32 %v2788, %v2825
        %v2842 = vadd.f32 %v2789, %v2826
        %v2843 = vadd.f32 %v2790, %v2827
        %v2844 = vadd.f32 %v2791, %v2828
        %v2845 = vadd.f32 %v2792, %v2829
        %v2846 = vadd.f32 %v2793, %v2830
        %v2847 = vadd.f32 %v2794, %v2831
        %v2848 = vadd.f32 %v2795, %v2832
        %v2849 = vadd.f32 %v2796, %v2833
        %v2850 = vadd.f32 %v2797, %v2834
        %v2851 = vadd.f32 %v2798, %v2835
        %v2852 = vadd.f32 %v2799, %v2836
        %v2853 = vld [vmem:[%s2639 + $0x4] sm:$0xff]
        %v2854 = vld [vmem:[%s2639 + $0xc] sm:$0xff]
        %v2855 = vld [vmem:[%s2639 + $0x1c] sm:$0xff]
        %v2856 = vld [vmem:[%s2639 + $0x24] sm:$0xff]
        %v2857 = vld [vmem:[%s2639 + $0x34] sm:$0xff]
        %v2858 = vld [vmem:[%s2639 + $0x3c] sm:$0xff]
        %v2859 = vld [vmem:[%s2639 + $0x4c] sm:$0xff]
        %v2860 = vld [vmem:[%s2639 + $0x54] sm:$0xff]
        %v2861 = vld [vmem:[%s2639 + $0x64] sm:$0xff]
        %v2862 = vld [vmem:[%s2639 + $0x6c] sm:$0xff]
        %v2863 = vld [vmem:[%s2639 + $0x7c] sm:$0xff]
        %v2864 = vld [vmem:[%s2639 + $0x84] sm:$0xff]
        %v2865 = vld [vmem:[%s2639 + $0x94] sm:$0xff]
        %v2866 = vld [vmem:[%s2639 + $0x9c] sm:$0xff]
        %v2867 = vld [vmem:[%s2639 + $0xac] sm:$0xff]
        %v2868 = vld [vmem:[%s2639 + $0xb4] sm:$0xff]
        %v2869 = vld [vmem:[%s2656 + $0x4] sm:$0x1]
        %v2870 = vlaneseq
        %v2871 = vshrl.u32 %v2870, 7
        %v2872 = vsub.s32 0, %v2871
        %v2873 = vrot.slane %v2869, %v2872
        %v2874 = vmul.f32 %v2853, %v2873
        %v2875 = vmul.f32 %v2854, %v2873
        %v2876 = vmul.f32 %v2855, %v2873
        %v2877 = vmul.f32 %v2856, %v2873
        %v2878 = vmul.f32 %v2857, %v2873
        %v2879 = vmul.f32 %v2858, %v2873
        %v2880 = vmul.f32 %v2859, %v2873
        %v2881 = vmul.f32 %v2860, %v2873
        %v2882 = vmul.f32 %v2861, %v2873
        %v2883 = vmul.f32 %v2862, %v2873
        %v2884 = vmul.f32 %v2863, %v2873
        %v2885 = vmul.f32 %v2864, %v2873
        %v2886 = vmul.f32 %v2865, %v2873
        %v2887 = vmul.f32 %v2866, %v2873
        %v2888 = vmul.f32 %v2867, %v2873
        %v2889 = vmul.f32 %v2868, %v2873
        %v2890 = vadd.f32 %v2837, %v2874
        %v2891 = vadd.f32 %v2838, %v2875
        %v2892 = vadd.f32 %v2839, %v2876
        %v2893 = vadd.f32 %v2840, %v2877
        %v2894 = vadd.f32 %v2841, %v2878
        %v2895 = vadd.f32 %v2842, %v2879
        %v2896 = vadd.f32 %v2843, %v2880
        %v2897 = vadd.f32 %v2844, %v2881
        %v2898 = vadd.f32 %v2845, %v2882
        %v2899 = vadd.f32 %v2846, %v2883
        %v2900 = vadd.f32 %v2847, %v2884
        %v2901 = vadd.f32 %v2848, %v2885
        %v2902 = vadd.f32 %v2849, %v2886
        %v2903 = vadd.f32 %v2850, %v2887
        %v2904 = vadd.f32 %v2851, %v2888
        %v2905 = vadd.f32 %v2852, %v2889
        %v2906 = vld [vmem:[%s2639 + $0x5] sm:$0xff]
        %v2907 = vld [vmem:[%s2639 + $0xd] sm:$0xff]
        %v2908 = vld [vmem:[%s2639 + $0x1d] sm:$0xff]
        %v2909 = vld [vmem:[%s2639 + $0x25] sm:$0xff]
        %v2910 = vld [vmem:[%s2639 + $0x35] sm:$0xff]
        %v2911 = vld [vmem:[%s2639 + $0x3d] sm:$0xff]
        %v2912 = vld [vmem:[%s2639 + $0x4d] sm:$0xff]
        %v2913 = vld [vmem:[%s2639 + $0x55] sm:$0xff]
        %v2914 = vld [vmem:[%s2639 + $0x65] sm:$0xff]
        %v2915 = vld [vmem:[%s2639 + $0x6d] sm:$0xff]
        %v2916 = vld [vmem:[%s2639 + $0x7d] sm:$0xff]
        %v2917 = vld [vmem:[%s2639 + $0x85] sm:$0xff]
        %v2918 = vld [vmem:[%s2639 + $0x95] sm:$0xff]
        %v2919 = vld [vmem:[%s2639 + $0x9d] sm:$0xff]
        %v2920 = vld [vmem:[%s2639 + $0xad] sm:$0xff]
        %v2921 = vld [vmem:[%s2639 + $0xb5] sm:$0xff]
        %v2922 = vld [vmem:[%s2656 + $0x5] sm:$0x1]
        %v2923 = vlaneseq
        %v2924 = vshrl.u32 %v2923, 7
        %v2925 = vsub.s32 0, %v2924
        %v2926 = vrot.slane %v2922, %v2925
        %v2927 = vmul.f32 %v2906, %v2926
        %v2928 = vmul.f32 %v2907, %v2926
        %v2929 = vmul.f32 %v2908, %v2926
        %v2930 = vmul.f32 %v2909, %v2926
        %v2931 = vmul.f32 %v2910, %v2926
        %v2932 = vmul.f32 %v2911, %v2926
        %v2933 = vmul.f32 %v2912, %v2926
        %v2934 = vmul.f32 %v2913, %v2926
        %v2935 = vmul.f32 %v2914, %v2926
        %v2936 = vmul.f32 %v2915, %v2926
        %v2937 = vmul.f32 %v2916, %v2926
        %v2938 = vmul.f32 %v2917, %v2926
        %v2939 = vmul.f32 %v2918, %v2926
        %v2940 = vmul.f32 %v2919, %v2926
        %v2941 = vmul.f32 %v2920, %v2926
        %v2942 = vmul.f32 %v2921, %v2926
        %v2943 = vadd.f32 %v2890, %v2927
        %v2944 = vadd.f32 %v2891, %v2928
        %v2945 = vadd.f32 %v2892, %v2929
        %v2946 = vadd.f32 %v2893, %v2930
        %v2947 = vadd.f32 %v2894, %v2931
        %v2948 = vadd.f32 %v2895, %v2932
        %v2949 = vadd.f32 %v2896, %v2933
        %v2950 = vadd.f32 %v2897, %v2934
        %v2951 = vadd.f32 %v2898, %v2935
        %v2952 = vadd.f32 %v2899, %v2936
        %v2953 = vadd.f32 %v2900, %v2937
        %v2954 = vadd.f32 %v2901, %v2938
        %v2955 = vadd.f32 %v2902, %v2939
        %v2956 = vadd.f32 %v2903, %v2940
        %v2957 = vadd.f32 %v2904, %v2941
        %v2958 = vadd.f32 %v2905, %v2942
        %v2959 = vld [vmem:[%s2639 + $0x6] sm:$0xff]
        %v2960 = vld [vmem:[%s2639 + $0xe] sm:$0xff]
        %v2961 = vld [vmem:[%s2639 + $0x1e] sm:$0xff]
        %v2962 = vld [vmem:[%s2639 + $0x26] sm:$0xff]
        %v2963 = vld [vmem:[%s2639 + $0x36] sm:$0xff]
        %v2964 = vld [vmem:[%s2639 + $0x3e] sm:$0xff]
        %v2965 = vld [vmem:[%s2639 + $0x4e] sm:$0xff]
        %v2966 = vld [vmem:[%s2639 + $0x56] sm:$0xff]
        %v2967 = vld [vmem:[%s2639 + $0x66] sm:$0xff]
        %v2968 = vld [vmem:[%s2639 + $0x6e] sm:$0xff]
        %v2969 = vld [vmem:[%s2639 + $0x7e] sm:$0xff]
        %v2970 = vld [vmem:[%s2639 + $0x86] sm:$0xff]
        %v2971 = vld [vmem:[%s2639 + $0x96] sm:$0xff]
        %v2972 = vld [vmem:[%s2639 + $0x9e] sm:$0xff]
        %v2973 = vld [vmem:[%s2639 + $0xae] sm:$0xff]
        %v2974 = vld [vmem:[%s2639 + $0xb6] sm:$0xff]
        %v2975 = vld [vmem:[%s2656 + $0x6] sm:$0x1]
        %v2976 = vlaneseq
        %v2977 = vshrl.u32 %v2976, 7
        %v2978 = vsub.s32 0, %v2977
        %v2979 = vrot.slane %v2975, %v2978
        %v2980 = vmul.f32 %v2959, %v2979
        %v2981 = vmul.f32 %v2960, %v2979
        %v2982 = vmul.f32 %v2961, %v2979
        %v2983 = vmul.f32 %v2962, %v2979
        %v2984 = vmul.f32 %v2963, %v2979
        %v2985 = vmul.f32 %v2964, %v2979
        %v2986 = vmul.f32 %v2965, %v2979
        %v2987 = vmul.f32 %v2966, %v2979
        %v2988 = vmul.f32 %v2967, %v2979
        %v2989 = vmul.f32 %v2968, %v2979
        %v2990 = vmul.f32 %v2969, %v2979
        %v2991 = vmul.f32 %v2970, %v2979
        %v2992 = vmul.f32 %v2971, %v2979
        %v2993 = vmul.f32 %v2972, %v2979
        %v2994 = vmul.f32 %v2973, %v2979
        %v2995 = vmul.f32 %v2974, %v2979
        %v2996 = vadd.f32 %v2943, %v2980
        %v2997 = vadd.f32 %v2944, %v2981
        %v2998 = vadd.f32 %v2945, %v2982
        %v2999 = vadd.f32 %v2946, %v2983
        %v3000 = vadd.f32 %v2947, %v2984
        %v3001 = vadd.f32 %v2948, %v2985
        %v3002 = vadd.f32 %v2949, %v2986
        %v3003 = vadd.f32 %v2950, %v2987
        %v3004 = vadd.f32 %v2951, %v2988
        %v3005 = vadd.f32 %v2952, %v2989
        %v3006 = vadd.f32 %v2953, %v2990
        %v3007 = vadd.f32 %v2954, %v2991
        %v3008 = vadd.f32 %v2955, %v2992
        %v3009 = vadd.f32 %v2956, %v2993
        %v3010 = vadd.f32 %v2957, %v2994
        %v3011 = vadd.f32 %v2958, %v2995
        %s3012 = smul.u32 %s388, 16
        %s3013 = scalar_lea.vmem %s232, %s3012
        %3014 = vst.msk [vmem:[%s3013] sm:$0xff] %vm233, %v2996
        %3015 = vst.msk [vmem:[%s3013 + $0x8] sm:$0xff] %vm233, %v2997
        %3016 = vst.msk [vmem:[%s3013 + $0x10] sm:$0xff] %vm233, %v2998
        %3017 = vst.msk [vmem:[%s3013 + $0x18] sm:$0xff] %vm233, %v2999
        %3018 = vst.msk [vmem:[%s3013 + $0x20] sm:$0xff] %vm233, %v3000
        %3019 = vst.msk [vmem:[%s3013 + $0x28] sm:$0xff] %vm233, %v3001
        %3020 = vst.msk [vmem:[%s3013 + $0x30] sm:$0xff] %vm233, %v3002
        %3021 = vst.msk [vmem:[%s3013 + $0x38] sm:$0xff] %vm233, %v3003
        %3022 = vst.msk [vmem:[%s3013 + $0x40] sm:$0xff] %vm233, %v3004
        %3023 = vst.msk [vmem:[%s3013 + $0x48] sm:$0xff] %vm233, %v3005
        %3024 = vst.msk [vmem:[%s3013 + $0x50] sm:$0xff] %vm233, %v3006
        %3025 = vst.msk [vmem:[%s3013 + $0x58] sm:$0xff] %vm233, %v3007
        %3026 = vst.msk [vmem:[%s3013 + $0x60] sm:$0xff] %vm233, %v3008
        %3027 = vst.msk [vmem:[%s3013 + $0x68] sm:$0xff] %vm233, %v3009
        %3028 = vst.msk [vmem:[%s3013 + $0x70] sm:$0xff] %vm233, %v3010
        %3029 = vst.msk [vmem:[%s3013 + $0x78] sm:$0xff] %vm233, %v3011
      $region37: #{tpu_custom_call.1} parent=31 // loop_footer
        %s387 = sadd.s32 1, %s383
      $region38: #{tpu_custom_call.1} parent=31 // loop_footer_branch
        %382 = sbr.rel target = $region34
      $region39: #{tpu_custom_call.1} parent=31 // loop_exit
        _
      %p3030 = scmp.lt.s32.totalorder %s18, 1
      %s3031 = scalar_select %p3030, %s18, 1
      %p3032 = scmp.lt.s32.totalorder %s19, 0
      %s3033 = scalar_select %p3032, %s19, 0
      %s3034 = smul.addr %s3031, 32
      %s3035 = sadd.s32 %s3033, %s3034
      %s3036 = smul.addr %s3035, 8
      %s3037 = scalar_lea.vmem %s3, %s3036
      // Predicated region
      $region40: #{tpu_custom_call.1} parent=31 // pred_check
        %p3038 = pneg %p126
      $region41: #{tpu_custom_call.1} parent=31 // pred_check_branch
        %3040 = sbr.rel (%p3038) target = $region43
      $region42: #{tpu_custom_call.1} parent=31 // pred_region
        _
      $region43: #{tpu_custom_call.1} parent=31 // pred_fallthru
        _
    $region32: #{tpu_custom_call.1} parent=5 // pred_fallthru
      _
    %p3041 = scmp.le.s32.totalorder 2, %s9
    // Predicated region
    $region44: #{tpu_custom_call.1} parent=5 // pred_check
      %p3042 = pneg %p3041
    $region45: #{tpu_custom_call.1} parent=5 // pred_check_branch
      %3044 = sbr.rel (%p3042) target = $region47
    $region46: #{tpu_custom_call.1} parent=5 // pred_region
      %s3045 = ssub.s32 %s9, 2
      // Predicated region
      $region48: #{tpu_custom_call.1} parent=46 // pred_check
        %p3046 = pneg %p132
      $region49: #{tpu_custom_call.1} parent=46 // pred_check_branch
        %3048 = sbr.rel (%p3046) target = $region51
      $region50: #{tpu_custom_call.1} parent=46 // pred_region
        %p3049 = scmp.lt.s32.totalorder %s20, 1
        %s3050 = scalar_select %p3049, %s20, 1
        %p3051 = scmp.lt.s32.totalorder %s21, 0
        %s3052 = scalar_select %p3051, %s21, 0
        %s3053 = smul.addr %s3050, 32
        %s3054 = sadd.s32 %s3052, %s3053
        %s3055 = smul.addr %s3054, 8
        %s3056 = scalar_lea.vmem %s3, %s3055
      $region51: #{tpu_custom_call.1} parent=46 // pred_fallthru
        _
    $region47: #{tpu_custom_call.1} parent=5 // pred_fallthru
      _
  $region6: #{tpu_custom_call.1} parent=0 // loop_footer
    %s13 = sadd.s32 1, %s9
  $region7: #{tpu_custom_call.1} parent=0 // loop_footer_branch
    %8 = sbr.rel target = $region3
  $region8: #{tpu_custom_call.1} parent=0 // loop_exit
    _

</llo_original>
